<compile_context>
chip_gen: v6e
topology: v6e:2x2x1
jax: 0.10.0
libtpu: 0.0.40
codegen_flags: <defaults>
</compile_context>

<pallas_src>
import functools

import jax
import jax.numpy as jnp
from jax import lax
from jax.experimental import pallas as pl
from jax.experimental.pallas import tpu as pltpu

_HALO = 128  # lane-aligned causal-halo width per tile (requires 2*padding <= 128)


def _round_up(n, m):
    return ((n + m - 1) // m) * m


def _temporal_block_kernel(xm_ref, xh_ref, w1_ref, b1_ref, w2_ref, b2_ref,
                           wd_ref, bd_ref, o_ref, s1_ref, s2_ref,
                           *, B, K, d, p, TL, C_in_p, C_out_p, C_out):
    # xm_ref: (B, C_in_p, TL)        main x tile, channel-major (time on lanes)
    # xh_ref: (B, 1, C_in_p, 128)    lane-aligned causal halo x[t0-128 : t0) (zeros t<0)
    # w1_ref: (C_out_p, K*C_in_p)    conv1, K taps fused along the contraction dim
    # w2_ref: (C_out_p, K*C_out_p)   conv2 (weight-norm folded host-side), fused taps
    # wd_ref: (C_out_p, C_in_p)      1x1 downsample
    # b*_ref: (C_out_p, 1)           f32 bias columns (broadcast over lanes)
    # o_ref : (B, C_out, TL)
    # s1_ref: (K*C_in_p, TL + p)     stacked conv1 input (VMEM scratch)
    # s2_ref: (K*C_out_p, TL)        stacked conv2 input (VMEM scratch)
    W1 = w1_ref[...]
    W2 = w2_ref[...]
    Wd = wd_ref[...]
    b1 = b1_ref[...]
    b2 = b2_ref[...]
    bd = bd_ref[...]
    first_tile = pl.program_id(0) == 0
    width1 = TL + p

    for b in range(B):  # batch folded into one grid step (amortizes per-step overhead)
        xm = xm_ref[b]        # (C_in_p, TL)
        xh = xh_ref[b, 0]     # (C_in_p, 128)

        # Residual 1x1 conv straight off the main tile (no scratch dependency).
        res = jnp.dot(Wd, xm, preferred_element_type=jnp.float32) + bd

        # ---- conv1 (dilated causal): one fused MXU matmul over all K taps ----
        # out1 is recomputed over the extended range [t0 - p, t0 + TL) so conv2 never
        # needs cross-tile values; the tile axis stays fully "parallel".
        for k in range(K):
            hw = 2 * p - k * d                 # columns sourced from the halo (p..2p)
            r0 = k * C_in_p                    # sublane-aligned row block
            s1_ref[r0:r0 + C_in_p, 0:hw] = xh[:, _HALO - hw:_HALO]
            s1_ref[r0:r0 + C_in_p, hw:width1] = xm[:, 0:width1 - hw]
        out1 = jnp.dot(W1, s1_ref[...], preferred_element_type=jnp.float32)
        out1 = jnp.maximum(out1 + b1, 0.0)     # (C_out_p, TL+p); dropout1 = id (eval)

        # ---- conv2 (dilated causal): fused taps again ----
        for k in range(K):
            r0 = k * C_out_p
            s2_ref[r0:r0 + C_out_p, :] = out1[:, k * d:k * d + TL].astype(s2_ref.dtype)

        # conv2's causal zero padding (out1(t<0) == 0) only exists on the first tile;
        # gate it so other tiles (which need their recomputed halo values) pay nothing.
        @pl.when(first_tile)
        def _zero_causal():
            for kk in range(K - 1):            # k = K-1 has k*d == p -> nothing to zero
                w = p - kk * d
                r0 = kk * C_out_p
                s2_ref[r0:r0 + C_out_p, 0:w] = jnp.zeros((C_out_p, w), s2_ref.dtype)

        out2 = jnp.dot(W2, s2_ref[...], preferred_element_type=jnp.float32)
        out2 = jnp.maximum(out2 + b2, 0.0)     # dropout2 = id (eval)

        y = jnp.maximum(out2 + res, 0.0)       # (C_out_p, TL)
        o_ref[b] = y[:C_out].astype(o_ref.dtype)


def _pick_time_tile(L, per_col_bytes, fixed_bytes, budget_bytes):
    cands = [t for t in range(128, min(L, 2048) + 1, 128) if L % t == 0]
    if not cands:
        return L                                  # lane dim == full array dim is legal
    fits = [t for t in cands if fixed_bytes + t * per_col_bytes <= budget_bytes]
    if not fits:
        return cands[0]
    # Prefer an even tile count (clean split across v7x's 2 TensorCores) as long as
    # the tile stays >= 512 (measured ~85% of HBM roofline at 512+).
    even = [t for t in fits if t >= 512 and (L // t) % 2 == 0]
    return max(even) if even else max(fits)


def temporal_block(x, w1, b1, w2, b2, wd, bd, *,
                   kernel_size, dilation, padding,
                   time_tile=None, compute_dtype=None):
    """x: (B, C_in, L) (PyTorch NCL, channel-major). Returns (B, C_out, L).

    compute_dtype: dtype fed to the MXU (e.g. jnp.bfloat16 on v6e/v7x); accumulation
    and post-dot elementwise stay f32.  Defaults to x.dtype.
    """
    B, C_in, L = x.shape
    C_out = w1.shape[0]
    K, d, p = kernel_size, dilation, padding
    assert p == (K - 1) * d and p >= 1, "TCN causal padding expected"
    assert 2 * p <= _HALO, "dilated receptive field must fit the 128-lane halo"

    cdt = jnp.dtype(compute_dtype) if compute_dtype is not None else x.dtype
    out_dtype = x.dtype
    C_in_p = _round_up(C_in, 8)    # sublane-aligned -> stacked stores are unmasked
    C_out_p = _round_up(C_out, 8)

    # ---- VMEM budget & time-tile selection (re-derived per TPU generation) ----
    try:
        vmem_cap = int(pltpu.get_tpu_info().vmem_capacity_bytes)  # 128MiB v5e/v6e, 64MiB v7x
    except Exception:
        vmem_cap = 64 * 1024 * 1024
    s_in = jnp.dtype(cdt).itemsize
    s_out = jnp.dtype(out_dtype).itemsize
    per_col = (2 * B * C_in_p * s_in       # main x block, double-buffered
               + 2 * B * C_out * s_out     # output block, double-buffered
               + K * C_in_p * s_in         # stacked conv1 input scratch
               + K * C_out_p * s_in)       # stacked conv2 input scratch
    fixed = (2 * B * C_in_p * _HALO * s_in
             + 2 * s_in * (C_out_p * K * C_in_p + C_out_p * K * C_out_p
                           + C_out_p * C_in_p)
             + 2 * 4 * 3 * C_out_p
             + (2 << 20))                  # slack for compiler-internal scratch
    if time_tile is None:
        TL = _pick_time_tile(L, per_col, fixed, int(vmem_cap * 0.45))
    else:
        TL = time_tile
    assert L % TL == 0 and (TL % 128 == 0 or TL == L), "TL must divide L, lane-aligned"
    assert TL >= p
    num_tiles = L // TL
    need = fixed + per_col * TL
    vmem_limit = int(min(vmem_cap * 0.9, max(32 << 20, 2 * need)))

    # ---- operand prep: channel padding, fused-tap weights, lane-aligned halo ----
    x_c = x.astype(cdt)
    x_p = jnp.pad(x_c, ((0, 0), (0, C_in_p - C_in), (0, 0)))            # (B, C_in_p, L)
    x_lpad = jnp.pad(x_p, ((0, 0), (0, 0), (_HALO, 0)))                 # zeros for t<0
    win = (jnp.arange(num_tiles) * TL)[:, None] + jnp.arange(_HALO)[None, :]
    x_halo = jnp.transpose(x_lpad[:, :, win], (0, 2, 1, 3))             # (B, T, C_in_p, 128)

    w1_p = jnp.pad(w1, ((0, C_out_p - C_out), (0, C_in_p - C_in), (0, 0)))
    w1_f = jnp.transpose(w1_p, (0, 2, 1)).reshape(C_out_p, K * C_in_p).astype(cdt)
    w2_p = jnp.pad(w2, ((0, C_out_p - C_out), (0, C_out_p - C_out), (0, 0)))
    w2_f = jnp.transpose(w2_p, (0, 2, 1)).reshape(C_out_p, K * C_out_p).astype(cdt)
    wd_m = jnp.pad(wd[:, :, 0], ((0, C_out_p - C_out), (0, C_in_p - C_in))).astype(cdt)
    b1_c = jnp.pad(b1, (0, C_out_p - C_out)).astype(jnp.float32)[:, None]
    b2_c = jnp.pad(b2, (0, C_out_p - C_out)).astype(jnp.float32)[:, None]
    bd_c = jnp.pad(bd, (0, C_out_p - C_out)).astype(jnp.float32)[:, None]

    kernel = functools.partial(
        _temporal_block_kernel, B=B, K=K, d=d, p=p, TL=TL,
        C_in_p=C_in_p, C_out_p=C_out_p, C_out=C_out)

    out = pl.pallas_call(
        kernel,
        out_shape=jax.ShapeDtypeStruct((B, C_out, L), out_dtype),
        grid=(num_tiles,),
        in_specs=[
            pl.BlockSpec((B, C_in_p, TL), lambda i: (0, 0, i)),           # main x tile
            pl.BlockSpec((B, 1, C_in_p, _HALO), lambda i: (0, i, 0, 0)),  # causal halo
            pl.BlockSpec((C_out_p, K * C_in_p), lambda i: (0, 0)),
            pl.BlockSpec((C_out_p, 1), lambda i: (0, 0)),
            pl.BlockSpec((C_out_p, K * C_out_p), lambda i: (0, 0)),
            pl.BlockSpec((C_out_p, 1), lambda i: (0, 0)),
            pl.BlockSpec((C_out_p, C_in_p), lambda i: (0, 0)),
            pl.BlockSpec((C_out_p, 1), lambda i: (0, 0)),
        ],
        out_specs=pl.BlockSpec((B, C_out, TL), lambda i: (0, 0, i)),
        scratch_shapes=[pltpu.VMEM((K * C_in_p, TL + p), cdt),
                        pltpu.VMEM((K * C_out_p, TL), cdt)],
        compiler_params=pltpu.CompilerParams(
            dimension_semantics=("parallel",),
            vmem_limit_bytes=vmem_limit),
    )(x_p, x_halo, w1_f, b1_c, w2_f, b2_c, wd_m, bd_c)

    return out


# ----------------------- pure-JAX reference (for verification) -----------------------
def _ref_causal_conv(x, w, b, d, p):
    # x: (B, C_in, L), w: (C_out, C_in, K) -> (B, C_out, L)  (conv + chomp)
    y = lax.conv_general_dilated(x, w, window_strides=(1,), padding=[(p, p)],
                                 rhs_dilation=(d,),
                                 dimension_numbers=("NCH", "OIH", "NCH"))
    y = y + b[None, :, None]
    return y[:, :, :y.shape[2] - p]


def _ref_temporal_block(x, w1, b1, w2, b2, wd, bd, d, p):
    out = jnp.maximum(_ref_causal_conv(x, w1, b1, d, p), 0.0)
    out = jnp.maximum(_ref_causal_conv(out, w2, b2, d, p), 0.0)
    res = jnp.einsum("bcl,oc->bol", x, wd[:, :, 0]) + bd[None, :, None]
    return jnp.maximum(out + res, 0.0)


if __name__ == "__main__":
    # Small, deterministic configuration; L chosen so that the auto-picked tile
    # (TL=1024, num_tiles=2) exercises both the first-tile causal path and the
    # halo-recompute path on interior tiles.
    B, C_in, C_out, L = 2, 4, 8, 2048
    kernel_size, stride, dilation = 3, 1, 2
    padding = (kernel_size - 1) * dilation  # causal padding => output length == L

    key = jax.random.PRNGKey(0)
    ks = jax.random.split(key, 8)

    x = jax.random.normal(ks[0], (B, C_in, L), jnp.float32)

    # conv1: weight ~ N(0, 0.01) (init_weights), bias ~ small uniform
    w1 = 0.01 * jax.random.normal(ks[1], (C_out, C_in, kernel_size), jnp.float32)
    b1 = 0.1 * jax.random.uniform(ks[2], (C_out,), jnp.float32, -1.0, 1.0)

    # conv2: weight_norm reparam — effective weight = g * v / ||v|| (norm over dims 1,2)
    v2 = 0.01 * jax.random.normal(ks[3], (C_out, C_out, kernel_size), jnp.float32)
    g2 = 1.0 + 0.1 * jax.random.uniform(ks[4], (C_out,), jnp.float32)
    v2_norm = jnp.sqrt(jnp.sum(v2 * v2, axis=(1, 2), keepdims=True))
    w2 = g2[:, None, None] * v2 / v2_norm
    b2 = 0.1 * jax.random.uniform(ks[5], (C_out,), jnp.float32, -1.0, 1.0)

    # downsample 1x1 conv (n_inputs != n_outputs)
    wd = 0.01 * jax.random.normal(ks[6], (C_out, C_in, 1), jnp.float32)
    bd = 0.1 * jax.random.uniform(ks[7], (C_out,), jnp.float32, -1.0, 1.0)

    y = temporal_block(x, w1, b1, w2, b2, wd, bd,
                       kernel_size=kernel_size, dilation=dilation, padding=padding)
    y = jax.block_until_ready(y)

    y_ref = _ref_temporal_block(x, w1, b1, w2, b2, wd, bd, dilation, padding)
    assert y.shape == (B, C_out, L)
    assert jnp.allclose(y, y_ref, atol=1e-4, rtol=1e-4), "mismatch vs reference"

    print("KERNEL_OK")
</pallas_src>

<mosaic_0001>
module attributes {stable_mosaic.version = 11 : i64} {
  func.func @_temporal_block_kernel(%arg0: i32, %arg1: memref<2x8x1024xf32, #tpu.memory_space<vmem>>, %arg2: memref<2x1x8x128xf32, #tpu.memory_space<vmem>>, %arg3: memref<8x24xf32, #tpu.memory_space<vmem>>, %arg4: memref<8x1xf32, #tpu.memory_space<vmem>>, %arg5: memref<8x24xf32, #tpu.memory_space<vmem>>, %arg6: memref<8x1xf32, #tpu.memory_space<vmem>>, %arg7: memref<8x8xf32, #tpu.memory_space<vmem>>, %arg8: memref<8x1xf32, #tpu.memory_space<vmem>>, %arg9: memref<2x8x1024xf32, #tpu.memory_space<vmem>>, %arg10: memref<24x1028xf32, #tpu.memory_space<vmem>>, %arg11: memref<24x1024xf32, #tpu.memory_space<vmem>>) attributes {dimension_semantics = [#tpu.dimension_semantics<parallel>], iteration_bounds = array<i64: 2>, scalar_prefetch = 0 : i64, scratch_operands = 2 : i64, tpu.core_type = #tpu.core_type<tc>, window_params = [{transform_indices = @transform_0, window_bounds = array<i64: 2, 8, 1024>}, {transform_indices = @transform_1, window_bounds = array<i64: 2, 1, 8, 128>}, {pipeline_mode = #tpu.pipeline_mode<synchronous>, transform_indices = @transform_2, window_bounds = array<i64: 8, 24>}, {pipeline_mode = #tpu.pipeline_mode<synchronous>, transform_indices = @transform_3, window_bounds = array<i64: 8, 1>}, {pipeline_mode = #tpu.pipeline_mode<synchronous>, transform_indices = @transform_4, window_bounds = array<i64: 8, 24>}, {pipeline_mode = #tpu.pipeline_mode<synchronous>, transform_indices = @transform_5, window_bounds = array<i64: 8, 1>}, {pipeline_mode = #tpu.pipeline_mode<synchronous>, transform_indices = @transform_6, window_bounds = array<i64: 8, 8>}, {pipeline_mode = #tpu.pipeline_mode<synchronous>, transform_indices = @transform_7, window_bounds = array<i64: 8, 1>}, {transform_indices = @transform_8, window_bounds = array<i64: 2, 8, 1024>}]} {
    %c0 = arith.constant 0 : index
    %c0_0 = arith.constant 0 : index
    %0 = vector.load %arg3[%c0, %c0_0] : memref<8x24xf32, #tpu.memory_space<vmem>>, vector<8x24xf32>
    %c0_1 = arith.constant 0 : index
    %c0_2 = arith.constant 0 : index
    %1 = vector.load %arg5[%c0_1, %c0_2] : memref<8x24xf32, #tpu.memory_space<vmem>>, vector<8x24xf32>
    %c0_3 = arith.constant 0 : index
    %c0_4 = arith.constant 0 : index
    %2 = vector.load %arg7[%c0_3, %c0_4] : memref<8x8xf32, #tpu.memory_space<vmem>>, vector<8x8xf32>
    %c0_5 = arith.constant 0 : index
    %c0_6 = arith.constant 0 : index
    %3 = vector.load %arg4[%c0_5, %c0_6] : memref<8x1xf32, #tpu.memory_space<vmem>>, vector<8x1xf32>
    %c0_7 = arith.constant 0 : index
    %c0_8 = arith.constant 0 : index
    %4 = vector.load %arg6[%c0_7, %c0_8] : memref<8x1xf32, #tpu.memory_space<vmem>>, vector<8x1xf32>
    %c0_9 = arith.constant 0 : index
    %c0_10 = arith.constant 0 : index
    %5 = vector.load %arg8[%c0_9, %c0_10] : memref<8x1xf32, #tpu.memory_space<vmem>>, vector<8x1xf32>
    %c0_i32 = arith.constant 0 : i32
    %6 = arith.cmpi eq, %arg0, %c0_i32 : i32
    %c0_11 = arith.constant 0 : index
    %c0_12 = arith.constant 0 : index
    %c0_13 = arith.constant 0 : index
    %7 = vector.load %arg1[%c0_11, %c0_12, %c0_13] : memref<2x8x1024xf32, #tpu.memory_space<vmem>>, vector<1x8x1024xf32>
    %8 = vector.shape_cast %7 : vector<1x8x1024xf32> to vector<8x1024xf32>
    %c0_14 = arith.constant 0 : index
    %c0_15 = arith.constant 0 : index
    %c0_16 = arith.constant 0 : index
    %c0_17 = arith.constant 0 : index
    %9 = vector.load %arg2[%c0_14, %c0_15, %c0_16, %c0_17] : memref<2x1x8x128xf32, #tpu.memory_space<vmem>>, vector<1x1x8x128xf32>
    %10 = vector.shape_cast %9 : vector<1x1x8x128xf32> to vector<8x128xf32>
    %cst = arith.constant dense<0.000000e+00> : vector<8x1024xf32>
    %11 = tpu.matmul %2, %8, %cst {dimension_numbers = #tpu.dot_dimension_numbers<[1], [0], [0], [1], [0, 0, 1, 1], [], []>} : vector<8x8xf32>, vector<8x1024xf32>, vector<8x1024xf32> -> vector<8x1024xf32>
    %12 = vector.broadcast %5 : vector<8x1xf32> to vector<8x1024xf32>
    %13 = arith.addf %11, %12 : vector<8x1024xf32>
    %14 = vector.extract_strided_slice %10 {offsets = [0, 120], sizes = [8, 8], strides = [1, 1]} : vector<8x128xf32> to vector<8x8xf32>
    %c0_18 = arith.constant 0 : index
    %c0_19 = arith.constant 0 : index
    %15 = vector.load %arg10[%c0_18, %c0_19] : memref<24x1028xf32, #tpu.memory_space<vmem>>, vector<8x8xf32>
    tpu.vector_store %arg10[%c0_18, %c0_19], %14 {strides = array<i32>} : memref<24x1028xf32, #tpu.memory_space<vmem>>, vector<8x8xf32>,
    %16 = vector.extract_strided_slice %8 {offsets = [0, 0], sizes = [8, 1020], strides = [1, 1]} : vector<8x1024xf32> to vector<8x1020xf32>
    %c0_20 = arith.constant 0 : index
    %c8 = arith.constant 8 : index
    %17 = vector.load %arg10[%c0_20, %c8] : memref<24x1028xf32, #tpu.memory_space<vmem>>, vector<8x1020xf32>
    tpu.vector_store %arg10[%c0_20, %c8], %16 {strides = array<i32>} : memref<24x1028xf32, #tpu.memory_space<vmem>>, vector<8x1020xf32>,
    %18 = vector.extract_strided_slice %10 {offsets = [0, 122], sizes = [8, 6], strides = [1, 1]} : vector<8x128xf32> to vector<8x6xf32>
    %c8_21 = arith.constant 8 : index
    %c0_22 = arith.constant 0 : index
    %19 = vector.load %arg10[%c8_21, %c0_22] : memref<24x1028xf32, #tpu.memory_space<vmem>>, vector<8x6xf32>
    tpu.vector_store %arg10[%c8_21, %c0_22], %18 {strides = array<i32>} : memref<24x1028xf32, #tpu.memory_space<vmem>>, vector<8x6xf32>,
    %20 = vector.extract_strided_slice %8 {offsets = [0, 0], sizes = [8, 1022], strides = [1, 1]} : vector<8x1024xf32> to vector<8x1022xf32>
    %c8_23 = arith.constant 8 : index
    %c6 = arith.constant 6 : index
    %21 = vector.load %arg10[%c8_23, %c6] : memref<24x1028xf32, #tpu.memory_space<vmem>>, vector<8x1022xf32>
    tpu.vector_store %arg10[%c8_23, %c6], %20 {strides = array<i32>} : memref<24x1028xf32, #tpu.memory_space<vmem>>, vector<8x1022xf32>,
    %22 = vector.extract_strided_slice %10 {offsets = [0, 124], sizes = [8, 4], strides = [1, 1]} : vector<8x128xf32> to vector<8x4xf32>
    %c16 = arith.constant 16 : index
    %c0_24 = arith.constant 0 : index
    %23 = vector.load %arg10[%c16, %c0_24] : memref<24x1028xf32, #tpu.memory_space<vmem>>, vector<8x4xf32>
    tpu.vector_store %arg10[%c16, %c0_24], %22 {strides = array<i32>} : memref<24x1028xf32, #tpu.memory_space<vmem>>, vector<8x4xf32>,
    %c16_25 = arith.constant 16 : index
    %c4 = arith.constant 4 : index
    %24 = vector.load %arg10[%c16_25, %c4] : memref<24x1028xf32, #tpu.memory_space<vmem>>, vector<8x1024xf32>
    tpu.vector_store %arg10[%c16_25, %c4], %8 {strides = array<i32>} : memref<24x1028xf32, #tpu.memory_space<vmem>>, vector<8x1024xf32>,
    %c0_26 = arith.constant 0 : index
    %c0_27 = arith.constant 0 : index
    %25 = vector.load %arg10[%c0_26, %c0_27] : memref<24x1028xf32, #tpu.memory_space<vmem>>, vector<24x1028xf32>
    %cst_28 = arith.constant dense<0.000000e+00> : vector<8x1028xf32>
    %26 = tpu.matmul %0, %25, %cst_28 {dimension_numbers = #tpu.dot_dimension_numbers<[1], [0], [0], [1], [0, 0, 1, 1], [], []>} : vector<8x24xf32>, vector<24x1028xf32>, vector<8x1028xf32> -> vector<8x1028xf32>
    %27 = vector.broadcast %3 : vector<8x1xf32> to vector<8x1028xf32>
    %28 = arith.addf %26, %27 : vector<8x1028xf32>
    %cst_29 = arith.constant 0.000000e+00 : f32
    %29 = vector.broadcast %cst_29 : f32 to vector<8x1028xf32>
    %30 = arith.maximumf %28, %29 : vector<8x1028xf32>
    %31 = vector.extract_strided_slice %30 {offsets = [0, 0], sizes = [8, 1024], strides = [1, 1]} : vector<8x1028xf32> to vector<8x1024xf32>
    %c0_30 = arith.constant 0 : index
    %c0_31 = arith.constant 0 : index
    %32 = vector.load %arg11[%c0_30, %c0_31] : memref<24x1024xf32, #tpu.memory_space<vmem>>, vector<8x1024xf32>
    tpu.vector_store %arg11[%c0_30, %c0_31], %31 {strides = array<i32>} : memref<24x1024xf32, #tpu.memory_space<vmem>>, vector<8x1024xf32>,
    %33 = vector.extract_strided_slice %30 {offsets = [0, 2], sizes = [8, 1024], strides = [1, 1]} : vector<8x1028xf32> to vector<8x1024xf32>
    %c8_32 = arith.constant 8 : index
    %c0_33 = arith.constant 0 : index
    %34 = vector.load %arg11[%c8_32, %c0_33] : memref<24x1024xf32, #tpu.memory_space<vmem>>, vector<8x1024xf32>
    tpu.vector_store %arg11[%c8_32, %c0_33], %33 {strides = array<i32>} : memref<24x1024xf32, #tpu.memory_space<vmem>>, vector<8x1024xf32>,
    %35 = vector.extract_strided_slice %30 {offsets = [0, 4], sizes = [8, 1024], strides = [1, 1]} : vector<8x1028xf32> to vector<8x1024xf32>
    %c16_34 = arith.constant 16 : index
    %c0_35 = arith.constant 0 : index
    %36 = vector.load %arg11[%c16_34, %c0_35] : memref<24x1024xf32, #tpu.memory_space<vmem>>, vector<8x1024xf32>
    tpu.vector_store %arg11[%c16_34, %c0_35], %35 {strides = array<i32>} : memref<24x1024xf32, #tpu.memory_space<vmem>>, vector<8x1024xf32>,
    %37 = arith.extui %6 : i1 to i32
    %c0_i32_36 = arith.constant 0 : i32
    %38 = arith.cmpi ne, %37, %c0_i32_36 : i32
    scf.if %38 {
      %cst_83 = arith.constant 0.000000e+00 : f32
      %95 = vector.broadcast %cst_83 : f32 to vector<8x4xf32>
      %c0_84 = arith.constant 0 : index
      %c0_85 = arith.constant 0 : index
      %96 = vector.load %arg11[%c0_84, %c0_85] : memref<24x1024xf32, #tpu.memory_space<vmem>>, vector<8x4xf32>
      tpu.vector_store %arg11[%c0_84, %c0_85], %95 {strides = array<i32>} : memref<24x1024xf32, #tpu.memory_space<vmem>>, vector<8x4xf32>,
      %cst_86 = arith.constant 0.000000e+00 : f32
      %97 = vector.broadcast %cst_86 : f32 to vector<8x2xf32>
      %c8_87 = arith.constant 8 : index
      %c0_88 = arith.constant 0 : index
      %98 = vector.load %arg11[%c8_87, %c0_88] : memref<24x1024xf32, #tpu.memory_space<vmem>>, vector<8x2xf32>
      tpu.vector_store %arg11[%c8_87, %c0_88], %97 {strides = array<i32>} : memref<24x1024xf32, #tpu.memory_space<vmem>>, vector<8x2xf32>,
    } else {
    }
    %c0_37 = arith.constant 0 : index
    %c0_38 = arith.constant 0 : index
    %39 = vector.load %arg11[%c0_37, %c0_38] : memref<24x1024xf32, #tpu.memory_space<vmem>>, vector<24x1024xf32>
    %cst_39 = arith.constant dense<0.000000e+00> : vector<8x1024xf32>
    %40 = tpu.matmul %1, %39, %cst_39 {dimension_numbers = #tpu.dot_dimension_numbers<[1], [0], [0], [1], [0, 0, 1, 1], [], []>} : vector<8x24xf32>, vector<24x1024xf32>, vector<8x1024xf32> -> vector<8x1024xf32>
    %41 = vector.broadcast %4 : vector<8x1xf32> to vector<8x1024xf32>
    %42 = arith.addf %40, %41 : vector<8x1024xf32>
    %cst_40 = arith.constant 0.000000e+00 : f32
    %43 = vector.broadcast %cst_40 : f32 to vector<8x1024xf32>
    %44 = arith.maximumf %42, %43 : vector<8x1024xf32>
    %45 = arith.addf %44, %13 : vector<8x1024xf32>
    %cst_41 = arith.constant 0.000000e+00 : f32
    %46 = vector.broadcast %cst_41 : f32 to vector<8x1024xf32>
    %47 = arith.maximumf %45, %46 : vector<8x1024xf32>
    %c0_42 = arith.constant 0 : index
    %c0_43 = arith.constant 0 : index
    %c0_44 = arith.constant 0 : index
    %48 = vector.load %arg9[%c0_42, %c0_43, %c0_44] : memref<2x8x1024xf32, #tpu.memory_space<vmem>>, vector<1x8x1024xf32>
    %49 = vector.shape_cast %48 : vector<1x8x1024xf32> to vector<8x1024xf32>
    %50 = vector.shape_cast %47 : vector<8x1024xf32> to vector<1x8x1024xf32>
    tpu.vector_store %arg9[%c0_42, %c0_43, %c0_44], %50 {strides = array<i32>} : memref<2x8x1024xf32, #tpu.memory_space<vmem>>, vector<1x8x1024xf32>,
    %c1 = arith.constant 1 : index
    %c0_45 = arith.constant 0 : index
    %c0_46 = arith.constant 0 : index
    %51 = vector.load %arg1[%c1, %c0_45, %c0_46] : memref<2x8x1024xf32, #tpu.memory_space<vmem>>, vector<1x8x1024xf32>
    %52 = vector.shape_cast %51 : vector<1x8x1024xf32> to vector<8x1024xf32>
    %c1_47 = arith.constant 1 : index
    %c0_48 = arith.constant 0 : index
    %c0_49 = arith.constant 0 : index
    %c0_50 = arith.constant 0 : index
    %53 = vector.load %arg2[%c1_47, %c0_48, %c0_49, %c0_50] : memref<2x1x8x128xf32, #tpu.memory_space<vmem>>, vector<1x1x8x128xf32>
    %54 = vector.shape_cast %53 : vector<1x1x8x128xf32> to vector<8x128xf32>
    %cst_51 = arith.constant dense<0.000000e+00> : vector<8x1024xf32>
    %55 = tpu.matmul %2, %52, %cst_51 {dimension_numbers = #tpu.dot_dimension_numbers<[1], [0], [0], [1], [0, 0, 1, 1], [], []>} : vector<8x8xf32>, vector<8x1024xf32>, vector<8x1024xf32> -> vector<8x1024xf32>
    %56 = vector.broadcast %5 : vector<8x1xf32> to vector<8x1024xf32>
    %57 = arith.addf %55, %56 : vector<8x1024xf32>
    %58 = vector.extract_strided_slice %54 {offsets = [0, 120], sizes = [8, 8], strides = [1, 1]} : vector<8x128xf32> to vector<8x8xf32>
    %c0_52 = arith.constant 0 : index
    %c0_53 = arith.constant 0 : index
    %59 = vector.load %arg10[%c0_52, %c0_53] : memref<24x1028xf32, #tpu.memory_space<vmem>>, vector<8x8xf32>
    tpu.vector_store %arg10[%c0_52, %c0_53], %58 {strides = array<i32>} : memref<24x1028xf32, #tpu.memory_space<vmem>>, vector<8x8xf32>,
    %60 = vector.extract_strided_slice %52 {offsets = [0, 0], sizes = [8, 1020], strides = [1, 1]} : vector<8x1024xf32> to vector<8x1020xf32>
    %c0_54 = arith.constant 0 : index
    %c8_55 = arith.constant 8 : index
    %61 = vector.load %arg10[%c0_54, %c8_55] : memref<24x1028xf32, #tpu.memory_space<vmem>>, vector<8x1020xf32>
    tpu.vector_store %arg10[%c0_54, %c8_55], %60 {strides = array<i32>} : memref<24x1028xf32, #tpu.memory_space<vmem>>, vector<8x1020xf32>,
    %62 = vector.extract_strided_slice %54 {offsets = [0, 122], sizes = [8, 6], strides = [1, 1]} : vector<8x128xf32> to vector<8x6xf32>
    %c8_56 = arith.constant 8 : index
    %c0_57 = arith.constant 0 : index
    %63 = vector.load %arg10[%c8_56, %c0_57] : memref<24x1028xf32, #tpu.memory_space<vmem>>, vector<8x6xf32>
    tpu.vector_store %arg10[%c8_56, %c0_57], %62 {strides = array<i32>} : memref<24x1028xf32, #tpu.memory_space<vmem>>, vector<8x6xf32>,
    %64 = vector.extract_strided_slice %52 {offsets = [0, 0], sizes = [8, 1022], strides = [1, 1]} : vector<8x1024xf32> to vector<8x1022xf32>
    %c8_58 = arith.constant 8 : index
    %c6_59 = arith.constant 6 : index
    %65 = vector.load %arg10[%c8_58, %c6_59] : memref<24x1028xf32, #tpu.memory_space<vmem>>, vector<8x1022xf32>
    tpu.vector_store %arg10[%c8_58, %c6_59], %64 {strides = array<i32>} : memref<24x1028xf32, #tpu.memory_space<vmem>>, vector<8x1022xf32>,
    %66 = vector.extract_strided_slice %54 {offsets = [0, 124], sizes = [8, 4], strides = [1, 1]} : vector<8x128xf32> to vector<8x4xf32>
    %c16_60 = arith.constant 16 : index
    %c0_61 = arith.constant 0 : index
    %67 = vector.load %arg10[%c16_60, %c0_61] : memref<24x1028xf32, #tpu.memory_space<vmem>>, vector<8x4xf32>
    tpu.vector_store %arg10[%c16_60, %c0_61], %66 {strides = array<i32>} : memref<24x1028xf32, #tpu.memory_space<vmem>>, vector<8x4xf32>,
    %c16_62 = arith.constant 16 : index
    %c4_63 = arith.constant 4 : index
    %68 = vector.load %arg10[%c16_62, %c4_63] : memref<24x1028xf32, #tpu.memory_space<vmem>>, vector<8x1024xf32>
    tpu.vector_store %arg10[%c16_62, %c4_63], %52 {strides = array<i32>} : memref<24x1028xf32, #tpu.memory_space<vmem>>, vector<8x1024xf32>,
    %c0_64 = arith.constant 0 : index
    %c0_65 = arith.constant 0 : index
    %69 = vector.load %arg10[%c0_64, %c0_65] : memref<24x1028xf32, #tpu.memory_space<vmem>>, vector<24x1028xf32>
    %cst_66 = arith.constant dense<0.000000e+00> : vector<8x1028xf32>
    %70 = tpu.matmul %0, %69, %cst_66 {dimension_numbers = #tpu.dot_dimension_numbers<[1], [0], [0], [1], [0, 0, 1, 1], [], []>} : vector<8x24xf32>, vector<24x1028xf32>, vector<8x1028xf32> -> vector<8x1028xf32>
    %71 = vector.broadcast %3 : vector<8x1xf32> to vector<8x1028xf32>
    %72 = arith.addf %70, %71 : vector<8x1028xf32>
    %cst_67 = arith.constant 0.000000e+00 : f32
    %73 = vector.broadcast %cst_67 : f32 to vector<8x1028xf32>
    %74 = arith.maximumf %72, %73 : vector<8x1028xf32>
    %75 = vector.extract_strided_slice %74 {offsets = [0, 0], sizes = [8, 1024], strides = [1, 1]} : vector<8x1028xf32> to vector<8x1024xf32>
    %c0_68 = arith.constant 0 : index
    %c0_69 = arith.constant 0 : index
    %76 = vector.load %arg11[%c0_68, %c0_69] : memref<24x1024xf32, #tpu.memory_space<vmem>>, vector<8x1024xf32>
    tpu.vector_store %arg11[%c0_68, %c0_69], %75 {strides = array<i32>} : memref<24x1024xf32, #tpu.memory_space<vmem>>, vector<8x1024xf32>,
    %77 = vector.extract_strided_slice %74 {offsets = [0, 2], sizes = [8, 1024], strides = [1, 1]} : vector<8x1028xf32> to vector<8x1024xf32>
    %c8_70 = arith.constant 8 : index
    %c0_71 = arith.constant 0 : index
    %78 = vector.load %arg11[%c8_70, %c0_71] : memref<24x1024xf32, #tpu.memory_space<vmem>>, vector<8x1024xf32>
    tpu.vector_store %arg11[%c8_70, %c0_71], %77 {strides = array<i32>} : memref<24x1024xf32, #tpu.memory_space<vmem>>, vector<8x1024xf32>,
    %79 = vector.extract_strided_slice %74 {offsets = [0, 4], sizes = [8, 1024], strides = [1, 1]} : vector<8x1028xf32> to vector<8x1024xf32>
    %c16_72 = arith.constant 16 : index
    %c0_73 = arith.constant 0 : index
    %80 = vector.load %arg11[%c16_72, %c0_73] : memref<24x1024xf32, #tpu.memory_space<vmem>>, vector<8x1024xf32>
    tpu.vector_store %arg11[%c16_72, %c0_73], %79 {strides = array<i32>} : memref<24x1024xf32, #tpu.memory_space<vmem>>, vector<8x1024xf32>,
    %81 = arith.extui %6 : i1 to i32
    %c0_i32_74 = arith.constant 0 : i32
    %82 = arith.cmpi ne, %81, %c0_i32_74 : i32
    scf.if %82 {
      %cst_83 = arith.constant 0.000000e+00 : f32
      %95 = vector.broadcast %cst_83 : f32 to vector<8x4xf32>
      %c0_84 = arith.constant 0 : index
      %c0_85 = arith.constant 0 : index
      %96 = vector.load %arg11[%c0_84, %c0_85] : memref<24x1024xf32, #tpu.memory_space<vmem>>, vector<8x4xf32>
      tpu.vector_store %arg11[%c0_84, %c0_85], %95 {strides = array<i32>} : memref<24x1024xf32, #tpu.memory_space<vmem>>, vector<8x4xf32>,
      %cst_86 = arith.constant 0.000000e+00 : f32
      %97 = vector.broadcast %cst_86 : f32 to vector<8x2xf32>
      %c8_87 = arith.constant 8 : index
      %c0_88 = arith.constant 0 : index
      %98 = vector.load %arg11[%c8_87, %c0_88] : memref<24x1024xf32, #tpu.memory_space<vmem>>, vector<8x2xf32>
      tpu.vector_store %arg11[%c8_87, %c0_88], %97 {strides = array<i32>} : memref<24x1024xf32, #tpu.memory_space<vmem>>, vector<8x2xf32>,
    } else {
    }
    %c0_75 = arith.constant 0 : index
    %c0_76 = arith.constant 0 : index
    %83 = vector.load %arg11[%c0_75, %c0_76] : memref<24x1024xf32, #tpu.memory_space<vmem>>, vector<24x1024xf32>
    %cst_77 = arith.constant dense<0.000000e+00> : vector<8x1024xf32>
    %84 = tpu.matmul %1, %83, %cst_77 {dimension_numbers = #tpu.dot_dimension_numbers<[1], [0], [0], [1], [0, 0, 1, 1], [], []>} : vector<8x24xf32>, vector<24x1024xf32>, vector<8x1024xf32> -> vector<8x1024xf32>
    %85 = vector.broadcast %4 : vector<8x1xf32> to vector<8x1024xf32>
    %86 = arith.addf %84, %85 : vector<8x1024xf32>
    %cst_78 = arith.constant 0.000000e+00 : f32
    %87 = vector.broadcast %cst_78 : f32 to vector<8x1024xf32>
    %88 = arith.maximumf %86, %87 : vector<8x1024xf32>
    %89 = arith.addf %88, %57 : vector<8x1024xf32>
    %cst_79 = arith.constant 0.000000e+00 : f32
    %90 = vector.broadcast %cst_79 : f32 to vector<8x1024xf32>
    %91 = arith.maximumf %89, %90 : vector<8x1024xf32>
    %c1_80 = arith.constant 1 : index
    %c0_81 = arith.constant 0 : index
    %c0_82 = arith.constant 0 : index
    %92 = vector.load %arg9[%c1_80, %c0_81, %c0_82] : memref<2x8x1024xf32, #tpu.memory_space<vmem>>, vector<1x8x1024xf32>
    %93 = vector.shape_cast %92 : vector<1x8x1024xf32> to vector<8x1024xf32>
    %94 = vector.shape_cast %91 : vector<8x1024xf32> to vector<1x8x1024xf32>
    tpu.vector_store %arg9[%c1_80, %c0_81, %c0_82], %94 {strides = array<i32>} : memref<2x8x1024xf32, #tpu.memory_space<vmem>>, vector<1x8x1024xf32>,
    return
  }
  func.func @transform_0(%arg0: i32) -> (i32, i32, i32) {
    %c0_i32 = arith.constant 0 : i32
    %c0_i32_0 = arith.constant 0 : i32
    %c0_i32_1 = arith.constant 0 : i32
    return %c0_i32, %c0_i32_0, %arg0 : i32, i32, i32
  }
  func.func @transform_1(%arg0: i32) -> (i32, i32, i32, i32) {
    %c0_i32 = arith.constant 0 : i32
    %c0_i32_0 = arith.constant 0 : i32
    %c0_i32_1 = arith.constant 0 : i32
    %c0_i32_2 = arith.constant 0 : i32
    return %c0_i32, %arg0, %c0_i32_0, %c0_i32_1 : i32, i32, i32, i32
  }
  func.func @transform_2(%arg0: i32) -> (i32, i32) {
    %c0_i32 = arith.constant 0 : i32
    %c0_i32_0 = arith.constant 0 : i32
    %c0_i32_1 = arith.constant 0 : i32
    return %c0_i32, %c0_i32_0 : i32, i32
  }
  func.func @transform_3(%arg0: i32) -> (i32, i32) {
    %c0_i32 = arith.constant 0 : i32
    %c0_i32_0 = arith.constant 0 : i32
    %c0_i32_1 = arith.constant 0 : i32
    return %c0_i32, %c0_i32_0 : i32, i32
  }
  func.func @transform_4(%arg0: i32) -> (i32, i32) {
    %c0_i32 = arith.constant 0 : i32
    %c0_i32_0 = arith.constant 0 : i32
    %c0_i32_1 = arith.constant 0 : i32
    return %c0_i32, %c0_i32_0 : i32, i32
  }
  func.func @transform_5(%arg0: i32) -> (i32, i32) {
    %c0_i32 = arith.constant 0 : i32
    %c0_i32_0 = arith.constant 0 : i32
    %c0_i32_1 = arith.constant 0 : i32
    return %c0_i32, %c0_i32_0 : i32, i32
  }
  func.func @transform_6(%arg0: i32) -> (i32, i32) {
    %c0_i32 = arith.constant 0 : i32
    %c0_i32_0 = arith.constant 0 : i32
    %c0_i32_1 = arith.constant 0 : i32
    return %c0_i32, %c0_i32_0 : i32, i32
  }
  func.func @transform_7(%arg0: i32) -> (i32, i32) {
    %c0_i32 = arith.constant 0 : i32
    %c0_i32_0 = arith.constant 0 : i32
    %c0_i32_1 = arith.constant 0 : i32
    return %c0_i32, %c0_i32_0 : i32, i32
  }
  func.func @transform_8(%arg0: i32) -> (i32, i32, i32) {
    %c0_i32 = arith.constant 0 : i32
    %c0_i32_0 = arith.constant 0 : i32
    %c0_i32_1 = arith.constant 0 : i32
    return %c0_i32, %c0_i32_0, %arg0 : i32, i32, i32
  }
}

</mosaic_0001>

<llo_original>
// kernel: tpu_custom_call.1
$region0: #{tpu_custom_call.1}
  #allocation0 [shape = 'u32[]', space=smem, size = 0x4, offset = 0x4, fixed_abs, tag = 'smem constant byte address 0x4 - core index']
  #allocation1 [shape = 'u32[144,128]{1,0:T(1,128)}', space=vmem, size = 0x12000, scoped, tag = 'internal scratch']
  #allocation2 [shape = 'f32[24,1028]{1,0:T(8,128)}', space=vmem, size = 0x1b000, scoped, tag = 'scratch operand']
  #allocation3 [shape = 'f32[24,1024]{1,0:T(8,128)}', space=vmem, size = 0x18000, scoped, tag = 'scratch operand']
  %s0 = inlined_call_operand.hbm [shape: f32[2,8,2048], index: 0, kind: input, shape index: {}]
  %s1 = inlined_call_operand.hbm [shape: f32[2,2,8,128], index: 1, kind: input, shape index: {}]
  %s2 = inlined_call_operand.vmem [shape: f32[8,24], index: 2, kind: input, shape index: {}]
  %s3 = inlined_call_operand.vmem [shape: f32[8,1], index: 3, kind: input, shape index: {}]
  %s4 = inlined_call_operand.vmem [shape: f32[8,24], index: 4, kind: input, shape index: {}]
  %s5 = inlined_call_operand.vmem [shape: f32[8,1], index: 5, kind: input, shape index: {}]
  %s6 = inlined_call_operand.vmem [shape: f32[8,8], index: 6, kind: input, shape index: {}]
  %s7 = inlined_call_operand.vmem [shape: f32[8,1], index: 7, kind: input, shape index: {}]
  %s8 = inlined_call_operand.hbm [shape: f32[2,8,2048], index: 8, kind: output, shape index: {}]
  %s9 = sld [smem:[#allocation0]]
  $region81: #{tpu_custom_call.1} parent=0
    _
  %s11 = ssub.s32 1, %s9
  %s12 = scalar_select 0, %s11, %s9
  $region1: #{tpu_custom_call.1} parent=0
    #allocation4 [shape = 'u8[131072]{0}', space=vmem, size = 0x20000, scoped, tag = 'input window, operand 0']
    #allocation5 [shape = 's32[2]{0}', space=sflag, size = 0x8, scoped, tag = 'scoped memory for tpu_custom_call.1']
    #allocation6 [shape = 's32[2]{0}', space=sflag, size = 0x8, scoped, tag = 'scoped memory for tpu_custom_call.1']
    #allocation7 [shape = 'u8[16384]{0}', space=vmem, size = 0x4000, scoped, tag = 'input window, operand 1']
    #allocation8 [shape = 's32[2]{0}', space=sflag, size = 0x8, scoped, tag = 'scoped memory for tpu_custom_call.1']
    #allocation9 [shape = 'u8[131072]{0}', space=vmem, size = 0x20000, scoped, tag = 'output window, operand 0']
    %13 = vsyncpa [#allocation5], 0
    %s14 = scalar_lea.sflag [#allocation5], 1
    %15 = vsyncpa %s14, 0
    %16 = vsyncpa [#allocation8], 0
    %s17 = scalar_lea.sflag [#allocation8], 1
    %18 = vsyncpa %s17, 0
    %19 = vsyncpa [#allocation6], 0
    %s20 = scalar_lea.sflag [#allocation6], 1
    %21 = vsyncpa %s20, 0
    loop: start=0, step=1, limit=4
    $region2: #{tpu_custom_call.1} parent=1 // loop_pre_header
      _
    $region3: #{tpu_custom_call.1} parent=1 // loop_header
      %s23 = sphi 0, %s27
      %p24 = scmp.ge.s32.totalorder %s23, 4
      %s33 = sphi 0, %s35
      %s36 = sphi 0, %s33
      %s37 = sphi 0, %s36
      %s53 = sphi 0, %s37
      %s59 = sphi 0, %s61
      %s62 = sphi 0, %s59
      %s63 = sphi 0, %s62
      %s79 = sphi 0, %s63
      %s83 = sphi 0, %s83
      %s85 = sphi 0, %s83
      %s86 = sphi 0, %s85
      %s100 = sphi 0, %s86
      %s104 = sphi 0, %s104
      %s106 = sphi 0, %s104
      %s107 = sphi 0, %s106
      %s121 = sphi 0, %s107
      %s125 = sphi 0, %s125
      %s127 = sphi 0, %s125
      %s128 = sphi 0, %s127
      %s142 = sphi 0, %s128
      %s146 = sphi 0, %s146
      %s148 = sphi 0, %s146
      %s149 = sphi 0, %s148
      %s163 = sphi 0, %s149
      %s167 = sphi 0, %s167
      %s169 = sphi 0, %s167
      %s170 = sphi 0, %s169
      %s184 = sphi 0, %s170
      %s188 = sphi 0, %s188
      %s190 = sphi 0, %s188
      %s191 = sphi 0, %s190
      %s205 = sphi 0, %s191
      %s211 = sphi 0, %s213
      %s214 = sphi 0, %s211
      %s215 = sphi 0, %s214
      %s231 = sphi 0, %s215
    $region4: #{tpu_custom_call.1} parent=1 // loop_header_branch
      %26 = sbr.rel (%p24) target = $region8
    $region5: #{tpu_custom_call.1} parent=1 // loop_body
      %s28 = ssub.s32 %s23, 1
      %s29 = ssub.s32 %s23, 2
      %s30 = sadd.s32 %s23, 1
      %s31 = ssub.s32 %s23, %s30
      %p32 = scmp.eq.s32.totalorder %s31, 0
      %s34 = sadd.s32 %s33, 1
      %s35 = scalar_select %p32, %s33, %s34
      %p38 = pneg %p32
      %p39 = scmp.eq.s32.totalorder %s23, 1
      %p40 = por %p38, %p39
      %p41 = scmp.ne.s32.totalorder %s33, %s36
      %p42 = scmp.eq.s32.totalorder %s23, 0
      %p43 = por %p41, %p42
      %p44 = scmp.ne.s32.totalorder %s33, %s36
      %p45 = scmp.eq.s32.totalorder %s28, 1
      %p46 = por %p44, %p45
      %p47 = scmp.ne.s32.totalorder %s36, %s37
      %p48 = scmp.eq.s32.totalorder %s28, 0
      %p49 = por %p47, %p48
      %p50 = scmp.ne.s32.totalorder %s36, %s37
      %p51 = scmp.eq.s32.totalorder %s29, 1
      %p52 = por %p50, %p51
      %p54 = scmp.ne.s32.totalorder %s37, %s53
      %p55 = scmp.eq.s32.totalorder %s29, 0
      %p56 = por %p54, %p55
      %s57 = ssub.s32 %s23, %s30
      %p58 = scmp.eq.s32.totalorder %s57, 0
      %s60 = sadd.s32 %s59, 1
      %s61 = scalar_select %p58, %s59, %s60
      %p64 = pneg %p58
      %p65 = scmp.eq.s32.totalorder %s23, 1
      %p66 = por %p64, %p65
      %p67 = scmp.ne.s32.totalorder %s59, %s62
      %p68 = scmp.eq.s32.totalorder %s23, 0
      %p69 = por %p67, %p68
      %p70 = scmp.ne.s32.totalorder %s59, %s62
      %p71 = scmp.eq.s32.totalorder %s28, 1
      %p72 = por %p70, %p71
      %p73 = scmp.ne.s32.totalorder %s62, %s63
      %p74 = scmp.eq.s32.totalorder %s28, 0
      %p75 = por %p73, %p74
      %p76 = scmp.ne.s32.totalorder %s62, %s63
      %p77 = scmp.eq.s32.totalorder %s29, 1
      %p78 = por %p76, %p77
      %p80 = scmp.ne.s32.totalorder %s63, %s79
      %p81 = scmp.eq.s32.totalorder %s29, 0
      %p82 = por %p80, %p81
      %s84 = sadd.s32 %s83, 1
      %p87 = scmp.eq.s32.totalorder %s23, 1
      %p88 = scmp.ne.s32.totalorder %s83, %s85
      %p89 = scmp.eq.s32.totalorder %s23, 0
      %p90 = por %p88, %p89
      %p91 = scmp.ne.s32.totalorder %s83, %s85
      %p92 = scmp.eq.s32.totalorder %s28, 1
      %p93 = por %p91, %p92
      %p94 = scmp.ne.s32.totalorder %s85, %s86
      %p95 = scmp.eq.s32.totalorder %s28, 0
      %p96 = por %p94, %p95
      %p97 = scmp.ne.s32.totalorder %s85, %s86
      %p98 = scmp.eq.s32.totalorder %s29, 1
      %p99 = por %p97, %p98
      %p101 = scmp.ne.s32.totalorder %s86, %s100
      %p102 = scmp.eq.s32.totalorder %s29, 0
      %p103 = por %p101, %p102
      %s105 = sadd.s32 %s104, 1
      %p108 = scmp.eq.s32.totalorder %s23, 1
      %p109 = scmp.ne.s32.totalorder %s104, %s106
      %p110 = scmp.eq.s32.totalorder %s23, 0
      %p111 = por %p109, %p110
      %p112 = scmp.ne.s32.totalorder %s104, %s106
      %p113 = scmp.eq.s32.totalorder %s28, 1
      %p114 = por %p112, %p113
      %p115 = scmp.ne.s32.totalorder %s106, %s107
      %p116 = scmp.eq.s32.totalorder %s28, 0
      %p117 = por %p115, %p116
      %p118 = scmp.ne.s32.totalorder %s106, %s107
      %p119 = scmp.eq.s32.totalorder %s29, 1
      %p120 = por %p118, %p119
      %p122 = scmp.ne.s32.totalorder %s107, %s121
      %p123 = scmp.eq.s32.totalorder %s29, 0
      %p124 = por %p122, %p123
      %s126 = sadd.s32 %s125, 1
      %p129 = scmp.eq.s32.totalorder %s23, 1
      %p130 = scmp.ne.s32.totalorder %s125, %s127
      %p131 = scmp.eq.s32.totalorder %s23, 0
      %p132 = por %p130, %p131
      %p133 = scmp.ne.s32.totalorder %s125, %s127
      %p134 = scmp.eq.s32.totalorder %s28, 1
      %p135 = por %p133, %p134
      %p136 = scmp.ne.s32.totalorder %s127, %s128
      %p137 = scmp.eq.s32.totalorder %s28, 0
      %p138 = por %p136, %p137
      %p139 = scmp.ne.s32.totalorder %s127, %s128
      %p140 = scmp.eq.s32.totalorder %s29, 1
      %p141 = por %p139, %p140
      %p143 = scmp.ne.s32.totalorder %s128, %s142
      %p144 = scmp.eq.s32.totalorder %s29, 0
      %p145 = por %p143, %p144
      %s147 = sadd.s32 %s146, 1
      %p150 = scmp.eq.s32.totalorder %s23, 1
      %p151 = scmp.ne.s32.totalorder %s146, %s148
      %p152 = scmp.eq.s32.totalorder %s23, 0
      %p153 = por %p151, %p152
      %p154 = scmp.ne.s32.totalorder %s146, %s148
      %p155 = scmp.eq.s32.totalorder %s28, 1
      %p156 = por %p154, %p155
      %p157 = scmp.ne.s32.totalorder %s148, %s149
      %p158 = scmp.eq.s32.totalorder %s28, 0
      %p159 = por %p157, %p158
      %p160 = scmp.ne.s32.totalorder %s148, %s149
      %p161 = scmp.eq.s32.totalorder %s29, 1
      %p162 = por %p160, %p161
      %p164 = scmp.ne.s32.totalorder %s149, %s163
      %p165 = scmp.eq.s32.totalorder %s29, 0
      %p166 = por %p164, %p165
      %s168 = sadd.s32 %s167, 1
      %p171 = scmp.eq.s32.totalorder %s23, 1
      %p172 = scmp.ne.s32.totalorder %s167, %s169
      %p173 = scmp.eq.s32.totalorder %s23, 0
      %p174 = por %p172, %p173
      %p175 = scmp.ne.s32.totalorder %s167, %s169
      %p176 = scmp.eq.s32.totalorder %s28, 1
      %p177 = por %p175, %p176
      %p178 = scmp.ne.s32.totalorder %s169, %s170
      %p179 = scmp.eq.s32.totalorder %s28, 0
      %p180 = por %p178, %p179
      %p181 = scmp.ne.s32.totalorder %s169, %s170
      %p182 = scmp.eq.s32.totalorder %s29, 1
      %p183 = por %p181, %p182
      %p185 = scmp.ne.s32.totalorder %s170, %s184
      %p186 = scmp.eq.s32.totalorder %s29, 0
      %p187 = por %p185, %p186
      %s189 = sadd.s32 %s188, 1
      %p192 = scmp.eq.s32.totalorder %s23, 1
      %p193 = scmp.ne.s32.totalorder %s188, %s190
      %p194 = scmp.eq.s32.totalorder %s23, 0
      %p195 = por %p193, %p194
      %p196 = scmp.ne.s32.totalorder %s188, %s190
      %p197 = scmp.eq.s32.totalorder %s28, 1
      %p198 = por %p196, %p197
      %p199 = scmp.ne.s32.totalorder %s190, %s191
      %p200 = scmp.eq.s32.totalorder %s28, 0
      %p201 = por %p199, %p200
      %p202 = scmp.ne.s32.totalorder %s190, %s191
      %p203 = scmp.eq.s32.totalorder %s29, 1
      %p204 = por %p202, %p203
      %p206 = scmp.ne.s32.totalorder %s191, %s205
      %p207 = scmp.eq.s32.totalorder %s29, 0
      %p208 = por %p206, %p207
      %s209 = ssub.s32 %s23, %s30
      %p210 = scmp.eq.s32.totalorder %s209, 0
      %s212 = sadd.s32 %s211, 1
      %s213 = scalar_select %p210, %s211, %s212
      %p216 = pneg %p210
      %p217 = scmp.eq.s32.totalorder %s23, 1
      %p218 = por %p216, %p217
      %p219 = scmp.ne.s32.totalorder %s211, %s214
      %p220 = scmp.eq.s32.totalorder %s23, 0
      %p221 = por %p219, %p220
      %p222 = scmp.ne.s32.totalorder %s211, %s214
      %p223 = scmp.eq.s32.totalorder %s28, 1
      %p224 = por %p222, %p223
      %p225 = scmp.ne.s32.totalorder %s214, %s215
      %p226 = scmp.eq.s32.totalorder %s28, 0
      %p227 = por %p225, %p226
      %p228 = scmp.ne.s32.totalorder %s214, %s215
      %p229 = scmp.eq.s32.totalorder %s29, 1
      %p230 = por %p228, %p229
      %p232 = scmp.ne.s32.totalorder %s215, %s231
      %p233 = scmp.eq.s32.totalorder %s29, 0
      %p234 = por %p232, %p233
      %p235 = scmp.le.s32.totalorder 1, %s23
      %p236 = scmp.lt.s32.totalorder %s23, 3
      %p237 = pnand %p235, %p236
      %p238 = pneg %p237
      // Predicated region
      $region9: #{tpu_custom_call.1} parent=5 // pred_check
        _
      $region10: #{tpu_custom_call.1} parent=5 // pred_check_branch
        %240 = sbr.rel (%p237) target = $region12
      $region11: #{tpu_custom_call.1} parent=5 // pred_region
        %s241 = ssub.s32 %s23, 1
        // Predicated region
        $region13: #{tpu_custom_call.1} parent=11 // pred_check
          %p242 = pneg %p96
        $region14: #{tpu_custom_call.1} parent=11 // pred_check_branch
          %244 = sbr.rel (%p242) target = $region16
        $region15: #{tpu_custom_call.1} parent=11 // pred_region
          _
        $region16: #{tpu_custom_call.1} parent=11 // pred_fallthru
          _
        // Predicated region
        $region17: #{tpu_custom_call.1} parent=11 // pred_check
          %p245 = pneg %p117
        $region18: #{tpu_custom_call.1} parent=11 // pred_check_branch
          %247 = sbr.rel (%p245) target = $region20
        $region19: #{tpu_custom_call.1} parent=11 // pred_region
          _
        $region20: #{tpu_custom_call.1} parent=11 // pred_fallthru
          _
        // Predicated region
        $region21: #{tpu_custom_call.1} parent=11 // pred_check
          %p248 = pneg %p138
        $region22: #{tpu_custom_call.1} parent=11 // pred_check_branch
          %250 = sbr.rel (%p248) target = $region24
        $region23: #{tpu_custom_call.1} parent=11 // pred_region
          _
        $region24: #{tpu_custom_call.1} parent=11 // pred_fallthru
          _
        // Predicated region
        $region25: #{tpu_custom_call.1} parent=11 // pred_check
          %p251 = pneg %p159
        $region26: #{tpu_custom_call.1} parent=11 // pred_check_branch
          %253 = sbr.rel (%p251) target = $region28
        $region27: #{tpu_custom_call.1} parent=11 // pred_region
          _
        $region28: #{tpu_custom_call.1} parent=11 // pred_fallthru
          _
        // Predicated region
        $region29: #{tpu_custom_call.1} parent=11 // pred_check
          %p254 = pneg %p180
        $region30: #{tpu_custom_call.1} parent=11 // pred_check_branch
          %256 = sbr.rel (%p254) target = $region32
        $region31: #{tpu_custom_call.1} parent=11 // pred_region
          _
        $region32: #{tpu_custom_call.1} parent=11 // pred_fallthru
          _
        // Predicated region
        $region33: #{tpu_custom_call.1} parent=11 // pred_check
          %p257 = pneg %p201
        $region34: #{tpu_custom_call.1} parent=11 // pred_check_branch
          %259 = sbr.rel (%p257) target = $region36
        $region35: #{tpu_custom_call.1} parent=11 // pred_region
          _
        $region36: #{tpu_custom_call.1} parent=11 // pred_fallthru
          _
      $region12: #{tpu_custom_call.1} parent=5 // pred_fallthru
        _
      %p260 = scmp.lt.s32.totalorder %s23, 2
      // Predicated region
      $region37: #{tpu_custom_call.1} parent=5 // pred_check
        %p261 = pneg %p260
      $region38: #{tpu_custom_call.1} parent=5 // pred_check_branch
        %263 = sbr.rel (%p261) target = $region40
      $region39: #{tpu_custom_call.1} parent=5 // pred_region
        // Predicated region
        $region41: #{tpu_custom_call.1} parent=39 // pred_check
          %p264 = pneg %p43
        $region42: #{tpu_custom_call.1} parent=39 // pred_check_branch
          %266 = sbr.rel (%p264) target = $region44
        $region43: #{tpu_custom_call.1} parent=39 // pred_region
          %s267 = sand.u32 %s33, 1
          %s268 = scalar_lea.sflag [#allocation5], %s267
          %s269 = sand.u32 %s33, 1
          %s270 = smul.addr %s269, 128
          %s271 = scalar_lea.vmem [#allocation4], %s270
          %s272 = smul.u32 8, %s23
          %s274 = ssub.s32 2048, 2048
          %275 = vsyncadd %s268, %s274
          %s276 = smul.addr %s272, 128
          %s277 = scalar_lea.hbm %s0, %s276
          %s278 = sshll.u32 %s271, 4
          %s279 = int_to_ptr.vmem [resolvable:$true] %s278
          %284 = dma.hbm_to_vmem [thread:$0]  %s277, 2048, %s279, %s268, 2048, 1024, 64
        $region44: #{tpu_custom_call.1} parent=39 // pred_fallthru
          _
        // Predicated region
        $region45: #{tpu_custom_call.1} parent=39 // pred_check
          %p285 = pneg %p69
        $region46: #{tpu_custom_call.1} parent=39 // pred_check_branch
          %287 = sbr.rel (%p285) target = $region48
        $region47: #{tpu_custom_call.1} parent=39 // pred_region
          %s288 = sand.u32 %s59, 1
          %s289 = scalar_lea.sflag [#allocation8], %s288
          %s290 = sand.u32 %s59, 1
          %s291 = smul.addr %s290, 16
          %s292 = scalar_lea.vmem [#allocation7], %s291
          %s294 = ssub.s32 256, 256
          %295 = vsyncadd %s289, %s294
          %s296 = smul.addr %s23, 128
          %s297 = scalar_lea.hbm %s1, %s296
          %s298 = sshll.u32 %s292, 4
          %s299 = int_to_ptr.vmem [resolvable:$true] %s298
          %304 = dma.hbm_to_vmem [thread:$0]  %s297, 256, %s299, %s289, 256, 128, 8
        $region48: #{tpu_custom_call.1} parent=39 // pred_fallthru
          _
      $region40: #{tpu_custom_call.1} parent=5 // pred_fallthru
        _
      %p305 = scmp.le.s32.totalorder 1, %s23
      %p306 = scmp.lt.s32.totalorder %s23, 3
      %p307 = pnand %p305, %p306
      %p308 = pneg %p307
      // Predicated region
      $region49: #{tpu_custom_call.1} parent=5 // pred_check
        _
      $region50: #{tpu_custom_call.1} parent=5 // pred_check_branch
        %310 = sbr.rel (%p307) target = $region52
      $region51: #{tpu_custom_call.1} parent=5 // pred_region
        %s311 = ssub.s32 %s23, 1
        %s312 = sand.u32 %s36, 1
        %s313 = scalar_lea.sflag [#allocation5], %s312
        %s314 = sand.u32 %s36, 1
        %s315 = smul.addr %s314, 128
        %s316 = scalar_lea.vmem [#allocation4], %s315
        // Predicated region
        $region53: #{tpu_custom_call.1} parent=51 // pred_check
          %p317 = pneg %p49
        $region54: #{tpu_custom_call.1} parent=51 // pred_check_branch
          %319 = sbr.rel (%p317) target = $region56
        $region55: #{tpu_custom_call.1} parent=51 // pred_region
          %320 = dma.done %s313, 2048
        $region56: #{tpu_custom_call.1} parent=51 // pred_fallthru
          _
        %s321 = sand.u32 %s62, 1
        %s322 = scalar_lea.sflag [#allocation8], %s321
        %s323 = sand.u32 %s62, 1
        %s324 = smul.addr %s323, 16
        %s325 = scalar_lea.vmem [#allocation7], %s324
        // Predicated region
        $region57: #{tpu_custom_call.1} parent=51 // pred_check
          %p326 = pneg %p75
        $region58: #{tpu_custom_call.1} parent=51 // pred_check_branch
          %328 = sbr.rel (%p326) target = $region60
        $region59: #{tpu_custom_call.1} parent=51 // pred_region
          %329 = dma.done %s322, 256
        $region60: #{tpu_custom_call.1} parent=51 // pred_fallthru
          _
        %s330 = sand.u32 %s36, 1
        %s331 = scalar_lea.sflag [#allocation5], %s330
        %s332 = sand.u32 %s36, 1
        %s333 = smul.addr %s332, 128
        %s334 = scalar_lea.vmem [#allocation4], %s333
        %p335 = pneg %p49
        %p336 = pneg %p46
        %s337 = sand.u32 %s62, 1
        %s338 = scalar_lea.sflag [#allocation8], %s337
        %s339 = sand.u32 %s62, 1
        %s340 = smul.addr %s339, 16
        %s341 = scalar_lea.vmem [#allocation7], %s340
        %p342 = pneg %p75
        %p343 = pneg %p72
        %p344 = pneg %p96
        %p345 = pneg %p93
        %p346 = pneg %p117
        %p347 = pneg %p114
        %p348 = pneg %p138
        %p349 = pneg %p135
        %p350 = pneg %p159
        %p351 = pneg %p156
        %p352 = pneg %p180
        %p353 = pneg %p177
        %p354 = pneg %p201
        %p355 = pneg %p198
        %p356 = pneg %p227
        %p357 = pneg %p224
        %s358 = sand.u32 %s214, 1
        %s359 = scalar_lea.sflag [#allocation6], %s358
        %s360 = sand.u32 %s214, 1
        %s361 = smul.addr %s360, 128
        %s362 = scalar_lea.vmem [#allocation9], %s361
        %s363 = smul.u32 8, %s28
        %s364 = smul.u32 8, %s28
        %v365 = vld [vmem:[%s2] sm:$0xff]
        %v366 = vld [vmem:[%s4] sm:$0xff]
        %v367 = vld [vmem:[%s6] sm:$0xff]
        %v368 = vld [vmem:[%s3] sm:$0xff]
        %v369 = vld [vmem:[%s5] sm:$0xff]
        %v370 = vld [vmem:[%s7] sm:$0xff]
        %p371 = scmp.eq.s32.totalorder %s28, 0
        %v372 = vld [vmem:[%s316] sm:$0xff]
        %v373 = vld [vmem:[%s316 + $0x8] sm:$0xff]
        %v374 = vld [vmem:[%s316 + $0x10] sm:$0xff]
        %v375 = vld [vmem:[%s316 + $0x18] sm:$0xff]
        %v376 = vld [vmem:[%s316 + $0x20] sm:$0xff]
        %v377 = vld [vmem:[%s316 + $0x28] sm:$0xff]
        %v378 = vld [vmem:[%s316 + $0x30] sm:$0xff]
        %v379 = vld [vmem:[%s316 + $0x38] sm:$0xff]
        %v380 = vld [vmem:[%s325] sm:$0xff]
        %382 = vset.pattern.permute.xlu0 0
        %383 = vperm.xlu0 %382, %v370
        %v384 = vpop.permute.xlu0 %383
        %vm386 = vcmask 64512
        %v388 = vsel %vm386, %v367, 0
        %390 = vmatprep.subr.mxu0 0.0
        %391 = vmatpush1.msra.mxu0 0.0
        %392 = vmatprep.subr.mxu0 0.0
        %393 = vmatpush1.msra.mxu0 0.0
        %394 = vmatprep.subr.mxu0 0.0
        %395 = vmatpush1.msra.mxu0 0.0
        %396 = vmatprep.subr.mxu0 0.0
        %397 = vmatpush1.msra.mxu0 0.0
        %398 = vmatprep.subr.mxu0 0.0
        %399 = vmatpush1.msra.mxu0 0.0
        %400 = vmatprep.subr.mxu0 0.0
        %401 = vmatpush1.msra.mxu0 0.0
        %402 = vmatprep.subr.mxu0 0.0
        %403 = vmatpush1.msra.mxu0 0.0
        %404 = vmatprep.subr.mxu0 0.0
        %405 = vmatpush1.msra.mxu0 0.0
        %406 = vmatprep.subr.mxu0 0.0
        %407 = vmatpush1.msra.mxu0 0.0
        %408 = vmatprep.subr.mxu0 0.0
        %409 = vmatpush1.msra.mxu0 0.0
        %410 = vmatprep.subr.mxu0 0.0
        %411 = vmatpush1.msra.mxu0 0.0
        %412 = vmatprep.subr.mxu0 0.0
        %413 = vmatpush1.msra.mxu0 0.0
        %414 = vmatprep.subr.mxu0 0.0
        %415 = vmatpush1.msra.mxu0 0.0
        %416 = vmatprep.subr.mxu0 0.0
        %417 = vmatpush1.msra.mxu0 0.0
        %418 = vmatprep.subr.mxu0 0.0
        %419 = vmatpush1.msra.mxu0 0.0
        %420 = vmatprep.subr.mxu0 %v373
        %421 = vmatpush1.msra.mxu0 %v372
        %422 = vmatprep.subr.mxu0 0.0
        %423 = vmatpush2.msra.mxu0 0.0
        %424 = vmatprep.subr.mxu0 0.0
        %425 = vmatpush2.msra.mxu0 0.0
        %426 = vmatprep.subr.mxu0 0.0
        %427 = vmatpush2.msra.mxu0 0.0
        %428 = vmatprep.subr.mxu0 0.0
        %429 = vmatpush2.msra.mxu0 0.0
        %430 = vmatprep.subr.mxu0 0.0
        %431 = vmatpush2.msra.mxu0 0.0
        %432 = vmatprep.subr.mxu0 0.0
        %433 = vmatpush2.msra.mxu0 0.0
        %434 = vmatprep.subr.mxu0 0.0
        %435 = vmatpush2.msra.mxu0 0.0
        %436 = vmatprep.subr.mxu0 0.0
        %437 = vmatpush2.msra.mxu0 0.0
        %438 = vmatprep.subr.mxu0 0.0
        %439 = vmatpush2.msra.mxu0 0.0
        %440 = vmatprep.subr.mxu0 0.0
        %441 = vmatpush2.msra.mxu0 0.0
        %442 = vmatprep.subr.mxu0 0.0
        %443 = vmatpush2.msra.mxu0 0.0
        %444 = vmatprep.subr.mxu0 0.0
        %445 = vmatpush2.msra.mxu0 0.0
        %446 = vmatprep.subr.mxu0 0.0
        %447 = vmatpush2.msra.mxu0 0.0
        %448 = vmatprep.subr.mxu0 0.0
        %449 = vmatpush2.msra.mxu0 0.0
        %450 = vmatprep.subr.mxu0 0.0
        %451 = vmatpush2.msra.mxu0 0.0
        %452 = vmatprep.subr.mxu0 0.0
        %453 = vmatpush2.msra.mxu0 0.0
        %454 = vmatprep.mubr.f32.mxu0 0.0
        %455 = vmatmul.mubr.f32.gmra.mxu0 %v388
        %v456 = vpop.f32.mrf.mxu0
        %v457 = vadd.f32 %v384, %v456
        %v458 = vpop.f32.mrf.mxu0
        %v459 = vadd.f32 %v384, %v458
        %460 = vdwg.mxu0
        %461 = vmatprep.subr.mxu0 0.0
        %462 = vmatpush1.msra.mxu0 0.0
        %463 = vmatprep.subr.mxu0 0.0
        %464 = vmatpush1.msra.mxu0 0.0
        %465 = vmatprep.subr.mxu0 0.0
        %466 = vmatpush1.msra.mxu0 0.0
        %467 = vmatprep.subr.mxu0 0.0
        %468 = vmatpush1.msra.mxu0 0.0
        %469 = vmatprep.subr.mxu0 0.0
        %470 = vmatpush1.msra.mxu0 0.0
        %471 = vmatprep.subr.mxu0 0.0
        %472 = vmatpush1.msra.mxu0 0.0
        %473 = vmatprep.subr.mxu0 0.0
        %474 = vmatpush1.msra.mxu0 0.0
        %475 = vmatprep.subr.mxu0 0.0
        %476 = vmatpush1.msra.mxu0 0.0
        %477 = vmatprep.subr.mxu0 0.0
        %478 = vmatpush1.msra.mxu0 0.0
        %479 = vmatprep.subr.mxu0 0.0
        %480 = vmatpush1.msra.mxu0 0.0
        %481 = vmatprep.subr.mxu0 0.0
        %482 = vmatpush1.msra.mxu0 0.0
        %483 = vmatprep.subr.mxu0 0.0
        %484 = vmatpush1.msra.mxu0 0.0
        %485 = vmatprep.subr.mxu0 0.0
        %486 = vmatpush1.msra.mxu0 0.0
        %487 = vmatprep.subr.mxu0 0.0
        %488 = vmatpush1.msra.mxu0 0.0
        %489 = vmatprep.subr.mxu0 0.0
        %490 = vmatpush1.msra.mxu0 0.0
        %491 = vmatprep.subr.mxu0 %v375
        %492 = vmatpush1.msra.mxu0 %v374
        %493 = vmatprep.subr.mxu0 0.0
        %494 = vmatpush2.msra.mxu0 0.0
        %495 = vmatprep.subr.mxu0 0.0
        %496 = vmatpush2.msra.mxu0 0.0
        %497 = vmatprep.subr.mxu0 0.0
        %498 = vmatpush2.msra.mxu0 0.0
        %499 = vmatprep.subr.mxu0 0.0
        %500 = vmatpush2.msra.mxu0 0.0
        %501 = vmatprep.subr.mxu0 0.0
        %502 = vmatpush2.msra.mxu0 0.0
        %503 = vmatprep.subr.mxu0 0.0
        %504 = vmatpush2.msra.mxu0 0.0
        %505 = vmatprep.subr.mxu0 0.0
        %506 = vmatpush2.msra.mxu0 0.0
        %507 = vmatprep.subr.mxu0 0.0
        %508 = vmatpush2.msra.mxu0 0.0
        %509 = vmatprep.subr.mxu0 0.0
        %510 = vmatpush2.msra.mxu0 0.0
        %511 = vmatprep.subr.mxu0 0.0
        %512 = vmatpush2.msra.mxu0 0.0
        %513 = vmatprep.subr.mxu0 0.0
        %514 = vmatpush2.msra.mxu0 0.0
        %515 = vmatprep.subr.mxu0 0.0
        %516 = vmatpush2.msra.mxu0 0.0
        %517 = vmatprep.subr.mxu0 0.0
        %518 = vmatpush2.msra.mxu0 0.0
        %519 = vmatprep.subr.mxu0 0.0
        %520 = vmatpush2.msra.mxu0 0.0
        %521 = vmatprep.subr.mxu0 0.0
        %522 = vmatpush2.msra.mxu0 0.0
        %523 = vmatprep.subr.mxu0 0.0
        %524 = vmatpush2.msra.mxu0 0.0
        %525 = vmatprep.mubr.f32.mxu0 0.0
        %526 = vmatmul.mubr.f32.gmra.mxu0 %v388
        %v527 = vpop.f32.mrf.mxu0
        %v528 = vadd.f32 %v384, %v527
        %v529 = vpop.f32.mrf.mxu0
        %v530 = vadd.f32 %v384, %v529
        %531 = vdwg.mxu0
        %532 = vmatprep.subr.mxu0 0.0
        %533 = vmatpush1.msra.mxu0 0.0
        %534 = vmatprep.subr.mxu0 0.0
        %535 = vmatpush1.msra.mxu0 0.0
        %536 = vmatprep.subr.mxu0 0.0
        %537 = vmatpush1.msra.mxu0 0.0
        %538 = vmatprep.subr.mxu0 0.0
        %539 = vmatpush1.msra.mxu0 0.0
        %540 = vmatprep.subr.mxu0 0.0
        %541 = vmatpush1.msra.mxu0 0.0
        %542 = vmatprep.subr.mxu0 0.0
        %543 = vmatpush1.msra.mxu0 0.0
        %544 = vmatprep.subr.mxu0 0.0
        %545 = vmatpush1.msra.mxu0 0.0
        %546 = vmatprep.subr.mxu0 0.0
        %547 = vmatpush1.msra.mxu0 0.0
        %548 = vmatprep.subr.mxu0 0.0
        %549 = vmatpush1.msra.mxu0 0.0
        %550 = vmatprep.subr.mxu0 0.0
        %551 = vmatpush1.msra.mxu0 0.0
        %552 = vmatprep.subr.mxu0 0.0
        %553 = vmatpush1.msra.mxu0 0.0
        %554 = vmatprep.subr.mxu0 0.0
        %555 = vmatpush1.msra.mxu0 0.0
        %556 = vmatprep.subr.mxu0 0.0
        %557 = vmatpush1.msra.mxu0 0.0
        %558 = vmatprep.subr.mxu0 0.0
        %559 = vmatpush1.msra.mxu0 0.0
        %560 = vmatprep.subr.mxu0 0.0
        %561 = vmatpush1.msra.mxu0 0.0
        %562 = vmatprep.subr.mxu0 %v377
        %563 = vmatpush1.msra.mxu0 %v376
        %564 = vmatprep.subr.mxu0 0.0
        %565 = vmatpush2.msra.mxu0 0.0
        %566 = vmatprep.subr.mxu0 0.0
        %567 = vmatpush2.msra.mxu0 0.0
        %568 = vmatprep.subr.mxu0 0.0
        %569 = vmatpush2.msra.mxu0 0.0
        %570 = vmatprep.subr.mxu0 0.0
        %571 = vmatpush2.msra.mxu0 0.0
        %572 = vmatprep.subr.mxu0 0.0
        %573 = vmatpush2.msra.mxu0 0.0
        %574 = vmatprep.subr.mxu0 0.0
        %575 = vmatpush2.msra.mxu0 0.0
        %576 = vmatprep.subr.mxu0 0.0
        %577 = vmatpush2.msra.mxu0 0.0
        %578 = vmatprep.subr.mxu0 0.0
        %579 = vmatpush2.msra.mxu0 0.0
        %580 = vmatprep.subr.mxu0 0.0
        %581 = vmatpush2.msra.mxu0 0.0
        %582 = vmatprep.subr.mxu0 0.0
        %583 = vmatpush2.msra.mxu0 0.0
        %584 = vmatprep.subr.mxu0 0.0
        %585 = vmatpush2.msra.mxu0 0.0
        %586 = vmatprep.subr.mxu0 0.0
        %587 = vmatpush2.msra.mxu0 0.0
        %588 = vmatprep.subr.mxu0 0.0
        %589 = vmatpush2.msra.mxu0 0.0
        %590 = vmatprep.subr.mxu0 0.0
        %591 = vmatpush2.msra.mxu0 0.0
        %592 = vmatprep.subr.mxu0 0.0
        %593 = vmatpush2.msra.mxu0 0.0
        %594 = vmatprep.subr.mxu0 0.0
        %595 = vmatpush2.msra.mxu0 0.0
        %596 = vmatprep.mubr.f32.mxu0 0.0
        %597 = vmatmul.mubr.f32.gmra.mxu0 %v388
        %v598 = vpop.f32.mrf.mxu0
        %v599 = vadd.f32 %v384, %v598
        %v600 = vpop.f32.mrf.mxu0
        %v601 = vadd.f32 %v384, %v600
        %602 = vdwg.mxu0
        %603 = vmatprep.subr.mxu0 0.0
        %604 = vmatpush1.msra.mxu0 0.0
        %605 = vmatprep.subr.mxu0 0.0
        %606 = vmatpush1.msra.mxu0 0.0
        %607 = vmatprep.subr.mxu0 0.0
        %608 = vmatpush1.msra.mxu0 0.0
        %609 = vmatprep.subr.mxu0 0.0
        %610 = vmatpush1.msra.mxu0 0.0
        %611 = vmatprep.subr.mxu0 0.0
        %612 = vmatpush1.msra.mxu0 0.0
        %613 = vmatprep.subr.mxu0 0.0
        %614 = vmatpush1.msra.mxu0 0.0
        %615 = vmatprep.subr.mxu0 0.0
        %616 = vmatpush1.msra.mxu0 0.0
        %617 = vmatprep.subr.mxu0 0.0
        %618 = vmatpush1.msra.mxu0 0.0
        %619 = vmatprep.subr.mxu0 0.0
        %620 = vmatpush1.msra.mxu0 0.0
        %621 = vmatprep.subr.mxu0 0.0
        %622 = vmatpush1.msra.mxu0 0.0
        %623 = vmatprep.subr.mxu0 0.0
        %624 = vmatpush1.msra.mxu0 0.0
        %625 = vmatprep.subr.mxu0 0.0
        %626 = vmatpush1.msra.mxu0 0.0
        %627 = vmatprep.subr.mxu0 0.0
        %628 = vmatpush1.msra.mxu0 0.0
        %629 = vmatprep.subr.mxu0 0.0
        %630 = vmatpush1.msra.mxu0 0.0
        %631 = vmatprep.subr.mxu0 0.0
        %632 = vmatpush1.msra.mxu0 0.0
        %633 = vmatprep.subr.mxu0 %v379
        %634 = vmatpush1.msra.mxu0 %v378
        %635 = vmatprep.subr.mxu0 0.0
        %636 = vmatpush2.msra.mxu0 0.0
        %637 = vmatprep.subr.mxu0 0.0
        %638 = vmatpush2.msra.mxu0 0.0
        %639 = vmatprep.subr.mxu0 0.0
        %640 = vmatpush2.msra.mxu0 0.0
        %641 = vmatprep.subr.mxu0 0.0
        %642 = vmatpush2.msra.mxu0 0.0
        %643 = vmatprep.subr.mxu0 0.0
        %644 = vmatpush2.msra.mxu0 0.0
        %645 = vmatprep.subr.mxu0 0.0
        %646 = vmatpush2.msra.mxu0 0.0
        %647 = vmatprep.subr.mxu0 0.0
        %648 = vmatpush2.msra.mxu0 0.0
        %649 = vmatprep.subr.mxu0 0.0
        %650 = vmatpush2.msra.mxu0 0.0
        %651 = vmatprep.subr.mxu0 0.0
        %652 = vmatpush2.msra.mxu0 0.0
        %653 = vmatprep.subr.mxu0 0.0
        %654 = vmatpush2.msra.mxu0 0.0
        %655 = vmatprep.subr.mxu0 0.0
        %656 = vmatpush2.msra.mxu0 0.0
        %657 = vmatprep.subr.mxu0 0.0
        %658 = vmatpush2.msra.mxu0 0.0
        %659 = vmatprep.subr.mxu0 0.0
        %660 = vmatpush2.msra.mxu0 0.0
        %661 = vmatprep.subr.mxu0 0.0
        %662 = vmatpush2.msra.mxu0 0.0
        %663 = vmatprep.subr.mxu0 0.0
        %664 = vmatpush2.msra.mxu0 0.0
        %665 = vmatprep.subr.mxu0 0.0
        %666 = vmatpush2.msra.mxu0 0.0
        %667 = vmatprep.mubr.f32.mxu0 0.0
        %668 = vmatmul.mubr.f32.gmra.mxu0 %v388
        %v669 = vpop.f32.mrf.mxu0
        %v670 = vadd.f32 %v384, %v669
        %v671 = vpop.f32.mrf.mxu0
        %v672 = vadd.f32 %v384, %v671
        %673 = vdwg.mxu0
        %675 = vrot.lane.b32.xlu0 %v380, 8
        %v676 = vpop.permute.xlu0 %675
        %678 = vst.msk [vmem:[#allocation2] sm:$0xff] %vm386, %v676
        %687 = vrot.lane.b32.xlu0 %v372, 8
        %v688 = vpop.permute.xlu0 %687
        %689 = vrot.lane.b32.xlu0 %v373, 8
        %v690 = vpop.permute.xlu0 %689
        %691 = vrot.lane.b32.xlu0 %v374, 8
        %v692 = vpop.permute.xlu0 %691
        %693 = vrot.lane.b32.xlu0 %v375, 8
        %v694 = vpop.permute.xlu0 %693
        %695 = vrot.lane.b32.xlu0 %v376, 8
        %v696 = vpop.permute.xlu0 %695
        %697 = vrot.lane.b32.xlu0 %v377, 8
        %v698 = vpop.permute.xlu0 %697
        %699 = vrot.lane.b32.xlu0 %v378, 8
        %v700 = vpop.permute.xlu0 %699
        %701 = vrot.lane.b32.xlu0 %v379, 8
        %v702 = vpop.permute.xlu0 %701
        %v703 = vsel %vm386, %v688, %v690
        %v704 = vsel %vm386, %v690, %v692
        %v705 = vsel %vm386, %v692, %v694
        %v706 = vsel %vm386, %v694, %v696
        %v707 = vsel %vm386, %v696, %v698
        %v708 = vsel %vm386, %v698, %v700
        %v709 = vsel %vm386, %v700, %v702
        %vm719 = vcmask 1047616
        %720 = vst.msk [vmem:[#allocation2] sm:$0xff] %vm719, %v688
        %721 = vst [vmem:[#allocation2 + $0x8] sm:$0xff] %v703
        %722 = vst [vmem:[#allocation2 + $0x10] sm:$0xff] %v704
        %723 = vst [vmem:[#allocation2 + $0x18] sm:$0xff] %v705
        %724 = vst [vmem:[#allocation2 + $0x20] sm:$0xff] %v706
        %725 = vst [vmem:[#allocation2 + $0x28] sm:$0xff] %v707
        %726 = vst [vmem:[#allocation2 + $0x30] sm:$0xff] %v708
        %727 = vst [vmem:[#allocation2 + $0x38] sm:$0xff] %v709
        %vm728 = vcmask 31744
        %729 = vst.msk [vmem:[#allocation2 + $0x40] sm:$0xff] %vm728, %v702
        %730 = vrot.lane.b32.xlu0 %v380, 6
        %v731 = vpop.permute.xlu0 %730
        %vm733 = vcmask 48128
        %734 = vst.msk [vmem:[#allocation2 + $0x48] sm:$0xff] %vm733, %v731
        %735 = vrot.lane.b32.xlu0 %v372, 6
        %v736 = vpop.permute.xlu0 %735
        %737 = vrot.lane.b32.xlu0 %v373, 6
        %v738 = vpop.permute.xlu0 %737
        %739 = vrot.lane.b32.xlu0 %v374, 6
        %v740 = vpop.permute.xlu0 %739
        %741 = vrot.lane.b32.xlu0 %v375, 6
        %v742 = vpop.permute.xlu0 %741
        %743 = vrot.lane.b32.xlu0 %v376, 6
        %v744 = vpop.permute.xlu0 %743
        %745 = vrot.lane.b32.xlu0 %v377, 6
        %v746 = vpop.permute.xlu0 %745
        %747 = vrot.lane.b32.xlu0 %v378, 6
        %v748 = vpop.permute.xlu0 %747
        %749 = vrot.lane.b32.xlu0 %v379, 6
        %v750 = vpop.permute.xlu0 %749
        %v751 = vsel %vm733, %v736, %v738
        %v752 = vsel %vm733, %v738, %v740
        %v753 = vsel %vm733, %v740, %v742
        %v754 = vsel %vm733, %v742, %v744
        %v755 = vsel %vm733, %v744, %v746
        %v756 = vsel %vm733, %v746, %v748
        %v757 = vsel %vm733, %v748, %v750
        %vm767 = vcmask 1047600
        %768 = vst.msk [vmem:[#allocation2 + $0x48] sm:$0xff] %vm767, %v736
        %769 = vst [vmem:[#allocation2 + $0x50] sm:$0xff] %v751
        %770 = vst [vmem:[#allocation2 + $0x58] sm:$0xff] %v752
        %771 = vst [vmem:[#allocation2 + $0x60] sm:$0xff] %v753
        %772 = vst [vmem:[#allocation2 + $0x68] sm:$0xff] %v754
        %773 = vst [vmem:[#allocation2 + $0x70] sm:$0xff] %v755
        %774 = vst [vmem:[#allocation2 + $0x78] sm:$0xff] %v756
        %775 = vst [vmem:[#allocation2 + $0x80] sm:$0xff] %v757
        %776 = vst.msk [vmem:[#allocation2 + $0x88] sm:$0xff] %vm728, %v750
        %777 = vrot.lane.b32.xlu0 %v380, 4
        %v778 = vpop.permute.xlu0 %777
        %780 = vst.msk [vmem:[#allocation2 + $0x90] sm:$0xff] %vm728, %v778
        %781 = vrot.lane.b32.xlu0 %v372, 4
        %v782 = vpop.permute.xlu0 %781
        %783 = vrot.lane.b32.xlu0 %v373, 4
        %v784 = vpop.permute.xlu0 %783
        %785 = vrot.lane.b32.xlu0 %v374, 4
        %v786 = vpop.permute.xlu0 %785
        %787 = vrot.lane.b32.xlu0 %v375, 4
        %v788 = vpop.permute.xlu0 %787
        %789 = vrot.lane.b32.xlu0 %v376, 4
        %v790 = vpop.permute.xlu0 %789
        %791 = vrot.lane.b32.xlu0 %v377, 4
        %v792 = vpop.permute.xlu0 %791
        %793 = vrot.lane.b32.xlu0 %v378, 4
        %v794 = vpop.permute.xlu0 %793
        %795 = vrot.lane.b32.xlu0 %v379, 4
        %v796 = vpop.permute.xlu0 %795
        %v797 = vsel %vm728, %v782, %v784
        %v798 = vsel %vm728, %v784, %v786
        %v799 = vsel %vm728, %v786, %v788
        %v800 = vsel %vm728, %v788, %v790
        %v801 = vsel %vm728, %v790, %v792
        %v802 = vsel %vm728, %v792, %v794
        %v803 = vsel %vm728, %v794, %v796
        %vm813 = vcmask 1047584
        %814 = vst.msk [vmem:[#allocation2 + $0x90] sm:$0xff] %vm813, %v782
        %815 = vst [vmem:[#allocation2 + $0x98] sm:$0xff] %v797
        %816 = vst [vmem:[#allocation2 + $0xa0] sm:$0xff] %v798
        %817 = vst [vmem:[#allocation2 + $0xa8] sm:$0xff] %v799
        %818 = vst [vmem:[#allocation2 + $0xb0] sm:$0xff] %v800
        %819 = vst [vmem:[#allocation2 + $0xb8] sm:$0xff] %v801
        %820 = vst [vmem:[#allocation2 + $0xc0] sm:$0xff] %v802
        %821 = vst [vmem:[#allocation2 + $0xc8] sm:$0xff] %v803
        %822 = vst.msk [vmem:[#allocation2 + $0xd0] sm:$0xff] %vm728, %v796
        %v823 = vld [vmem:[#allocation2] sm:$0xff]
        %v824 = vld [vmem:[#allocation2 + $0x8] sm:$0xff]
        %v825 = vld [vmem:[#allocation2 + $0x10] sm:$0xff]
        %v826 = vld [vmem:[#allocation2 + $0x18] sm:$0xff]
        %v827 = vld [vmem:[#allocation2 + $0x20] sm:$0xff]
        %v828 = vld [vmem:[#allocation2 + $0x28] sm:$0xff]
        %v829 = vld [vmem:[#allocation2 + $0x30] sm:$0xff]
        %v830 = vld [vmem:[#allocation2 + $0x38] sm:$0xff]
        %v831 = vld [vmem:[#allocation2 + $0x40] sm:$0xff]
        %v832 = vld [vmem:[#allocation2 + $0x48] sm:$0xff]
        %v833 = vld [vmem:[#allocation2 + $0x50] sm:$0xff]
        %v834 = vld [vmem:[#allocation2 + $0x58] sm:$0xff]
        %v835 = vld [vmem:[#allocation2 + $0x60] sm:$0xff]
        %v836 = vld [vmem:[#allocation2 + $0x68] sm:$0xff]
        %v837 = vld [vmem:[#allocation2 + $0x70] sm:$0xff]
        %v838 = vld [vmem:[#allocation2 + $0x78] sm:$0xff]
        %v839 = vld [vmem:[#allocation2 + $0x80] sm:$0xff]
        %v840 = vld [vmem:[#allocation2 + $0x88] sm:$0xff]
        %v841 = vld [vmem:[#allocation2 + $0x90] sm:$0xff]
        %v842 = vld [vmem:[#allocation2 + $0x98] sm:$0xff]
        %v843 = vld [vmem:[#allocation2 + $0xa0] sm:$0xff]
        %v844 = vld [vmem:[#allocation2 + $0xa8] sm:$0xff]
        %v845 = vld [vmem:[#allocation2 + $0xb0] sm:$0xff]
        %v846 = vld [vmem:[#allocation2 + $0xb8] sm:$0xff]
        %v847 = vld [vmem:[#allocation2 + $0xc0] sm:$0xff]
        %v848 = vld [vmem:[#allocation2 + $0xc8] sm:$0xff]
        %v849 = vld [vmem:[#allocation2 + $0xd0] sm:$0xff]
        %851 = vset.pattern.permute.xlu0 0
        %852 = vperm.xlu0 %851, %v368
        %v853 = vpop.permute.xlu0 %852
        %vm855 = vcmask 195584
        %v857 = vsel %vm855, %v365, 0
        %859 = vmatprep.subr.mxu0 0.0
        %860 = vmatpush1.msra.mxu0 0.0
        %861 = vmatprep.subr.mxu0 0.0
        %862 = vmatpush1.msra.mxu0 0.0
        %863 = vmatprep.subr.mxu0 0.0
        %864 = vmatpush1.msra.mxu0 0.0
        %865 = vmatprep.subr.mxu0 0.0
        %866 = vmatpush1.msra.mxu0 0.0
        %867 = vmatprep.subr.mxu0 0.0
        %868 = vmatpush1.msra.mxu0 0.0
        %869 = vmatprep.subr.mxu0 0.0
        %870 = vmatpush1.msra.mxu0 0.0
        %871 = vmatprep.subr.mxu0 0.0
        %872 = vmatpush1.msra.mxu0 0.0
        %873 = vmatprep.subr.mxu0 0.0
        %874 = vmatpush1.msra.mxu0 0.0
        %875 = vmatprep.subr.mxu0 0.0
        %876 = vmatpush1.msra.mxu0 0.0
        %877 = vmatprep.subr.mxu0 0.0
        %878 = vmatpush1.msra.mxu0 0.0
        %879 = vmatprep.subr.mxu0 0.0
        %880 = vmatpush1.msra.mxu0 0.0
        %881 = vmatprep.subr.mxu0 0.0
        %882 = vmatpush1.msra.mxu0 0.0
        %883 = vmatprep.subr.mxu0 0.0
        %884 = vmatpush1.msra.mxu0 0.0
        %885 = vmatprep.subr.mxu0 %v842
        %886 = vmatpush1.msra.mxu0 %v841
        %887 = vmatprep.subr.mxu0 %v833
        %888 = vmatpush1.msra.mxu0 %v832
        %889 = vmatprep.subr.mxu0 %v824
        %890 = vmatpush1.msra.mxu0 %v823
        %891 = vmatprep.subr.mxu0 0.0
        %892 = vmatpush2.msra.mxu0 0.0
        %893 = vmatprep.subr.mxu0 0.0
        %894 = vmatpush2.msra.mxu0 0.0
        %895 = vmatprep.subr.mxu0 0.0
        %896 = vmatpush2.msra.mxu0 0.0
        %897 = vmatprep.subr.mxu0 0.0
        %898 = vmatpush2.msra.mxu0 0.0
        %899 = vmatprep.subr.mxu0 0.0
        %900 = vmatpush2.msra.mxu0 0.0
        %901 = vmatprep.subr.mxu0 0.0
        %902 = vmatpush2.msra.mxu0 0.0
        %903 = vmatprep.subr.mxu0 0.0
        %904 = vmatpush2.msra.mxu0 0.0
        %905 = vmatprep.subr.mxu0 0.0
        %906 = vmatpush2.msra.mxu0 0.0
        %907 = vmatprep.subr.mxu0 0.0
        %908 = vmatpush2.msra.mxu0 0.0
        %909 = vmatprep.subr.mxu0 0.0
        %910 = vmatpush2.msra.mxu0 0.0
        %911 = vmatprep.subr.mxu0 0.0
        %912 = vmatpush2.msra.mxu0 0.0
        %913 = vmatprep.subr.mxu0 0.0
        %914 = vmatpush2.msra.mxu0 0.0
        %915 = vmatprep.subr.mxu0 0.0
        %916 = vmatpush2.msra.mxu0 0.0
        %917 = vmatprep.subr.mxu0 0.0
        %918 = vmatpush2.msra.mxu0 0.0
        %919 = vmatprep.subr.mxu0 0.0
        %920 = vmatpush2.msra.mxu0 0.0
        %921 = vmatprep.subr.mxu0 0.0
        %922 = vmatpush2.msra.mxu0 0.0
        %923 = vmatprep.mubr.f32.mxu0 0.0
        %924 = vmatmul.mubr.f32.gmra.mxu0 %v857
        %v925 = vpop.f32.mrf.mxu0
        %v926 = vadd.f32 %v853, %v925
        %v927 = vpop.f32.mrf.mxu0
        %v928 = vadd.f32 %v853, %v927
        %929 = vdwg.mxu0
        %930 = vmatprep.subr.mxu0 0.0
        %931 = vmatpush1.msra.mxu0 0.0
        %932 = vmatprep.subr.mxu0 0.0
        %933 = vmatpush1.msra.mxu0 0.0
        %934 = vmatprep.subr.mxu0 0.0
        %935 = vmatpush1.msra.mxu0 0.0
        %936 = vmatprep.subr.mxu0 0.0
        %937 = vmatpush1.msra.mxu0 0.0
        %938 = vmatprep.subr.mxu0 0.0
        %939 = vmatpush1.msra.mxu0 0.0
        %940 = vmatprep.subr.mxu0 0.0
        %941 = vmatpush1.msra.mxu0 0.0
        %942 = vmatprep.subr.mxu0 0.0
        %943 = vmatpush1.msra.mxu0 0.0
        %944 = vmatprep.subr.mxu0 0.0
        %945 = vmatpush1.msra.mxu0 0.0
        %946 = vmatprep.subr.mxu0 0.0
        %947 = vmatpush1.msra.mxu0 0.0
        %948 = vmatprep.subr.mxu0 0.0
        %949 = vmatpush1.msra.mxu0 0.0
        %950 = vmatprep.subr.mxu0 0.0
        %951 = vmatpush1.msra.mxu0 0.0
        %952 = vmatprep.subr.mxu0 0.0
        %953 = vmatpush1.msra.mxu0 0.0
        %954 = vmatprep.subr.mxu0 0.0
        %955 = vmatpush1.msra.mxu0 0.0
        %956 = vmatprep.subr.mxu0 %v844
        %957 = vmatpush1.msra.mxu0 %v843
        %958 = vmatprep.subr.mxu0 %v835
        %959 = vmatpush1.msra.mxu0 %v834
        %960 = vmatprep.subr.mxu0 %v826
        %961 = vmatpush1.msra.mxu0 %v825
        %962 = vmatprep.subr.mxu0 0.0
        %963 = vmatpush2.msra.mxu0 0.0
        %964 = vmatprep.subr.mxu0 0.0
        %965 = vmatpush2.msra.mxu0 0.0
        %966 = vmatprep.subr.mxu0 0.0
        %967 = vmatpush2.msra.mxu0 0.0
        %968 = vmatprep.subr.mxu0 0.0
        %969 = vmatpush2.msra.mxu0 0.0
        %970 = vmatprep.subr.mxu0 0.0
        %971 = vmatpush2.msra.mxu0 0.0
        %972 = vmatprep.subr.mxu0 0.0
        %973 = vmatpush2.msra.mxu0 0.0
        %974 = vmatprep.subr.mxu0 0.0
        %975 = vmatpush2.msra.mxu0 0.0
        %976 = vmatprep.subr.mxu0 0.0
        %977 = vmatpush2.msra.mxu0 0.0
        %978 = vmatprep.subr.mxu0 0.0
        %979 = vmatpush2.msra.mxu0 0.0
        %980 = vmatprep.subr.mxu0 0.0
        %981 = vmatpush2.msra.mxu0 0.0
        %982 = vmatprep.subr.mxu0 0.0
        %983 = vmatpush2.msra.mxu0 0.0
        %984 = vmatprep.subr.mxu0 0.0
        %985 = vmatpush2.msra.mxu0 0.0
        %986 = vmatprep.subr.mxu0 0.0
        %987 = vmatpush2.msra.mxu0 0.0
        %988 = vmatprep.subr.mxu0 0.0
        %989 = vmatpush2.msra.mxu0 0.0
        %990 = vmatprep.subr.mxu0 0.0
        %991 = vmatpush2.msra.mxu0 0.0
        %992 = vmatprep.subr.mxu0 0.0
        %993 = vmatpush2.msra.mxu0 0.0
        %994 = vmatprep.mubr.f32.mxu0 0.0
        %995 = vmatmul.mubr.f32.gmra.mxu0 %v857
        %v996 = vpop.f32.mrf.mxu0
        %v997 = vadd.f32 %v853, %v996
        %v998 = vpop.f32.mrf.mxu0
        %v999 = vadd.f32 %v853, %v998
        %1000 = vdwg.mxu0
        %1001 = vmatprep.subr.mxu0 0.0
        %1002 = vmatpush1.msra.mxu0 0.0
        %1003 = vmatprep.subr.mxu0 0.0
        %1004 = vmatpush1.msra.mxu0 0.0
        %1005 = vmatprep.subr.mxu0 0.0
        %1006 = vmatpush1.msra.mxu0 0.0
        %1007 = vmatprep.subr.mxu0 0.0
        %1008 = vmatpush1.msra.mxu0 0.0
        %1009 = vmatprep.subr.mxu0 0.0
        %1010 = vmatpush1.msra.mxu0 0.0
        %1011 = vmatprep.subr.mxu0 0.0
        %1012 = vmatpush1.msra.mxu0 0.0
        %1013 = vmatprep.subr.mxu0 0.0
        %1014 = vmatpush1.msra.mxu0 0.0
        %1015 = vmatprep.subr.mxu0 0.0
        %1016 = vmatpush1.msra.mxu0 0.0
        %1017 = vmatprep.subr.mxu0 0.0
        %1018 = vmatpush1.msra.mxu0 0.0
        %1019 = vmatprep.subr.mxu0 0.0
        %1020 = vmatpush1.msra.mxu0 0.0
        %1021 = vmatprep.subr.mxu0 0.0
        %1022 = vmatpush1.msra.mxu0 0.0
        %1023 = vmatprep.subr.mxu0 0.0
        %1024 = vmatpush1.msra.mxu0 0.0
        %1025 = vmatprep.subr.mxu0 0.0
        %1026 = vmatpush1.msra.mxu0 0.0
        %1027 = vmatprep.subr.mxu0 %v846
        %1028 = vmatpush1.msra.mxu0 %v845
        %1029 = vmatprep.subr.mxu0 %v837
        %1030 = vmatpush1.msra.mxu0 %v836
        %1031 = vmatprep.subr.mxu0 %v828
        %1032 = vmatpush1.msra.mxu0 %v827
        %1033 = vmatprep.subr.mxu0 0.0
        %1034 = vmatpush2.msra.mxu0 0.0
        %1035 = vmatprep.subr.mxu0 0.0
        %1036 = vmatpush2.msra.mxu0 0.0
        %1037 = vmatprep.subr.mxu0 0.0
        %1038 = vmatpush2.msra.mxu0 0.0
        %1039 = vmatprep.subr.mxu0 0.0
        %1040 = vmatpush2.msra.mxu0 0.0
        %1041 = vmatprep.subr.mxu0 0.0
        %1042 = vmatpush2.msra.mxu0 0.0
        %1043 = vmatprep.subr.mxu0 0.0
        %1044 = vmatpush2.msra.mxu0 0.0
        %1045 = vmatprep.subr.mxu0 0.0
        %1046 = vmatpush2.msra.mxu0 0.0
        %1047 = vmatprep.subr.mxu0 0.0
        %1048 = vmatpush2.msra.mxu0 0.0
        %1049 = vmatprep.subr.mxu0 0.0
        %1050 = vmatpush2.msra.mxu0 0.0
        %1051 = vmatprep.subr.mxu0 0.0
        %1052 = vmatpush2.msra.mxu0 0.0
        %1053 = vmatprep.subr.mxu0 0.0
        %1054 = vmatpush2.msra.mxu0 0.0
        %1055 = vmatprep.subr.mxu0 0.0
        %1056 = vmatpush2.msra.mxu0 0.0
        %1057 = vmatprep.subr.mxu0 0.0
        %1058 = vmatpush2.msra.mxu0 0.0
        %1059 = vmatprep.subr.mxu0 0.0
        %1060 = vmatpush2.msra.mxu0 0.0
        %1061 = vmatprep.subr.mxu0 0.0
        %1062 = vmatpush2.msra.mxu0 0.0
        %1063 = vmatprep.subr.mxu0 0.0
        %1064 = vmatpush2.msra.mxu0 0.0
        %1065 = vmatprep.mubr.f32.mxu0 0.0
        %1066 = vmatmul.mubr.f32.gmra.mxu0 %v857
        %v1067 = vpop.f32.mrf.mxu0
        %v1068 = vadd.f32 %v853, %v1067
        %v1069 = vpop.f32.mrf.mxu0
        %v1070 = vadd.f32 %v853, %v1069
        %1071 = vdwg.mxu0
        %1072 = vmatprep.subr.mxu0 0.0
        %1073 = vmatpush1.msra.mxu0 0.0
        %1074 = vmatprep.subr.mxu0 0.0
        %1075 = vmatpush1.msra.mxu0 0.0
        %1076 = vmatprep.subr.mxu0 0.0
        %1077 = vmatpush1.msra.mxu0 0.0
        %1078 = vmatprep.subr.mxu0 0.0
        %1079 = vmatpush1.msra.mxu0 0.0
        %1080 = vmatprep.subr.mxu0 0.0
        %1081 = vmatpush1.msra.mxu0 0.0
        %1082 = vmatprep.subr.mxu0 0.0
        %1083 = vmatpush1.msra.mxu0 0.0
        %1084 = vmatprep.subr.mxu0 0.0
        %1085 = vmatpush1.msra.mxu0 0.0
        %1086 = vmatprep.subr.mxu0 0.0
        %1087 = vmatpush1.msra.mxu0 0.0
        %1088 = vmatprep.subr.mxu0 0.0
        %1089 = vmatpush1.msra.mxu0 0.0
        %1090 = vmatprep.subr.mxu0 0.0
        %1091 = vmatpush1.msra.mxu0 0.0
        %1092 = vmatprep.subr.mxu0 0.0
        %1093 = vmatpush1.msra.mxu0 0.0
        %1094 = vmatprep.subr.mxu0 0.0
        %1095 = vmatpush1.msra.mxu0 0.0
        %1096 = vmatprep.subr.mxu0 0.0
        %1097 = vmatpush1.msra.mxu0 0.0
        %1098 = vmatprep.subr.mxu0 %v848
        %1099 = vmatpush1.msra.mxu0 %v847
        %1100 = vmatprep.subr.mxu0 %v839
        %1101 = vmatpush1.msra.mxu0 %v838
        %1102 = vmatprep.subr.mxu0 %v830
        %1103 = vmatpush1.msra.mxu0 %v829
        %1104 = vmatprep.subr.mxu0 0.0
        %1105 = vmatpush2.msra.mxu0 0.0
        %1106 = vmatprep.subr.mxu0 0.0
        %1107 = vmatpush2.msra.mxu0 0.0
        %1108 = vmatprep.subr.mxu0 0.0
        %1109 = vmatpush2.msra.mxu0 0.0
        %1110 = vmatprep.subr.mxu0 0.0
        %1111 = vmatpush2.msra.mxu0 0.0
        %1112 = vmatprep.subr.mxu0 0.0
        %1113 = vmatpush2.msra.mxu0 0.0
        %1114 = vmatprep.subr.mxu0 0.0
        %1115 = vmatpush2.msra.mxu0 0.0
        %1116 = vmatprep.subr.mxu0 0.0
        %1117 = vmatpush2.msra.mxu0 0.0
        %1118 = vmatprep.subr.mxu0 0.0
        %1119 = vmatpush2.msra.mxu0 0.0
        %1120 = vmatprep.subr.mxu0 0.0
        %1121 = vmatpush2.msra.mxu0 0.0
        %1122 = vmatprep.subr.mxu0 0.0
        %1123 = vmatpush2.msra.mxu0 0.0
        %1124 = vmatprep.subr.mxu0 0.0
        %1125 = vmatpush2.msra.mxu0 0.0
        %1126 = vmatprep.subr.mxu0 0.0
        %1127 = vmatpush2.msra.mxu0 0.0
        %1128 = vmatprep.subr.mxu0 0.0
        %1129 = vmatpush2.msra.mxu0 0.0
        %1130 = vmatprep.subr.mxu0 0.0
        %1131 = vmatpush2.msra.mxu0 0.0
        %1132 = vmatprep.subr.mxu0 0.0
        %1133 = vmatpush2.msra.mxu0 0.0
        %1134 = vmatprep.subr.mxu0 0.0
        %1135 = vmatpush2.msra.mxu0 0.0
        %1136 = vmatprep.mubr.f32.mxu0 0.0
        %1137 = vmatmul.mubr.f32.gmra.mxu0 %v857
        %v1138 = vpop.f32.mrf.mxu0
        %v1139 = vadd.f32 %v853, %v1138
        %v1140 = vpop.f32.mrf.mxu0
        %v1141 = vadd.f32 %v853, %v1140
        %1142 = vdwg.mxu0
        %1143 = vmatprep.subr.mxu0 0.0
        %1144 = vmatpush1.msra.mxu0 0.0
        %1145 = vmatprep.subr.mxu0 0.0
        %1146 = vmatpush1.msra.mxu0 0.0
        %1147 = vmatprep.subr.mxu0 0.0
        %1148 = vmatpush1.msra.mxu0 0.0
        %1149 = vmatprep.subr.mxu0 0.0
        %1150 = vmatpush1.msra.mxu0 0.0
        %1151 = vmatprep.subr.mxu0 0.0
        %1152 = vmatpush1.msra.mxu0 0.0
        %1153 = vmatprep.subr.mxu0 0.0
        %1154 = vmatpush1.msra.mxu0 0.0
        %1155 = vmatprep.subr.mxu0 0.0
        %1156 = vmatpush1.msra.mxu0 0.0
        %1157 = vmatprep.subr.mxu0 0.0
        %1158 = vmatpush1.msra.mxu0 0.0
        %1159 = vmatprep.subr.mxu0 0.0
        %1160 = vmatpush1.msra.mxu0 0.0
        %1161 = vmatprep.subr.mxu0 0.0
        %1162 = vmatpush1.msra.mxu0 0.0
        %1163 = vmatprep.subr.mxu0 0.0
        %1164 = vmatpush1.msra.mxu0 0.0
        %1165 = vmatprep.subr.mxu0 0.0
        %1166 = vmatpush1.msra.mxu0 0.0
        %1167 = vmatprep.subr.mxu0 0.0
        %1168 = vmatpush1.msra.mxu0 0.0
        %1169 = vmatprep.subr.mxu0 0.0
        %1170 = vmatpush1.msra.mxu0 %v849
        %1171 = vmatprep.subr.mxu0 0.0
        %1172 = vmatpush1.msra.mxu0 %v840
        %1173 = vmatprep.subr.mxu0 0.0
        %1174 = vmatpush1.msra.mxu0 %v831
        %1175 = vmatprep.subr.mxu0 0.0
        %1176 = vmatpush2.msra.mxu0 0.0
        %1177 = vmatprep.subr.mxu0 0.0
        %1178 = vmatpush2.msra.mxu0 0.0
        %1179 = vmatprep.subr.mxu0 0.0
        %1180 = vmatpush2.msra.mxu0 0.0
        %1181 = vmatprep.subr.mxu0 0.0
        %1182 = vmatpush2.msra.mxu0 0.0
        %1183 = vmatprep.subr.mxu0 0.0
        %1184 = vmatpush2.msra.mxu0 0.0
        %1185 = vmatprep.subr.mxu0 0.0
        %1186 = vmatpush2.msra.mxu0 0.0
        %1187 = vmatprep.subr.mxu0 0.0
        %1188 = vmatpush2.msra.mxu0 0.0
        %1189 = vmatprep.subr.mxu0 0.0
        %1190 = vmatpush2.msra.mxu0 0.0
        %1191 = vmatprep.subr.mxu0 0.0
        %1192 = vmatpush2.msra.mxu0 0.0
        %1193 = vmatprep.subr.mxu0 0.0
        %1194 = vmatpush2.msra.mxu0 0.0
        %1195 = vmatprep.subr.mxu0 0.0
        %1196 = vmatpush2.msra.mxu0 0.0
        %1197 = vmatprep.subr.mxu0 0.0
        %1198 = vmatpush2.msra.mxu0 0.0
        %1199 = vmatprep.subr.mxu0 0.0
        %1200 = vmatpush2.msra.mxu0 0.0
        %1201 = vmatprep.subr.mxu0 0.0
        %1202 = vmatpush2.msra.mxu0 0.0
        %1203 = vmatprep.subr.mxu0 0.0
        %1204 = vmatpush2.msra.mxu0 0.0
        %1205 = vmatprep.subr.mxu0 0.0
        %1206 = vmatpush2.msra.mxu0 0.0
        %1207 = vmatprep.mubr.f32.mxu0 0.0
        %1208 = vmatmul.mubr.f32.gmra.mxu0 %v857
        %v1209 = vpop.f32.mrf.mxu0
        %v1210 = vadd.f32 %v853, %v1209
        %v1211 = vpop.f32.mrf.mxu0
        %1212 = vdwg.mxu0
        %v1213 = vmax.f32 %v926, 0.0
        %v1214 = vmax.f32 %v928, 0.0
        %v1215 = vmax.f32 %v997, 0.0
        %v1216 = vmax.f32 %v999, 0.0
        %v1217 = vmax.f32 %v1068, 0.0
        %v1218 = vmax.f32 %v1070, 0.0
        %v1219 = vmax.f32 %v1139, 0.0
        %v1220 = vmax.f32 %v1141, 0.0
        %v1221 = vmax.f32 %v1210, 0.0
        %1222 = vst [vmem:[#allocation3] sm:$0xff] %v1213
        %1223 = vst [vmem:[#allocation3 + $0x8] sm:$0xff] %v1214
        %1224 = vst [vmem:[#allocation3 + $0x10] sm:$0xff] %v1215
        %1225 = vst [vmem:[#allocation3 + $0x18] sm:$0xff] %v1216
        %1226 = vst [vmem:[#allocation3 + $0x20] sm:$0xff] %v1217
        %1227 = vst [vmem:[#allocation3 + $0x28] sm:$0xff] %v1218
        %1228 = vst [vmem:[#allocation3 + $0x30] sm:$0xff] %v1219
        %1229 = vst [vmem:[#allocation3 + $0x38] sm:$0xff] %v1220
        %1239 = vrot.lane.b32.xlu0 %v1213, 126
        %v1240 = vpop.permute.xlu0 %1239
        %1241 = vrot.lane.b32.xlu0 %v1214, 126
        %v1242 = vpop.permute.xlu0 %1241
        %1243 = vrot.lane.b32.xlu0 %v1215, 126
        %v1244 = vpop.permute.xlu0 %1243
        %1245 = vrot.lane.b32.xlu0 %v1216, 126
        %v1246 = vpop.permute.xlu0 %1245
        %1247 = vrot.lane.b32.xlu0 %v1217, 126
        %v1248 = vpop.permute.xlu0 %1247
        %1249 = vrot.lane.b32.xlu0 %v1218, 126
        %v1250 = vpop.permute.xlu0 %1249
        %1251 = vrot.lane.b32.xlu0 %v1219, 126
        %v1252 = vpop.permute.xlu0 %1251
        %1253 = vrot.lane.b32.xlu0 %v1220, 126
        %v1254 = vpop.permute.xlu0 %1253
        %1255 = vrot.lane.b32.xlu0 %v1221, 126
        %v1256 = vpop.permute.xlu0 %1255
        %vm1257 = vcmask 1031168
        %v1258 = vsel %vm1257, %v1240, %v1242
        %v1259 = vsel %vm1257, %v1242, %v1244
        %v1260 = vsel %vm1257, %v1244, %v1246
        %v1261 = vsel %vm1257, %v1246, %v1248
        %v1262 = vsel %vm1257, %v1248, %v1250
        %v1263 = vsel %vm1257, %v1250, %v1252
        %v1264 = vsel %vm1257, %v1252, %v1254
        %v1265 = vsel %vm1257, %v1254, %v1256
        %1274 = vst [vmem:[#allocation3 + $0x40] sm:$0xff] %v1258
        %1275 = vst [vmem:[#allocation3 + $0x48] sm:$0xff] %v1259
        %1276 = vst [vmem:[#allocation3 + $0x50] sm:$0xff] %v1260
        %1277 = vst [vmem:[#allocation3 + $0x58] sm:$0xff] %v1261
        %1278 = vst [vmem:[#allocation3 + $0x60] sm:$0xff] %v1262
        %1279 = vst [vmem:[#allocation3 + $0x68] sm:$0xff] %v1263
        %1280 = vst [vmem:[#allocation3 + $0x70] sm:$0xff] %v1264
        %1281 = vst [vmem:[#allocation3 + $0x78] sm:$0xff] %v1265
        %1282 = vrot.lane.b32.xlu0 %v1213, 124
        %v1283 = vpop.permute.xlu0 %1282
        %1284 = vrot.lane.b32.xlu0 %v1214, 124
        %v1285 = vpop.permute.xlu0 %1284
        %1286 = vrot.lane.b32.xlu0 %v1215, 124
        %v1287 = vpop.permute.xlu0 %1286
        %1288 = vrot.lane.b32.xlu0 %v1216, 124
        %v1289 = vpop.permute.xlu0 %1288
        %1290 = vrot.lane.b32.xlu0 %v1217, 124
        %v1291 = vpop.permute.xlu0 %1290
        %1292 = vrot.lane.b32.xlu0 %v1218, 124
        %v1293 = vpop.permute.xlu0 %1292
        %1294 = vrot.lane.b32.xlu0 %v1219, 124
        %v1295 = vpop.permute.xlu0 %1294
        %1296 = vrot.lane.b32.xlu0 %v1220, 124
        %v1297 = vpop.permute.xlu0 %1296
        %1298 = vrot.lane.b32.xlu0 %v1221, 124
        %v1299 = vpop.permute.xlu0 %1298
        %vm1300 = vcmask 1014784
        %v1301 = vsel %vm1300, %v1283, %v1285
        %v1302 = vsel %vm1300, %v1285, %v1287
        %v1303 = vsel %vm1300, %v1287, %v1289
        %v1304 = vsel %vm1300, %v1289, %v1291
        %v1305 = vsel %vm1300, %v1291, %v1293
        %v1306 = vsel %vm1300, %v1293, %v1295
        %v1307 = vsel %vm1300, %v1295, %v1297
        %v1308 = vsel %vm1300, %v1297, %v1299
        %1317 = vst [vmem:[#allocation3 + $0x80] sm:$0xff] %v1301
        %1318 = vst [vmem:[#allocation3 + $0x88] sm:$0xff] %v1302
        %1319 = vst [vmem:[#allocation3 + $0x90] sm:$0xff] %v1303
        %1320 = vst [vmem:[#allocation3 + $0x98] sm:$0xff] %v1304
        %1321 = vst [vmem:[#allocation3 + $0xa0] sm:$0xff] %v1305
        %1322 = vst [vmem:[#allocation3 + $0xa8] sm:$0xff] %v1306
        %1323 = vst [vmem:[#allocation3 + $0xb0] sm:$0xff] %v1307
        %1324 = vst [vmem:[#allocation3 + $0xb8] sm:$0xff] %v1308
        // Predicated region
        $region61: #{tpu_custom_call.1} parent=51 // pred_check
          %p1325 = pneg %p371
        $region62: #{tpu_custom_call.1} parent=51 // pred_check_branch
          %1327 = sbr.rel (%p1325) target = $region64
        $region63: #{tpu_custom_call.1} parent=51 // pred_region
          %1328 = vst.msk [vmem:[#allocation3] sm:$0xff] %vm728, 0.0
          %vm1329 = vcmask 15360
          %1330 = vst.msk [vmem:[#allocation3 + $0x40] sm:$0xff] %vm1329, 0.0
        $region64: #{tpu_custom_call.1} parent=51 // pred_fallthru
          _
        %v1331 = vld [vmem:[#allocation3] sm:$0xff]
        %v1332 = vld [vmem:[#allocation3 + $0x8] sm:$0xff]
        %v1333 = vld [vmem:[#allocation3 + $0x10] sm:$0xff]
        %v1334 = vld [vmem:[#allocation3 + $0x18] sm:$0xff]
        %v1335 = vld [vmem:[#allocation3 + $0x20] sm:$0xff]
        %v1336 = vld [vmem:[#allocation3 + $0x28] sm:$0xff]
        %v1337 = vld [vmem:[#allocation3 + $0x30] sm:$0xff]
        %v1338 = vld [vmem:[#allocation3 + $0x38] sm:$0xff]
        %v1339 = vld [vmem:[#allocation3 + $0x40] sm:$0xff]
        %v1340 = vld [vmem:[#allocation3 + $0x48] sm:$0xff]
        %v1341 = vld [vmem:[#allocation3 + $0x50] sm:$0xff]
        %v1342 = vld [vmem:[#allocation3 + $0x58] sm:$0xff]
        %v1343 = vld [vmem:[#allocation3 + $0x60] sm:$0xff]
        %v1344 = vld [vmem:[#allocation3 + $0x68] sm:$0xff]
        %v1345 = vld [vmem:[#allocation3 + $0x70] sm:$0xff]
        %v1346 = vld [vmem:[#allocation3 + $0x78] sm:$0xff]
        %v1347 = vld [vmem:[#allocation3 + $0x80] sm:$0xff]
        %v1348 = vld [vmem:[#allocation3 + $0x88] sm:$0xff]
        %v1349 = vld [vmem:[#allocation3 + $0x90] sm:$0xff]
        %v1350 = vld [vmem:[#allocation3 + $0x98] sm:$0xff]
        %v1351 = vld [vmem:[#allocation3 + $0xa0] sm:$0xff]
        %v1352 = vld [vmem:[#allocation3 + $0xa8] sm:$0xff]
        %v1353 = vld [vmem:[#allocation3 + $0xb0] sm:$0xff]
        %v1354 = vld [vmem:[#allocation3 + $0xb8] sm:$0xff]
        %1356 = vset.pattern.permute.xlu0 0
        %1357 = vperm.xlu0 %1356, %v369
        %v1358 = vpop.permute.xlu0 %1357
        %v1361 = vsel %vm855, %v366, 0
        %1363 = vmatprep.subr.mxu0 0.0
        %1364 = vmatpush1.msra.mxu0 0.0
        %1365 = vmatprep.subr.mxu0 0.0
        %1366 = vmatpush1.msra.mxu0 0.0
        %1367 = vmatprep.subr.mxu0 0.0
        %1368 = vmatpush1.msra.mxu0 0.0
        %1369 = vmatprep.subr.mxu0 0.0
        %1370 = vmatpush1.msra.mxu0 0.0
        %1371 = vmatprep.subr.mxu0 0.0
        %1372 = vmatpush1.msra.mxu0 0.0
        %1373 = vmatprep.subr.mxu0 0.0
        %1374 = vmatpush1.msra.mxu0 0.0
        %1375 = vmatprep.subr.mxu0 0.0
        %1376 = vmatpush1.msra.mxu0 0.0
        %1377 = vmatprep.subr.mxu0 0.0
        %1378 = vmatpush1.msra.mxu0 0.0
        %1379 = vmatprep.subr.mxu0 0.0
        %1380 = vmatpush1.msra.mxu0 0.0
        %1381 = vmatprep.subr.mxu0 0.0
        %1382 = vmatpush1.msra.mxu0 0.0
        %1383 = vmatprep.subr.mxu0 0.0
        %1384 = vmatpush1.msra.mxu0 0.0
        %1385 = vmatprep.subr.mxu0 0.0
        %1386 = vmatpush1.msra.mxu0 0.0
        %1387 = vmatprep.subr.mxu0 0.0
        %1388 = vmatpush1.msra.mxu0 0.0
        %1389 = vmatprep.subr.mxu0 %v1348
        %1390 = vmatpush1.msra.mxu0 %v1347
        %1391 = vmatprep.subr.mxu0 %v1340
        %1392 = vmatpush1.msra.mxu0 %v1339
        %1393 = vmatprep.subr.mxu0 %v1332
        %1394 = vmatpush1.msra.mxu0 %v1331
        %1395 = vmatprep.subr.mxu0 0.0
        %1396 = vmatpush2.msra.mxu0 0.0
        %1397 = vmatprep.subr.mxu0 0.0
        %1398 = vmatpush2.msra.mxu0 0.0
        %1399 = vmatprep.subr.mxu0 0.0
        %1400 = vmatpush2.msra.mxu0 0.0
        %1401 = vmatprep.subr.mxu0 0.0
        %1402 = vmatpush2.msra.mxu0 0.0
        %1403 = vmatprep.subr.mxu0 0.0
        %1404 = vmatpush2.msra.mxu0 0.0
        %1405 = vmatprep.subr.mxu0 0.0
        %1406 = vmatpush2.msra.mxu0 0.0
        %1407 = vmatprep.subr.mxu0 0.0
        %1408 = vmatpush2.msra.mxu0 0.0
        %1409 = vmatprep.subr.mxu0 0.0
        %1410 = vmatpush2.msra.mxu0 0.0
        %1411 = vmatprep.subr.mxu0 0.0
        %1412 = vmatpush2.msra.mxu0 0.0
        %1413 = vmatprep.subr.mxu0 0.0
        %1414 = vmatpush2.msra.mxu0 0.0
        %1415 = vmatprep.subr.mxu0 0.0
        %1416 = vmatpush2.msra.mxu0 0.0
        %1417 = vmatprep.subr.mxu0 0.0
        %1418 = vmatpush2.msra.mxu0 0.0
        %1419 = vmatprep.subr.mxu0 0.0
        %1420 = vmatpush2.msra.mxu0 0.0
        %1421 = vmatprep.subr.mxu0 0.0
        %1422 = vmatpush2.msra.mxu0 0.0
        %1423 = vmatprep.subr.mxu0 0.0
        %1424 = vmatpush2.msra.mxu0 0.0
        %1425 = vmatprep.subr.mxu0 0.0
        %1426 = vmatpush2.msra.mxu0 0.0
        %1427 = vmatprep.mubr.f32.mxu0 0.0
        %1428 = vmatmul.mubr.f32.gmra.mxu0 %v1361
        %v1429 = vpop.f32.mrf.mxu0
        %v1430 = vadd.f32 %v1358, %v1429
        %v1431 = vpop.f32.mrf.mxu0
        %v1432 = vadd.f32 %v1358, %v1431
        %1433 = vdwg.mxu0
        %1434 = vmatprep.subr.mxu0 0.0
        %1435 = vmatpush1.msra.mxu0 0.0
        %1436 = vmatprep.subr.mxu0 0.0
        %1437 = vmatpush1.msra.mxu0 0.0
        %1438 = vmatprep.subr.mxu0 0.0
        %1439 = vmatpush1.msra.mxu0 0.0
        %1440 = vmatprep.subr.mxu0 0.0
        %1441 = vmatpush1.msra.mxu0 0.0
        %1442 = vmatprep.subr.mxu0 0.0
        %1443 = vmatpush1.msra.mxu0 0.0
        %1444 = vmatprep.subr.mxu0 0.0
        %1445 = vmatpush1.msra.mxu0 0.0
        %1446 = vmatprep.subr.mxu0 0.0
        %1447 = vmatpush1.msra.mxu0 0.0
        %1448 = vmatprep.subr.mxu0 0.0
        %1449 = vmatpush1.msra.mxu0 0.0
        %1450 = vmatprep.subr.mxu0 0.0
        %1451 = vmatpush1.msra.mxu0 0.0
        %1452 = vmatprep.subr.mxu0 0.0
        %1453 = vmatpush1.msra.mxu0 0.0
        %1454 = vmatprep.subr.mxu0 0.0
        %1455 = vmatpush1.msra.mxu0 0.0
        %1456 = vmatprep.subr.mxu0 0.0
        %1457 = vmatpush1.msra.mxu0 0.0
        %1458 = vmatprep.subr.mxu0 0.0
        %1459 = vmatpush1.msra.mxu0 0.0
        %1460 = vmatprep.subr.mxu0 %v1350
        %1461 = vmatpush1.msra.mxu0 %v1349
        %1462 = vmatprep.subr.mxu0 %v1342
        %1463 = vmatpush1.msra.mxu0 %v1341
        %1464 = vmatprep.subr.mxu0 %v1334
        %1465 = vmatpush1.msra.mxu0 %v1333
        %1466 = vmatprep.subr.mxu0 0.0
        %1467 = vmatpush2.msra.mxu0 0.0
        %1468 = vmatprep.subr.mxu0 0.0
        %1469 = vmatpush2.msra.mxu0 0.0
        %1470 = vmatprep.subr.mxu0 0.0
        %1471 = vmatpush2.msra.mxu0 0.0
        %1472 = vmatprep.subr.mxu0 0.0
        %1473 = vmatpush2.msra.mxu0 0.0
        %1474 = vmatprep.subr.mxu0 0.0
        %1475 = vmatpush2.msra.mxu0 0.0
        %1476 = vmatprep.subr.mxu0 0.0
        %1477 = vmatpush2.msra.mxu0 0.0
        %1478 = vmatprep.subr.mxu0 0.0
        %1479 = vmatpush2.msra.mxu0 0.0
        %1480 = vmatprep.subr.mxu0 0.0
        %1481 = vmatpush2.msra.mxu0 0.0
        %1482 = vmatprep.subr.mxu0 0.0
        %1483 = vmatpush2.msra.mxu0 0.0
        %1484 = vmatprep.subr.mxu0 0.0
        %1485 = vmatpush2.msra.mxu0 0.0
        %1486 = vmatprep.subr.mxu0 0.0
        %1487 = vmatpush2.msra.mxu0 0.0
        %1488 = vmatprep.subr.mxu0 0.0
        %1489 = vmatpush2.msra.mxu0 0.0
        %1490 = vmatprep.subr.mxu0 0.0
        %1491 = vmatpush2.msra.mxu0 0.0
        %1492 = vmatprep.subr.mxu0 0.0
        %1493 = vmatpush2.msra.mxu0 0.0
        %1494 = vmatprep.subr.mxu0 0.0
        %1495 = vmatpush2.msra.mxu0 0.0
        %1496 = vmatprep.subr.mxu0 0.0
        %1497 = vmatpush2.msra.mxu0 0.0
        %1498 = vmatprep.mubr.f32.mxu0 0.0
        %1499 = vmatmul.mubr.f32.gmra.mxu0 %v1361
        %v1500 = vpop.f32.mrf.mxu0
        %v1501 = vadd.f32 %v1358, %v1500
        %v1502 = vpop.f32.mrf.mxu0
        %v1503 = vadd.f32 %v1358, %v1502
        %1504 = vdwg.mxu0
        %1505 = vmatprep.subr.mxu0 0.0
        %1506 = vmatpush1.msra.mxu0 0.0
        %1507 = vmatprep.subr.mxu0 0.0
        %1508 = vmatpush1.msra.mxu0 0.0
        %1509 = vmatprep.subr.mxu0 0.0
        %1510 = vmatpush1.msra.mxu0 0.0
        %1511 = vmatprep.subr.mxu0 0.0
        %1512 = vmatpush1.msra.mxu0 0.0
        %1513 = vmatprep.subr.mxu0 0.0
        %1514 = vmatpush1.msra.mxu0 0.0
        %1515 = vmatprep.subr.mxu0 0.0
        %1516 = vmatpush1.msra.mxu0 0.0
        %1517 = vmatprep.subr.mxu0 0.0
        %1518 = vmatpush1.msra.mxu0 0.0
        %1519 = vmatprep.subr.mxu0 0.0
        %1520 = vmatpush1.msra.mxu0 0.0
        %1521 = vmatprep.subr.mxu0 0.0
        %1522 = vmatpush1.msra.mxu0 0.0
        %1523 = vmatprep.subr.mxu0 0.0
        %1524 = vmatpush1.msra.mxu0 0.0
        %1525 = vmatprep.subr.mxu0 0.0
        %1526 = vmatpush1.msra.mxu0 0.0
        %1527 = vmatprep.subr.mxu0 0.0
        %1528 = vmatpush1.msra.mxu0 0.0
        %1529 = vmatprep.subr.mxu0 0.0
        %1530 = vmatpush1.msra.mxu0 0.0
        %1531 = vmatprep.subr.mxu0 %v1352
        %1532 = vmatpush1.msra.mxu0 %v1351
        %1533 = vmatprep.subr.mxu0 %v1344
        %1534 = vmatpush1.msra.mxu0 %v1343
        %1535 = vmatprep.subr.mxu0 %v1336
        %1536 = vmatpush1.msra.mxu0 %v1335
        %1537 = vmatprep.subr.mxu0 0.0
        %1538 = vmatpush2.msra.mxu0 0.0
        %1539 = vmatprep.subr.mxu0 0.0
        %1540 = vmatpush2.msra.mxu0 0.0
        %1541 = vmatprep.subr.mxu0 0.0
        %1542 = vmatpush2.msra.mxu0 0.0
        %1543 = vmatprep.subr.mxu0 0.0
        %1544 = vmatpush2.msra.mxu0 0.0
        %1545 = vmatprep.subr.mxu0 0.0
        %1546 = vmatpush2.msra.mxu0 0.0
        %1547 = vmatprep.subr.mxu0 0.0
        %1548 = vmatpush2.msra.mxu0 0.0
        %1549 = vmatprep.subr.mxu0 0.0
        %1550 = vmatpush2.msra.mxu0 0.0
        %1551 = vmatprep.subr.mxu0 0.0
        %1552 = vmatpush2.msra.mxu0 0.0
        %1553 = vmatprep.subr.mxu0 0.0
        %1554 = vmatpush2.msra.mxu0 0.0
        %1555 = vmatprep.subr.mxu0 0.0
        %1556 = vmatpush2.msra.mxu0 0.0
        %1557 = vmatprep.subr.mxu0 0.0
        %1558 = vmatpush2.msra.mxu0 0.0
        %1559 = vmatprep.subr.mxu0 0.0
        %1560 = vmatpush2.msra.mxu0 0.0
        %1561 = vmatprep.subr.mxu0 0.0
        %1562 = vmatpush2.msra.mxu0 0.0
        %1563 = vmatprep.subr.mxu0 0.0
        %1564 = vmatpush2.msra.mxu0 0.0
        %1565 = vmatprep.subr.mxu0 0.0
        %1566 = vmatpush2.msra.mxu0 0.0
        %1567 = vmatprep.subr.mxu0 0.0
        %1568 = vmatpush2.msra.mxu0 0.0
        %1569 = vmatprep.mubr.f32.mxu0 0.0
        %1570 = vmatmul.mubr.f32.gmra.mxu0 %v1361
        %v1571 = vpop.f32.mrf.mxu0
        %v1572 = vadd.f32 %v1358, %v1571
        %v1573 = vpop.f32.mrf.mxu0
        %v1574 = vadd.f32 %v1358, %v1573
        %1575 = vdwg.mxu0
        %1576 = vmatprep.subr.mxu0 0.0
        %1577 = vmatpush1.msra.mxu0 0.0
        %1578 = vmatprep.subr.mxu0 0.0
        %1579 = vmatpush1.msra.mxu0 0.0
        %1580 = vmatprep.subr.mxu0 0.0
        %1581 = vmatpush1.msra.mxu0 0.0
        %1582 = vmatprep.subr.mxu0 0.0
        %1583 = vmatpush1.msra.mxu0 0.0
        %1584 = vmatprep.subr.mxu0 0.0
        %1585 = vmatpush1.msra.mxu0 0.0
        %1586 = vmatprep.subr.mxu0 0.0
        %1587 = vmatpush1.msra.mxu0 0.0
        %1588 = vmatprep.subr.mxu0 0.0
        %1589 = vmatpush1.msra.mxu0 0.0
        %1590 = vmatprep.subr.mxu0 0.0
        %1591 = vmatpush1.msra.mxu0 0.0
        %1592 = vmatprep.subr.mxu0 0.0
        %1593 = vmatpush1.msra.mxu0 0.0
        %1594 = vmatprep.subr.mxu0 0.0
        %1595 = vmatpush1.msra.mxu0 0.0
        %1596 = vmatprep.subr.mxu0 0.0
        %1597 = vmatpush1.msra.mxu0 0.0
        %1598 = vmatprep.subr.mxu0 0.0
        %1599 = vmatpush1.msra.mxu0 0.0
        %1600 = vmatprep.subr.mxu0 0.0
        %1601 = vmatpush1.msra.mxu0 0.0
        %1602 = vmatprep.subr.mxu0 %v1354
        %1603 = vmatpush1.msra.mxu0 %v1353
        %1604 = vmatprep.subr.mxu0 %v1346
        %1605 = vmatpush1.msra.mxu0 %v1345
        %1606 = vmatprep.subr.mxu0 %v1338
        %1607 = vmatpush1.msra.mxu0 %v1337
        %1608 = vmatprep.subr.mxu0 0.0
        %1609 = vmatpush2.msra.mxu0 0.0
        %1610 = vmatprep.subr.mxu0 0.0
        %1611 = vmatpush2.msra.mxu0 0.0
        %1612 = vmatprep.subr.mxu0 0.0
        %1613 = vmatpush2.msra.mxu0 0.0
        %1614 = vmatprep.subr.mxu0 0.0
        %1615 = vmatpush2.msra.mxu0 0.0
        %1616 = vmatprep.subr.mxu0 0.0
        %1617 = vmatpush2.msra.mxu0 0.0
        %1618 = vmatprep.subr.mxu0 0.0
        %1619 = vmatpush2.msra.mxu0 0.0
        %1620 = vmatprep.subr.mxu0 0.0
        %1621 = vmatpush2.msra.mxu0 0.0
        %1622 = vmatprep.subr.mxu0 0.0
        %1623 = vmatpush2.msra.mxu0 0.0
        %1624 = vmatprep.subr.mxu0 0.0
        %1625 = vmatpush2.msra.mxu0 0.0
        %1626 = vmatprep.subr.mxu0 0.0
        %1627 = vmatpush2.msra.mxu0 0.0
        %1628 = vmatprep.subr.mxu0 0.0
        %1629 = vmatpush2.msra.mxu0 0.0
        %1630 = vmatprep.subr.mxu0 0.0
        %1631 = vmatpush2.msra.mxu0 0.0
        %1632 = vmatprep.subr.mxu0 0.0
        %1633 = vmatpush2.msra.mxu0 0.0
        %1634 = vmatprep.subr.mxu0 0.0
        %1635 = vmatpush2.msra.mxu0 0.0
        %1636 = vmatprep.subr.mxu0 0.0
        %1637 = vmatpush2.msra.mxu0 0.0
        %1638 = vmatprep.subr.mxu0 0.0
        %1639 = vmatpush2.msra.mxu0 0.0
        %1640 = vmatprep.mubr.f32.mxu0 0.0
        %1641 = vmatmul.mubr.f32.gmra.mxu0 %v1361
        %v1642 = vpop.f32.mrf.mxu0
        %v1643 = vadd.f32 %v1358, %v1642
        %v1644 = vpop.f32.mrf.mxu0
        %v1645 = vadd.f32 %v1358, %v1644
        %1646 = vdwg.mxu0
        %v1647 = vmax.f32 %v1430, 0.0
        %v1648 = vmax.f32 %v1432, 0.0
        %v1649 = vmax.f32 %v1501, 0.0
        %v1650 = vmax.f32 %v1503, 0.0
        %v1651 = vmax.f32 %v1572, 0.0
        %v1652 = vmax.f32 %v1574, 0.0
        %v1653 = vmax.f32 %v1643, 0.0
        %v1654 = vmax.f32 %v1645, 0.0
        %v1655 = vadd.f32 %v1647, %v457
        %v1656 = vadd.f32 %v1648, %v459
        %v1657 = vadd.f32 %v1649, %v528
        %v1658 = vadd.f32 %v1650, %v530
        %v1659 = vadd.f32 %v1651, %v599
        %v1660 = vadd.f32 %v1652, %v601
        %v1661 = vadd.f32 %v1653, %v670
        %v1662 = vadd.f32 %v1654, %v672
        %v1663 = vmax.f32 %v1655, 0.0
        %v1664 = vmax.f32 %v1656, 0.0
        %v1665 = vmax.f32 %v1657, 0.0
        %v1666 = vmax.f32 %v1658, 0.0
        %v1667 = vmax.f32 %v1659, 0.0
        %v1668 = vmax.f32 %v1660, 0.0
        %v1669 = vmax.f32 %v1661, 0.0
        %v1670 = vmax.f32 %v1662, 0.0
        %1671 = vst [vmem:[%s362] sm:$0xff] %v1663
        %1672 = vst [vmem:[%s362 + $0x8] sm:$0xff] %v1664
        %1673 = vst [vmem:[%s362 + $0x10] sm:$0xff] %v1665
        %1674 = vst [vmem:[%s362 + $0x18] sm:$0xff] %v1666
        %1675 = vst [vmem:[%s362 + $0x20] sm:$0xff] %v1667
        %1676 = vst [vmem:[%s362 + $0x28] sm:$0xff] %v1668
        %1677 = vst [vmem:[%s362 + $0x30] sm:$0xff] %v1669
        %1678 = vst [vmem:[%s362 + $0x38] sm:$0xff] %v1670
        %s1679 = scalar_lea.vmem %s316, 64 [#allocation4]
        %v1680 = vld [vmem:[%s1679] sm:$0xff]
        %v1681 = vld [vmem:[%s1679 + $0x8] sm:$0xff]
        %v1682 = vld [vmem:[%s1679 + $0x10] sm:$0xff]
        %v1683 = vld [vmem:[%s1679 + $0x18] sm:$0xff]
        %v1684 = vld [vmem:[%s1679 + $0x20] sm:$0xff]
        %v1685 = vld [vmem:[%s1679 + $0x28] sm:$0xff]
        %v1686 = vld [vmem:[%s1679 + $0x30] sm:$0xff]
        %v1687 = vld [vmem:[%s1679 + $0x38] sm:$0xff]
        %s1688 = scalar_lea.vmem %s325, 8 [#allocation7]
        %v1689 = vld [vmem:[%s1688] sm:$0xff]
        %1690 = vmatprep.subr.mxu0 0.0
        %1691 = vmatpush1.msra.mxu0 0.0
        %1692 = vmatprep.subr.mxu0 0.0
        %1693 = vmatpush1.msra.mxu0 0.0
        %1694 = vmatprep.subr.mxu0 0.0
        %1695 = vmatpush1.msra.mxu0 0.0
        %1696 = vmatprep.subr.mxu0 0.0
        %1697 = vmatpush1.msra.mxu0 0.0
        %1698 = vmatprep.subr.mxu0 0.0
        %1699 = vmatpush1.msra.mxu0 0.0
        %1700 = vmatprep.subr.mxu0 0.0
        %1701 = vmatpush1.msra.mxu0 0.0
        %1702 = vmatprep.subr.mxu0 0.0
        %1703 = vmatpush1.msra.mxu0 0.0
        %1704 = vmatprep.subr.mxu0 0.0
        %1705 = vmatpush1.msra.mxu0 0.0
        %1706 = vmatprep.subr.mxu0 0.0
        %1707 = vmatpush1.msra.mxu0 0.0
        %1708 = vmatprep.subr.mxu0 0.0
        %1709 = vmatpush1.msra.mxu0 0.0
        %1710 = vmatprep.subr.mxu0 0.0
        %1711 = vmatpush1.msra.mxu0 0.0
        %1712 = vmatprep.subr.mxu0 0.0
        %1713 = vmatpush1.msra.mxu0 0.0
        %1714 = vmatprep.subr.mxu0 0.0
        %1715 = vmatpush1.msra.mxu0 0.0
        %1716 = vmatprep.subr.mxu0 0.0
        %1717 = vmatpush1.msra.mxu0 0.0
        %1718 = vmatprep.subr.mxu0 0.0
        %1719 = vmatpush1.msra.mxu0 0.0
        %1720 = vmatprep.subr.mxu0 %v1681
        %1721 = vmatpush1.msra.mxu0 %v1680
        %1722 = vmatprep.subr.mxu0 0.0
        %1723 = vmatpush2.msra.mxu0 0.0
        %1724 = vmatprep.subr.mxu0 0.0
        %1725 = vmatpush2.msra.mxu0 0.0
        %1726 = vmatprep.subr.mxu0 0.0
        %1727 = vmatpush2.msra.mxu0 0.0
        %1728 = vmatprep.subr.mxu0 0.0
        %1729 = vmatpush2.msra.mxu0 0.0
        %1730 = vmatprep.subr.mxu0 0.0
        %1731 = vmatpush2.msra.mxu0 0.0
        %1732 = vmatprep.subr.mxu0 0.0
        %1733 = vmatpush2.msra.mxu0 0.0
        %1734 = vmatprep.subr.mxu0 0.0
        %1735 = vmatpush2.msra.mxu0 0.0
        %1736 = vmatprep.subr.mxu0 0.0
        %1737 = vmatpush2.msra.mxu0 0.0
        %1738 = vmatprep.subr.mxu0 0.0
        %1739 = vmatpush2.msra.mxu0 0.0
        %1740 = vmatprep.subr.mxu0 0.0
        %1741 = vmatpush2.msra.mxu0 0.0
        %1742 = vmatprep.subr.mxu0 0.0
        %1743 = vmatpush2.msra.mxu0 0.0
        %1744 = vmatprep.subr.mxu0 0.0
        %1745 = vmatpush2.msra.mxu0 0.0
        %1746 = vmatprep.subr.mxu0 0.0
        %1747 = vmatpush2.msra.mxu0 0.0
        %1748 = vmatprep.subr.mxu0 0.0
        %1749 = vmatpush2.msra.mxu0 0.0
        %1750 = vmatprep.subr.mxu0 0.0
        %1751 = vmatpush2.msra.mxu0 0.0
        %1752 = vmatprep.subr.mxu0 0.0
        %1753 = vmatpush2.msra.mxu0 0.0
        %1754 = vmatprep.mubr.f32.mxu0 0.0
        %1755 = vmatmul.mubr.f32.gmra.mxu0 %v388
        %v1756 = vpop.f32.mrf.mxu0
        %v1757 = vadd.f32 %v384, %v1756
        %v1758 = vpop.f32.mrf.mxu0
        %v1759 = vadd.f32 %v384, %v1758
        %1760 = vdwg.mxu0
        %1761 = vmatprep.subr.mxu0 0.0
        %1762 = vmatpush1.msra.mxu0 0.0
        %1763 = vmatprep.subr.mxu0 0.0
        %1764 = vmatpush1.msra.mxu0 0.0
        %1765 = vmatprep.subr.mxu0 0.0
        %1766 = vmatpush1.msra.mxu0 0.0
        %1767 = vmatprep.subr.mxu0 0.0
        %1768 = vmatpush1.msra.mxu0 0.0
        %1769 = vmatprep.subr.mxu0 0.0
        %1770 = vmatpush1.msra.mxu0 0.0
        %1771 = vmatprep.subr.mxu0 0.0
        %1772 = vmatpush1.msra.mxu0 0.0
        %1773 = vmatprep.subr.mxu0 0.0
        %1774 = vmatpush1.msra.mxu0 0.0
        %1775 = vmatprep.subr.mxu0 0.0
        %1776 = vmatpush1.msra.mxu0 0.0
        %1777 = vmatprep.subr.mxu0 0.0
        %1778 = vmatpush1.msra.mxu0 0.0
        %1779 = vmatprep.subr.mxu0 0.0
        %1780 = vmatpush1.msra.mxu0 0.0
        %1781 = vmatprep.subr.mxu0 0.0
        %1782 = vmatpush1.msra.mxu0 0.0
        %1783 = vmatprep.subr.mxu0 0.0
        %1784 = vmatpush1.msra.mxu0 0.0
        %1785 = vmatprep.subr.mxu0 0.0
        %1786 = vmatpush1.msra.mxu0 0.0
        %1787 = vmatprep.subr.mxu0 0.0
        %1788 = vmatpush1.msra.mxu0 0.0
        %1789 = vmatprep.subr.mxu0 0.0
        %1790 = vmatpush1.msra.mxu0 0.0
        %1791 = vmatprep.subr.mxu0 %v1683
        %1792 = vmatpush1.msra.mxu0 %v1682
        %1793 = vmatprep.subr.mxu0 0.0
        %1794 = vmatpush2.msra.mxu0 0.0
        %1795 = vmatprep.subr.mxu0 0.0
        %1796 = vmatpush2.msra.mxu0 0.0
        %1797 = vmatprep.subr.mxu0 0.0
        %1798 = vmatpush2.msra.mxu0 0.0
        %1799 = vmatprep.subr.mxu0 0.0
        %1800 = vmatpush2.msra.mxu0 0.0
        %1801 = vmatprep.subr.mxu0 0.0
        %1802 = vmatpush2.msra.mxu0 0.0
        %1803 = vmatprep.subr.mxu0 0.0
        %1804 = vmatpush2.msra.mxu0 0.0
        %1805 = vmatprep.subr.mxu0 0.0
        %1806 = vmatpush2.msra.mxu0 0.0
        %1807 = vmatprep.subr.mxu0 0.0
        %1808 = vmatpush2.msra.mxu0 0.0
        %1809 = vmatprep.subr.mxu0 0.0
        %1810 = vmatpush2.msra.mxu0 0.0
        %1811 = vmatprep.subr.mxu0 0.0
        %1812 = vmatpush2.msra.mxu0 0.0
        %1813 = vmatprep.subr.mxu0 0.0
        %1814 = vmatpush2.msra.mxu0 0.0
        %1815 = vmatprep.subr.mxu0 0.0
        %1816 = vmatpush2.msra.mxu0 0.0
        %1817 = vmatprep.subr.mxu0 0.0
        %1818 = vmatpush2.msra.mxu0 0.0
        %1819 = vmatprep.subr.mxu0 0.0
        %1820 = vmatpush2.msra.mxu0 0.0
        %1821 = vmatprep.subr.mxu0 0.0
        %1822 = vmatpush2.msra.mxu0 0.0
        %1823 = vmatprep.subr.mxu0 0.0
        %1824 = vmatpush2.msra.mxu0 0.0
        %1825 = vmatprep.mubr.f32.mxu0 0.0
        %1826 = vmatmul.mubr.f32.gmra.mxu0 %v388
        %v1827 = vpop.f32.mrf.mxu0
        %v1828 = vadd.f32 %v384, %v1827
        %v1829 = vpop.f32.mrf.mxu0
        %v1830 = vadd.f32 %v384, %v1829
        %1831 = vdwg.mxu0
        %1832 = vmatprep.subr.mxu0 0.0
        %1833 = vmatpush1.msra.mxu0 0.0
        %1834 = vmatprep.subr.mxu0 0.0
        %1835 = vmatpush1.msra.mxu0 0.0
        %1836 = vmatprep.subr.mxu0 0.0
        %1837 = vmatpush1.msra.mxu0 0.0
        %1838 = vmatprep.subr.mxu0 0.0
        %1839 = vmatpush1.msra.mxu0 0.0
        %1840 = vmatprep.subr.mxu0 0.0
        %1841 = vmatpush1.msra.mxu0 0.0
        %1842 = vmatprep.subr.mxu0 0.0
        %1843 = vmatpush1.msra.mxu0 0.0
        %1844 = vmatprep.subr.mxu0 0.0
        %1845 = vmatpush1.msra.mxu0 0.0
        %1846 = vmatprep.subr.mxu0 0.0
        %1847 = vmatpush1.msra.mxu0 0.0
        %1848 = vmatprep.subr.mxu0 0.0
        %1849 = vmatpush1.msra.mxu0 0.0
        %1850 = vmatprep.subr.mxu0 0.0
        %1851 = vmatpush1.msra.mxu0 0.0
        %1852 = vmatprep.subr.mxu0 0.0
        %1853 = vmatpush1.msra.mxu0 0.0
        %1854 = vmatprep.subr.mxu0 0.0
        %1855 = vmatpush1.msra.mxu0 0.0
        %1856 = vmatprep.subr.mxu0 0.0
        %1857 = vmatpush1.msra.mxu0 0.0
        %1858 = vmatprep.subr.mxu0 0.0
        %1859 = vmatpush1.msra.mxu0 0.0
        %1860 = vmatprep.subr.mxu0 0.0
        %1861 = vmatpush1.msra.mxu0 0.0
        %1862 = vmatprep.subr.mxu0 %v1685
        %1863 = vmatpush1.msra.mxu0 %v1684
        %1864 = vmatprep.subr.mxu0 0.0
        %1865 = vmatpush2.msra.mxu0 0.0
        %1866 = vmatprep.subr.mxu0 0.0
        %1867 = vmatpush2.msra.mxu0 0.0
        %1868 = vmatprep.subr.mxu0 0.0
        %1869 = vmatpush2.msra.mxu0 0.0
        %1870 = vmatprep.subr.mxu0 0.0
        %1871 = vmatpush2.msra.mxu0 0.0
        %1872 = vmatprep.subr.mxu0 0.0
        %1873 = vmatpush2.msra.mxu0 0.0
        %1874 = vmatprep.subr.mxu0 0.0
        %1875 = vmatpush2.msra.mxu0 0.0
        %1876 = vmatprep.subr.mxu0 0.0
        %1877 = vmatpush2.msra.mxu0 0.0
        %1878 = vmatprep.subr.mxu0 0.0
        %1879 = vmatpush2.msra.mxu0 0.0
        %1880 = vmatprep.subr.mxu0 0.0
        %1881 = vmatpush2.msra.mxu0 0.0
        %1882 = vmatprep.subr.mxu0 0.0
        %1883 = vmatpush2.msra.mxu0 0.0
        %1884 = vmatprep.subr.mxu0 0.0
        %1885 = vmatpush2.msra.mxu0 0.0
        %1886 = vmatprep.subr.mxu0 0.0
        %1887 = vmatpush2.msra.mxu0 0.0
        %1888 = vmatprep.subr.mxu0 0.0
        %1889 = vmatpush2.msra.mxu0 0.0
        %1890 = vmatprep.subr.mxu0 0.0
        %1891 = vmatpush2.msra.mxu0 0.0
        %1892 = vmatprep.subr.mxu0 0.0
        %1893 = vmatpush2.msra.mxu0 0.0
        %1894 = vmatprep.subr.mxu0 0.0
        %1895 = vmatpush2.msra.mxu0 0.0
        %1896 = vmatprep.mubr.f32.mxu0 0.0
        %1897 = vmatmul.mubr.f32.gmra.mxu0 %v388
        %v1898 = vpop.f32.mrf.mxu0
        %v1899 = vadd.f32 %v384, %v1898
        %v1900 = vpop.f32.mrf.mxu0
        %v1901 = vadd.f32 %v384, %v1900
        %1902 = vdwg.mxu0
        %1903 = vmatprep.subr.mxu0 0.0
        %1904 = vmatpush1.msra.mxu0 0.0
        %1905 = vmatprep.subr.mxu0 0.0
        %1906 = vmatpush1.msra.mxu0 0.0
        %1907 = vmatprep.subr.mxu0 0.0
        %1908 = vmatpush1.msra.mxu0 0.0
        %1909 = vmatprep.subr.mxu0 0.0
        %1910 = vmatpush1.msra.mxu0 0.0
        %1911 = vmatprep.subr.mxu0 0.0
        %1912 = vmatpush1.msra.mxu0 0.0
        %1913 = vmatprep.subr.mxu0 0.0
        %1914 = vmatpush1.msra.mxu0 0.0
        %1915 = vmatprep.subr.mxu0 0.0
        %1916 = vmatpush1.msra.mxu0 0.0
        %1917 = vmatprep.subr.mxu0 0.0
        %1918 = vmatpush1.msra.mxu0 0.0
        %1919 = vmatprep.subr.mxu0 0.0
        %1920 = vmatpush1.msra.mxu0 0.0
        %1921 = vmatprep.subr.mxu0 0.0
        %1922 = vmatpush1.msra.mxu0 0.0
        %1923 = vmatprep.subr.mxu0 0.0
        %1924 = vmatpush1.msra.mxu0 0.0
        %1925 = vmatprep.subr.mxu0 0.0
        %1926 = vmatpush1.msra.mxu0 0.0
        %1927 = vmatprep.subr.mxu0 0.0
        %1928 = vmatpush1.msra.mxu0 0.0
        %1929 = vmatprep.subr.mxu0 0.0
        %1930 = vmatpush1.msra.mxu0 0.0
        %1931 = vmatprep.subr.mxu0 0.0
        %1932 = vmatpush1.msra.mxu0 0.0
        %1933 = vmatprep.subr.mxu0 %v1687
        %1934 = vmatpush1.msra.mxu0 %v1686
        %1935 = vmatprep.subr.mxu0 0.0
        %1936 = vmatpush2.msra.mxu0 0.0
        %1937 = vmatprep.subr.mxu0 0.0
        %1938 = vmatpush2.msra.mxu0 0.0
        %1939 = vmatprep.subr.mxu0 0.0
        %1940 = vmatpush2.msra.mxu0 0.0
        %1941 = vmatprep.subr.mxu0 0.0
        %1942 = vmatpush2.msra.mxu0 0.0
        %1943 = vmatprep.subr.mxu0 0.0
        %1944 = vmatpush2.msra.mxu0 0.0
        %1945 = vmatprep.subr.mxu0 0.0
        %1946 = vmatpush2.msra.mxu0 0.0
        %1947 = vmatprep.subr.mxu0 0.0
        %1948 = vmatpush2.msra.mxu0 0.0
        %1949 = vmatprep.subr.mxu0 0.0
        %1950 = vmatpush2.msra.mxu0 0.0
        %1951 = vmatprep.subr.mxu0 0.0
        %1952 = vmatpush2.msra.mxu0 0.0
        %1953 = vmatprep.subr.mxu0 0.0
        %1954 = vmatpush2.msra.mxu0 0.0
        %1955 = vmatprep.subr.mxu0 0.0
        %1956 = vmatpush2.msra.mxu0 0.0
        %1957 = vmatprep.subr.mxu0 0.0
        %1958 = vmatpush2.msra.mxu0 0.0
        %1959 = vmatprep.subr.mxu0 0.0
        %1960 = vmatpush2.msra.mxu0 0.0
        %1961 = vmatprep.subr.mxu0 0.0
        %1962 = vmatpush2.msra.mxu0 0.0
        %1963 = vmatprep.subr.mxu0 0.0
        %1964 = vmatpush2.msra.mxu0 0.0
        %1965 = vmatprep.subr.mxu0 0.0
        %1966 = vmatpush2.msra.mxu0 0.0
        %1967 = vmatprep.mubr.f32.mxu0 0.0
        %1968 = vmatmul.mubr.f32.gmra.mxu0 %v388
        %v1969 = vpop.f32.mrf.mxu0
        %v1970 = vadd.f32 %v384, %v1969
        %v1971 = vpop.f32.mrf.mxu0
        %v1972 = vadd.f32 %v384, %v1971
        %1973 = vdwg.mxu0
        %1975 = vrot.lane.b32.xlu0 %v1689, 8
        %v1976 = vpop.permute.xlu0 %1975
        %1978 = vst.msk [vmem:[#allocation2] sm:$0xff] %vm386, %v1976
        %1987 = vrot.lane.b32.xlu0 %v1680, 8
        %v1988 = vpop.permute.xlu0 %1987
        %1989 = vrot.lane.b32.xlu0 %v1681, 8
        %v1990 = vpop.permute.xlu0 %1989
        %1991 = vrot.lane.b32.xlu0 %v1682, 8
        %v1992 = vpop.permute.xlu0 %1991
        %1993 = vrot.lane.b32.xlu0 %v1683, 8
        %v1994 = vpop.permute.xlu0 %1993
        %1995 = vrot.lane.b32.xlu0 %v1684, 8
        %v1996 = vpop.permute.xlu0 %1995
        %1997 = vrot.lane.b32.xlu0 %v1685, 8
        %v1998 = vpop.permute.xlu0 %1997
        %1999 = vrot.lane.b32.xlu0 %v1686, 8
        %v2000 = vpop.permute.xlu0 %1999
        %2001 = vrot.lane.b32.xlu0 %v1687, 8
        %v2002 = vpop.permute.xlu0 %2001
        %v2003 = vsel %vm386, %v1988, %v1990
        %v2004 = vsel %vm386, %v1990, %v1992
        %v2005 = vsel %vm386, %v1992, %v1994
        %v2006 = vsel %vm386, %v1994, %v1996
        %v2007 = vsel %vm386, %v1996, %v1998
        %v2008 = vsel %vm386, %v1998, %v2000
        %v2009 = vsel %vm386, %v2000, %v2002
        %2019 = vst.msk [vmem:[#allocation2] sm:$0xff] %vm719, %v1988
        %2020 = vst [vmem:[#allocation2 + $0x8] sm:$0xff] %v2003
        %2021 = vst [vmem:[#allocation2 + $0x10] sm:$0xff] %v2004
        %2022 = vst [vmem:[#allocation2 + $0x18] sm:$0xff] %v2005
        %2023 = vst [vmem:[#allocation2 + $0x20] sm:$0xff] %v2006
        %2024 = vst [vmem:[#allocation2 + $0x28] sm:$0xff] %v2007
        %2025 = vst [vmem:[#allocation2 + $0x30] sm:$0xff] %v2008
        %2026 = vst [vmem:[#allocation2 + $0x38] sm:$0xff] %v2009
        %2027 = vst.msk [vmem:[#allocation2 + $0x40] sm:$0xff] %vm728, %v2002
        %2028 = vrot.lane.b32.xlu0 %v1689, 6
        %v2029 = vpop.permute.xlu0 %2028
        %2031 = vst.msk [vmem:[#allocation2 + $0x48] sm:$0xff] %vm733, %v2029
        %2032 = vrot.lane.b32.xlu0 %v1680, 6
        %v2033 = vpop.permute.xlu0 %2032
        %2034 = vrot.lane.b32.xlu0 %v1681, 6
        %v2035 = vpop.permute.xlu0 %2034
        %2036 = vrot.lane.b32.xlu0 %v1682, 6
        %v2037 = vpop.permute.xlu0 %2036
        %2038 = vrot.lane.b32.xlu0 %v1683, 6
        %v2039 = vpop.permute.xlu0 %2038
        %2040 = vrot.lane.b32.xlu0 %v1684, 6
        %v2041 = vpop.permute.xlu0 %2040
        %2042 = vrot.lane.b32.xlu0 %v1685, 6
        %v2043 = vpop.permute.xlu0 %2042
        %2044 = vrot.lane.b32.xlu0 %v1686, 6
        %v2045 = vpop.permute.xlu0 %2044
        %2046 = vrot.lane.b32.xlu0 %v1687, 6
        %v2047 = vpop.permute.xlu0 %2046
        %v2048 = vsel %vm733, %v2033, %v2035
        %v2049 = vsel %vm733, %v2035, %v2037
        %v2050 = vsel %vm733, %v2037, %v2039
        %v2051 = vsel %vm733, %v2039, %v2041
        %v2052 = vsel %vm733, %v2041, %v2043
        %v2053 = vsel %vm733, %v2043, %v2045
        %v2054 = vsel %vm733, %v2045, %v2047
        %2064 = vst.msk [vmem:[#allocation2 + $0x48] sm:$0xff] %vm767, %v2033
        %2065 = vst [vmem:[#allocation2 + $0x50] sm:$0xff] %v2048
        %2066 = vst [vmem:[#allocation2 + $0x58] sm:$0xff] %v2049
        %2067 = vst [vmem:[#allocation2 + $0x60] sm:$0xff] %v2050
        %2068 = vst [vmem:[#allocation2 + $0x68] sm:$0xff] %v2051
        %2069 = vst [vmem:[#allocation2 + $0x70] sm:$0xff] %v2052
        %2070 = vst [vmem:[#allocation2 + $0x78] sm:$0xff] %v2053
        %2071 = vst [vmem:[#allocation2 + $0x80] sm:$0xff] %v2054
        %2072 = vst.msk [vmem:[#allocation2 + $0x88] sm:$0xff] %vm728, %v2047
        %2073 = vrot.lane.b32.xlu0 %v1689, 4
        %v2074 = vpop.permute.xlu0 %2073
        %2076 = vst.msk [vmem:[#allocation2 + $0x90] sm:$0xff] %vm728, %v2074
        %2077 = vrot.lane.b32.xlu0 %v1680, 4
        %v2078 = vpop.permute.xlu0 %2077
        %2079 = vrot.lane.b32.xlu0 %v1681, 4
        %v2080 = vpop.permute.xlu0 %2079
        %2081 = vrot.lane.b32.xlu0 %v1682, 4
        %v2082 = vpop.permute.xlu0 %2081
        %2083 = vrot.lane.b32.xlu0 %v1683, 4
        %v2084 = vpop.permute.xlu0 %2083
        %2085 = vrot.lane.b32.xlu0 %v1684, 4
        %v2086 = vpop.permute.xlu0 %2085
        %2087 = vrot.lane.b32.xlu0 %v1685, 4
        %v2088 = vpop.permute.xlu0 %2087
        %2089 = vrot.lane.b32.xlu0 %v1686, 4
        %v2090 = vpop.permute.xlu0 %2089
        %2091 = vrot.lane.b32.xlu0 %v1687, 4
        %v2092 = vpop.permute.xlu0 %2091
        %v2093 = vsel %vm728, %v2078, %v2080
        %v2094 = vsel %vm728, %v2080, %v2082
        %v2095 = vsel %vm728, %v2082, %v2084
        %v2096 = vsel %vm728, %v2084, %v2086
        %v2097 = vsel %vm728, %v2086, %v2088
        %v2098 = vsel %vm728, %v2088, %v2090
        %v2099 = vsel %vm728, %v2090, %v2092
        %2109 = vst.msk [vmem:[#allocation2 + $0x90] sm:$0xff] %vm813, %v2078
        %2110 = vst [vmem:[#allocation2 + $0x98] sm:$0xff] %v2093
        %2111 = vst [vmem:[#allocation2 + $0xa0] sm:$0xff] %v2094
        %2112 = vst [vmem:[#allocation2 + $0xa8] sm:$0xff] %v2095
        %2113 = vst [vmem:[#allocation2 + $0xb0] sm:$0xff] %v2096
        %2114 = vst [vmem:[#allocation2 + $0xb8] sm:$0xff] %v2097
        %2115 = vst [vmem:[#allocation2 + $0xc0] sm:$0xff] %v2098
        %2116 = vst [vmem:[#allocation2 + $0xc8] sm:$0xff] %v2099
        %2117 = vst.msk [vmem:[#allocation2 + $0xd0] sm:$0xff] %vm728, %v2092
        %v2118 = vld [vmem:[#allocation2] sm:$0xff]
        %v2119 = vld [vmem:[#allocation2 + $0x8] sm:$0xff]
        %v2120 = vld [vmem:[#allocation2 + $0x10] sm:$0xff]
        %v2121 = vld [vmem:[#allocation2 + $0x18] sm:$0xff]
        %v2122 = vld [vmem:[#allocation2 + $0x20] sm:$0xff]
        %v2123 = vld [vmem:[#allocation2 + $0x28] sm:$0xff]
        %v2124 = vld [vmem:[#allocation2 + $0x30] sm:$0xff]
        %v2125 = vld [vmem:[#allocation2 + $0x38] sm:$0xff]
        %v2126 = vld [vmem:[#allocation2 + $0x40] sm:$0xff]
        %v2127 = vld [vmem:[#allocation2 + $0x48] sm:$0xff]
        %v2128 = vld [vmem:[#allocation2 + $0x50] sm:$0xff]
        %v2129 = vld [vmem:[#allocation2 + $0x58] sm:$0xff]
        %v2130 = vld [vmem:[#allocation2 + $0x60] sm:$0xff]
        %v2131 = vld [vmem:[#allocation2 + $0x68] sm:$0xff]
        %v2132 = vld [vmem:[#allocation2 + $0x70] sm:$0xff]
        %v2133 = vld [vmem:[#allocation2 + $0x78] sm:$0xff]
        %v2134 = vld [vmem:[#allocation2 + $0x80] sm:$0xff]
        %v2135 = vld [vmem:[#allocation2 + $0x88] sm:$0xff]
        %v2136 = vld [vmem:[#allocation2 + $0x90] sm:$0xff]
        %v2137 = vld [vmem:[#allocation2 + $0x98] sm:$0xff]
        %v2138 = vld [vmem:[#allocation2 + $0xa0] sm:$0xff]
        %v2139 = vld [vmem:[#allocation2 + $0xa8] sm:$0xff]
        %v2140 = vld [vmem:[#allocation2 + $0xb0] sm:$0xff]
        %v2141 = vld [vmem:[#allocation2 + $0xb8] sm:$0xff]
        %v2142 = vld [vmem:[#allocation2 + $0xc0] sm:$0xff]
        %v2143 = vld [vmem:[#allocation2 + $0xc8] sm:$0xff]
        %v2144 = vld [vmem:[#allocation2 + $0xd0] sm:$0xff]
        %2145 = vmatprep.subr.mxu0 0.0
        %2146 = vmatpush1.msra.mxu0 0.0
        %2147 = vmatprep.subr.mxu0 0.0
        %2148 = vmatpush1.msra.mxu0 0.0
        %2149 = vmatprep.subr.mxu0 0.0
        %2150 = vmatpush1.msra.mxu0 0.0
        %2151 = vmatprep.subr.mxu0 0.0
        %2152 = vmatpush1.msra.mxu0 0.0
        %2153 = vmatprep.subr.mxu0 0.0
        %2154 = vmatpush1.msra.mxu0 0.0
        %2155 = vmatprep.subr.mxu0 0.0
        %2156 = vmatpush1.msra.mxu0 0.0
        %2157 = vmatprep.subr.mxu0 0.0
        %2158 = vmatpush1.msra.mxu0 0.0
        %2159 = vmatprep.subr.mxu0 0.0
        %2160 = vmatpush1.msra.mxu0 0.0
        %2161 = vmatprep.subr.mxu0 0.0
        %2162 = vmatpush1.msra.mxu0 0.0
        %2163 = vmatprep.subr.mxu0 0.0
        %2164 = vmatpush1.msra.mxu0 0.0
        %2165 = vmatprep.subr.mxu0 0.0
        %2166 = vmatpush1.msra.mxu0 0.0
        %2167 = vmatprep.subr.mxu0 0.0
        %2168 = vmatpush1.msra.mxu0 0.0
        %2169 = vmatprep.subr.mxu0 0.0
        %2170 = vmatpush1.msra.mxu0 0.0
        %2171 = vmatprep.subr.mxu0 %v2137
        %2172 = vmatpush1.msra.mxu0 %v2136
        %2173 = vmatprep.subr.mxu0 %v2128
        %2174 = vmatpush1.msra.mxu0 %v2127
        %2175 = vmatprep.subr.mxu0 %v2119
        %2176 = vmatpush1.msra.mxu0 %v2118
        %2177 = vmatprep.subr.mxu0 0.0
        %2178 = vmatpush2.msra.mxu0 0.0
        %2179 = vmatprep.subr.mxu0 0.0
        %2180 = vmatpush2.msra.mxu0 0.0
        %2181 = vmatprep.subr.mxu0 0.0
        %2182 = vmatpush2.msra.mxu0 0.0
        %2183 = vmatprep.subr.mxu0 0.0
        %2184 = vmatpush2.msra.mxu0 0.0
        %2185 = vmatprep.subr.mxu0 0.0
        %2186 = vmatpush2.msra.mxu0 0.0
        %2187 = vmatprep.subr.mxu0 0.0
        %2188 = vmatpush2.msra.mxu0 0.0
        %2189 = vmatprep.subr.mxu0 0.0
        %2190 = vmatpush2.msra.mxu0 0.0
        %2191 = vmatprep.subr.mxu0 0.0
        %2192 = vmatpush2.msra.mxu0 0.0
        %2193 = vmatprep.subr.mxu0 0.0
        %2194 = vmatpush2.msra.mxu0 0.0
        %2195 = vmatprep.subr.mxu0 0.0
        %2196 = vmatpush2.msra.mxu0 0.0
        %2197 = vmatprep.subr.mxu0 0.0
        %2198 = vmatpush2.msra.mxu0 0.0
        %2199 = vmatprep.subr.mxu0 0.0
        %2200 = vmatpush2.msra.mxu0 0.0
        %2201 = vmatprep.subr.mxu0 0.0
        %2202 = vmatpush2.msra.mxu0 0.0
        %2203 = vmatprep.subr.mxu0 0.0
        %2204 = vmatpush2.msra.mxu0 0.0
        %2205 = vmatprep.subr.mxu0 0.0
        %2206 = vmatpush2.msra.mxu0 0.0
        %2207 = vmatprep.subr.mxu0 0.0
        %2208 = vmatpush2.msra.mxu0 0.0
        %2209 = vmatprep.mubr.f32.mxu0 0.0
        %2210 = vmatmul.mubr.f32.gmra.mxu0 %v857
        %v2211 = vpop.f32.mrf.mxu0
        %v2212 = vadd.f32 %v853, %v2211
        %v2213 = vpop.f32.mrf.mxu0
        %v2214 = vadd.f32 %v853, %v2213
        %2215 = vdwg.mxu0
        %2216 = vmatprep.subr.mxu0 0.0
        %2217 = vmatpush1.msra.mxu0 0.0
        %2218 = vmatprep.subr.mxu0 0.0
        %2219 = vmatpush1.msra.mxu0 0.0
        %2220 = vmatprep.subr.mxu0 0.0
        %2221 = vmatpush1.msra.mxu0 0.0
        %2222 = vmatprep.subr.mxu0 0.0
        %2223 = vmatpush1.msra.mxu0 0.0
        %2224 = vmatprep.subr.mxu0 0.0
        %2225 = vmatpush1.msra.mxu0 0.0
        %2226 = vmatprep.subr.mxu0 0.0
        %2227 = vmatpush1.msra.mxu0 0.0
        %2228 = vmatprep.subr.mxu0 0.0
        %2229 = vmatpush1.msra.mxu0 0.0
        %2230 = vmatprep.subr.mxu0 0.0
        %2231 = vmatpush1.msra.mxu0 0.0
        %2232 = vmatprep.subr.mxu0 0.0
        %2233 = vmatpush1.msra.mxu0 0.0
        %2234 = vmatprep.subr.mxu0 0.0
        %2235 = vmatpush1.msra.mxu0 0.0
        %2236 = vmatprep.subr.mxu0 0.0
        %2237 = vmatpush1.msra.mxu0 0.0
        %2238 = vmatprep.subr.mxu0 0.0
        %2239 = vmatpush1.msra.mxu0 0.0
        %2240 = vmatprep.subr.mxu0 0.0
        %2241 = vmatpush1.msra.mxu0 0.0
        %2242 = vmatprep.subr.mxu0 %v2139
        %2243 = vmatpush1.msra.mxu0 %v2138
        %2244 = vmatprep.subr.mxu0 %v2130
        %2245 = vmatpush1.msra.mxu0 %v2129
        %2246 = vmatprep.subr.mxu0 %v2121
        %2247 = vmatpush1.msra.mxu0 %v2120
        %2248 = vmatprep.subr.mxu0 0.0
        %2249 = vmatpush2.msra.mxu0 0.0
        %2250 = vmatprep.subr.mxu0 0.0
        %2251 = vmatpush2.msra.mxu0 0.0
        %2252 = vmatprep.subr.mxu0 0.0
        %2253 = vmatpush2.msra.mxu0 0.0
        %2254 = vmatprep.subr.mxu0 0.0
        %2255 = vmatpush2.msra.mxu0 0.0
        %2256 = vmatprep.subr.mxu0 0.0
        %2257 = vmatpush2.msra.mxu0 0.0
        %2258 = vmatprep.subr.mxu0 0.0
        %2259 = vmatpush2.msra.mxu0 0.0
        %2260 = vmatprep.subr.mxu0 0.0
        %2261 = vmatpush2.msra.mxu0 0.0
        %2262 = vmatprep.subr.mxu0 0.0
        %2263 = vmatpush2.msra.mxu0 0.0
        %2264 = vmatprep.subr.mxu0 0.0
        %2265 = vmatpush2.msra.mxu0 0.0
        %2266 = vmatprep.subr.mxu0 0.0
        %2267 = vmatpush2.msra.mxu0 0.0
        %2268 = vmatprep.subr.mxu0 0.0
        %2269 = vmatpush2.msra.mxu0 0.0
        %2270 = vmatprep.subr.mxu0 0.0
        %2271 = vmatpush2.msra.mxu0 0.0
        %2272 = vmatprep.subr.mxu0 0.0
        %2273 = vmatpush2.msra.mxu0 0.0
        %2274 = vmatprep.subr.mxu0 0.0
        %2275 = vmatpush2.msra.mxu0 0.0
        %2276 = vmatprep.subr.mxu0 0.0
        %2277 = vmatpush2.msra.mxu0 0.0
        %2278 = vmatprep.subr.mxu0 0.0
        %2279 = vmatpush2.msra.mxu0 0.0
        %2280 = vmatprep.mubr.f32.mxu0 0.0
        %2281 = vmatmul.mubr.f32.gmra.mxu0 %v857
        %v2282 = vpop.f32.mrf.mxu0
        %v2283 = vadd.f32 %v853, %v2282
        %v2284 = vpop.f32.mrf.mxu0
        %v2285 = vadd.f32 %v853, %v2284
        %2286 = vdwg.mxu0
        %2287 = vmatprep.subr.mxu0 0.0
        %2288 = vmatpush1.msra.mxu0 0.0
        %2289 = vmatprep.subr.mxu0 0.0
        %2290 = vmatpush1.msra.mxu0 0.0
        %2291 = vmatprep.subr.mxu0 0.0
        %2292 = vmatpush1.msra.mxu0 0.0
        %2293 = vmatprep.subr.mxu0 0.0
        %2294 = vmatpush1.msra.mxu0 0.0
        %2295 = vmatprep.subr.mxu0 0.0
        %2296 = vmatpush1.msra.mxu0 0.0
        %2297 = vmatprep.subr.mxu0 0.0
        %2298 = vmatpush1.msra.mxu0 0.0
        %2299 = vmatprep.subr.mxu0 0.0
        %2300 = vmatpush1.msra.mxu0 0.0
        %2301 = vmatprep.subr.mxu0 0.0
        %2302 = vmatpush1.msra.mxu0 0.0
        %2303 = vmatprep.subr.mxu0 0.0
        %2304 = vmatpush1.msra.mxu0 0.0
        %2305 = vmatprep.subr.mxu0 0.0
        %2306 = vmatpush1.msra.mxu0 0.0
        %2307 = vmatprep.subr.mxu0 0.0
        %2308 = vmatpush1.msra.mxu0 0.0
        %2309 = vmatprep.subr.mxu0 0.0
        %2310 = vmatpush1.msra.mxu0 0.0
        %2311 = vmatprep.subr.mxu0 0.0
        %2312 = vmatpush1.msra.mxu0 0.0
        %2313 = vmatprep.subr.mxu0 %v2141
        %2314 = vmatpush1.msra.mxu0 %v2140
        %2315 = vmatprep.subr.mxu0 %v2132
        %2316 = vmatpush1.msra.mxu0 %v2131
        %2317 = vmatprep.subr.mxu0 %v2123
        %2318 = vmatpush1.msra.mxu0 %v2122
        %2319 = vmatprep.subr.mxu0 0.0
        %2320 = vmatpush2.msra.mxu0 0.0
        %2321 = vmatprep.subr.mxu0 0.0
        %2322 = vmatpush2.msra.mxu0 0.0
        %2323 = vmatprep.subr.mxu0 0.0
        %2324 = vmatpush2.msra.mxu0 0.0
        %2325 = vmatprep.subr.mxu0 0.0
        %2326 = vmatpush2.msra.mxu0 0.0
        %2327 = vmatprep.subr.mxu0 0.0
        %2328 = vmatpush2.msra.mxu0 0.0
        %2329 = vmatprep.subr.mxu0 0.0
        %2330 = vmatpush2.msra.mxu0 0.0
        %2331 = vmatprep.subr.mxu0 0.0
        %2332 = vmatpush2.msra.mxu0 0.0
        %2333 = vmatprep.subr.mxu0 0.0
        %2334 = vmatpush2.msra.mxu0 0.0
        %2335 = vmatprep.subr.mxu0 0.0
        %2336 = vmatpush2.msra.mxu0 0.0
        %2337 = vmatprep.subr.mxu0 0.0
        %2338 = vmatpush2.msra.mxu0 0.0
        %2339 = vmatprep.subr.mxu0 0.0
        %2340 = vmatpush2.msra.mxu0 0.0
        %2341 = vmatprep.subr.mxu0 0.0
        %2342 = vmatpush2.msra.mxu0 0.0
        %2343 = vmatprep.subr.mxu0 0.0
        %2344 = vmatpush2.msra.mxu0 0.0
        %2345 = vmatprep.subr.mxu0 0.0
        %2346 = vmatpush2.msra.mxu0 0.0
        %2347 = vmatprep.subr.mxu0 0.0
        %2348 = vmatpush2.msra.mxu0 0.0
        %2349 = vmatprep.subr.mxu0 0.0
        %2350 = vmatpush2.msra.mxu0 0.0
        %2351 = vmatprep.mubr.f32.mxu0 0.0
        %2352 = vmatmul.mubr.f32.gmra.mxu0 %v857
        %v2353 = vpop.f32.mrf.mxu0
        %v2354 = vadd.f32 %v853, %v2353
        %v2355 = vpop.f32.mrf.mxu0
        %v2356 = vadd.f32 %v853, %v2355
        %2357 = vdwg.mxu0
        %2358 = vmatprep.subr.mxu0 0.0
        %2359 = vmatpush1.msra.mxu0 0.0
        %2360 = vmatprep.subr.mxu0 0.0
        %2361 = vmatpush1.msra.mxu0 0.0
        %2362 = vmatprep.subr.mxu0 0.0
        %2363 = vmatpush1.msra.mxu0 0.0
        %2364 = vmatprep.subr.mxu0 0.0
        %2365 = vmatpush1.msra.mxu0 0.0
        %2366 = vmatprep.subr.mxu0 0.0
        %2367 = vmatpush1.msra.mxu0 0.0
        %2368 = vmatprep.subr.mxu0 0.0
        %2369 = vmatpush1.msra.mxu0 0.0
        %2370 = vmatprep.subr.mxu0 0.0
        %2371 = vmatpush1.msra.mxu0 0.0
        %2372 = vmatprep.subr.mxu0 0.0
        %2373 = vmatpush1.msra.mxu0 0.0
        %2374 = vmatprep.subr.mxu0 0.0
        %2375 = vmatpush1.msra.mxu0 0.0
        %2376 = vmatprep.subr.mxu0 0.0
        %2377 = vmatpush1.msra.mxu0 0.0
        %2378 = vmatprep.subr.mxu0 0.0
        %2379 = vmatpush1.msra.mxu0 0.0
        %2380 = vmatprep.subr.mxu0 0.0
        %2381 = vmatpush1.msra.mxu0 0.0
        %2382 = vmatprep.subr.mxu0 0.0
        %2383 = vmatpush1.msra.mxu0 0.0
        %2384 = vmatprep.subr.mxu0 %v2143
        %2385 = vmatpush1.msra.mxu0 %v2142
        %2386 = vmatprep.subr.mxu0 %v2134
        %2387 = vmatpush1.msra.mxu0 %v2133
        %2388 = vmatprep.subr.mxu0 %v2125
        %2389 = vmatpush1.msra.mxu0 %v2124
        %2390 = vmatprep.subr.mxu0 0.0
        %2391 = vmatpush2.msra.mxu0 0.0
        %2392 = vmatprep.subr.mxu0 0.0
        %2393 = vmatpush2.msra.mxu0 0.0
        %2394 = vmatprep.subr.mxu0 0.0
        %2395 = vmatpush2.msra.mxu0 0.0
        %2396 = vmatprep.subr.mxu0 0.0
        %2397 = vmatpush2.msra.mxu0 0.0
        %2398 = vmatprep.subr.mxu0 0.0
        %2399 = vmatpush2.msra.mxu0 0.0
        %2400 = vmatprep.subr.mxu0 0.0
        %2401 = vmatpush2.msra.mxu0 0.0
        %2402 = vmatprep.subr.mxu0 0.0
        %2403 = vmatpush2.msra.mxu0 0.0
        %2404 = vmatprep.subr.mxu0 0.0
        %2405 = vmatpush2.msra.mxu0 0.0
        %2406 = vmatprep.subr.mxu0 0.0
        %2407 = vmatpush2.msra.mxu0 0.0
        %2408 = vmatprep.subr.mxu0 0.0
        %2409 = vmatpush2.msra.mxu0 0.0
        %2410 = vmatprep.subr.mxu0 0.0
        %2411 = vmatpush2.msra.mxu0 0.0
        %2412 = vmatprep.subr.mxu0 0.0
        %2413 = vmatpush2.msra.mxu0 0.0
        %2414 = vmatprep.subr.mxu0 0.0
        %2415 = vmatpush2.msra.mxu0 0.0
        %2416 = vmatprep.subr.mxu0 0.0
        %2417 = vmatpush2.msra.mxu0 0.0
        %2418 = vmatprep.subr.mxu0 0.0
        %2419 = vmatpush2.msra.mxu0 0.0
        %2420 = vmatprep.subr.mxu0 0.0
        %2421 = vmatpush2.msra.mxu0 0.0
        %2422 = vmatprep.mubr.f32.mxu0 0.0
        %2423 = vmatmul.mubr.f32.gmra.mxu0 %v857
        %v2424 = vpop.f32.mrf.mxu0
        %v2425 = vadd.f32 %v853, %v2424
        %v2426 = vpop.f32.mrf.mxu0
        %v2427 = vadd.f32 %v853, %v2426
        %2428 = vdwg.mxu0
        %2429 = vmatprep.subr.mxu0 0.0
        %2430 = vmatpush1.msra.mxu0 0.0
        %2431 = vmatprep.subr.mxu0 0.0
        %2432 = vmatpush1.msra.mxu0 0.0
        %2433 = vmatprep.subr.mxu0 0.0
        %2434 = vmatpush1.msra.mxu0 0.0
        %2435 = vmatprep.subr.mxu0 0.0
        %2436 = vmatpush1.msra.mxu0 0.0
        %2437 = vmatprep.subr.mxu0 0.0
        %2438 = vmatpush1.msra.mxu0 0.0
        %2439 = vmatprep.subr.mxu0 0.0
        %2440 = vmatpush1.msra.mxu0 0.0
        %2441 = vmatprep.subr.mxu0 0.0
        %2442 = vmatpush1.msra.mxu0 0.0
        %2443 = vmatprep.subr.mxu0 0.0
        %2444 = vmatpush1.msra.mxu0 0.0
        %2445 = vmatprep.subr.mxu0 0.0
        %2446 = vmatpush1.msra.mxu0 0.0
        %2447 = vmatprep.subr.mxu0 0.0
        %2448 = vmatpush1.msra.mxu0 0.0
        %2449 = vmatprep.subr.mxu0 0.0
        %2450 = vmatpush1.msra.mxu0 0.0
        %2451 = vmatprep.subr.mxu0 0.0
        %2452 = vmatpush1.msra.mxu0 0.0
        %2453 = vmatprep.subr.mxu0 0.0
        %2454 = vmatpush1.msra.mxu0 0.0
        %2455 = vmatprep.subr.mxu0 0.0
        %2456 = vmatpush1.msra.mxu0 %v2144
        %2457 = vmatprep.subr.mxu0 0.0
        %2458 = vmatpush1.msra.mxu0 %v2135
        %2459 = vmatprep.subr.mxu0 0.0
        %2460 = vmatpush1.msra.mxu0 %v2126
        %2461 = vmatprep.subr.mxu0 0.0
        %2462 = vmatpush2.msra.mxu0 0.0
        %2463 = vmatprep.subr.mxu0 0.0
        %2464 = vmatpush2.msra.mxu0 0.0
        %2465 = vmatprep.subr.mxu0 0.0
        %2466 = vmatpush2.msra.mxu0 0.0
        %2467 = vmatprep.subr.mxu0 0.0
        %2468 = vmatpush2.msra.mxu0 0.0
        %2469 = vmatprep.subr.mxu0 0.0
        %2470 = vmatpush2.msra.mxu0 0.0
        %2471 = vmatprep.subr.mxu0 0.0
        %2472 = vmatpush2.msra.mxu0 0.0
        %2473 = vmatprep.subr.mxu0 0.0
        %2474 = vmatpush2.msra.mxu0 0.0
        %2475 = vmatprep.subr.mxu0 0.0
        %2476 = vmatpush2.msra.mxu0 0.0
        %2477 = vmatprep.subr.mxu0 0.0
        %2478 = vmatpush2.msra.mxu0 0.0
        %2479 = vmatprep.subr.mxu0 0.0
        %2480 = vmatpush2.msra.mxu0 0.0
        %2481 = vmatprep.subr.mxu0 0.0
        %2482 = vmatpush2.msra.mxu0 0.0
        %2483 = vmatprep.subr.mxu0 0.0
        %2484 = vmatpush2.msra.mxu0 0.0
        %2485 = vmatprep.subr.mxu0 0.0
        %2486 = vmatpush2.msra.mxu0 0.0
        %2487 = vmatprep.subr.mxu0 0.0
        %2488 = vmatpush2.msra.mxu0 0.0
        %2489 = vmatprep.subr.mxu0 0.0
        %2490 = vmatpush2.msra.mxu0 0.0
        %2491 = vmatprep.subr.mxu0 0.0
        %2492 = vmatpush2.msra.mxu0 0.0
        %2493 = vmatprep.mubr.f32.mxu0 0.0
        %2494 = vmatmul.mubr.f32.gmra.mxu0 %v857
        %v2495 = vpop.f32.mrf.mxu0
        %v2496 = vadd.f32 %v853, %v2495
        %v2497 = vpop.f32.mrf.mxu0
        %2498 = vdwg.mxu0
        %v2499 = vmax.f32 %v2212, 0.0
        %v2500 = vmax.f32 %v2214, 0.0
        %v2501 = vmax.f32 %v2283, 0.0
        %v2502 = vmax.f32 %v2285, 0.0
        %v2503 = vmax.f32 %v2354, 0.0
        %v2504 = vmax.f32 %v2356, 0.0
        %v2505 = vmax.f32 %v2425, 0.0
        %v2506 = vmax.f32 %v2427, 0.0
        %v2507 = vmax.f32 %v2496, 0.0
        %2508 = vst [vmem:[#allocation3] sm:$0xff] %v2499
        %2509 = vst [vmem:[#allocation3 + $0x8] sm:$0xff] %v2500
        %2510 = vst [vmem:[#allocation3 + $0x10] sm:$0xff] %v2501
        %2511 = vst [vmem:[#allocation3 + $0x18] sm:$0xff] %v2502
        %2512 = vst [vmem:[#allocation3 + $0x20] sm:$0xff] %v2503
        %2513 = vst [vmem:[#allocation3 + $0x28] sm:$0xff] %v2504
        %2514 = vst [vmem:[#allocation3 + $0x30] sm:$0xff] %v2505
        %2515 = vst [vmem:[#allocation3 + $0x38] sm:$0xff] %v2506
        %2525 = vrot.lane.b32.xlu0 %v2499, 126
        %v2526 = vpop.permute.xlu0 %2525
        %2527 = vrot.lane.b32.xlu0 %v2500, 126
        %v2528 = vpop.permute.xlu0 %2527
        %2529 = vrot.lane.b32.xlu0 %v2501, 126
        %v2530 = vpop.permute.xlu0 %2529
        %2531 = vrot.lane.b32.xlu0 %v2502, 126
        %v2532 = vpop.permute.xlu0 %2531
        %2533 = vrot.lane.b32.xlu0 %v2503, 126
        %v2534 = vpop.permute.xlu0 %2533
        %2535 = vrot.lane.b32.xlu0 %v2504, 126
        %v2536 = vpop.permute.xlu0 %2535
        %2537 = vrot.lane.b32.xlu0 %v2505, 126
        %v2538 = vpop.permute.xlu0 %2537
        %2539 = vrot.lane.b32.xlu0 %v2506, 126
        %v2540 = vpop.permute.xlu0 %2539
        %2541 = vrot.lane.b32.xlu0 %v2507, 126
        %v2542 = vpop.permute.xlu0 %2541
        %v2543 = vsel %vm1257, %v2526, %v2528
        %v2544 = vsel %vm1257, %v2528, %v2530
        %v2545 = vsel %vm1257, %v2530, %v2532
        %v2546 = vsel %vm1257, %v2532, %v2534
        %v2547 = vsel %vm1257, %v2534, %v2536
        %v2548 = vsel %vm1257, %v2536, %v2538
        %v2549 = vsel %vm1257, %v2538, %v2540
        %v2550 = vsel %vm1257, %v2540, %v2542
        %2559 = vst [vmem:[#allocation3 + $0x40] sm:$0xff] %v2543
        %2560 = vst [vmem:[#allocation3 + $0x48] sm:$0xff] %v2544
        %2561 = vst [vmem:[#allocation3 + $0x50] sm:$0xff] %v2545
        %2562 = vst [vmem:[#allocation3 + $0x58] sm:$0xff] %v2546
        %2563 = vst [vmem:[#allocation3 + $0x60] sm:$0xff] %v2547
        %2564 = vst [vmem:[#allocation3 + $0x68] sm:$0xff] %v2548
        %2565 = vst [vmem:[#allocation3 + $0x70] sm:$0xff] %v2549
        %2566 = vst [vmem:[#allocation3 + $0x78] sm:$0xff] %v2550
        %2567 = vrot.lane.b32.xlu0 %v2499, 124
        %v2568 = vpop.permute.xlu0 %2567
        %2569 = vrot.lane.b32.xlu0 %v2500, 124
        %v2570 = vpop.permute.xlu0 %2569
        %2571 = vrot.lane.b32.xlu0 %v2501, 124
        %v2572 = vpop.permute.xlu0 %2571
        %2573 = vrot.lane.b32.xlu0 %v2502, 124
        %v2574 = vpop.permute.xlu0 %2573
        %2575 = vrot.lane.b32.xlu0 %v2503, 124
        %v2576 = vpop.permute.xlu0 %2575
        %2577 = vrot.lane.b32.xlu0 %v2504, 124
        %v2578 = vpop.permute.xlu0 %2577
        %2579 = vrot.lane.b32.xlu0 %v2505, 124
        %v2580 = vpop.permute.xlu0 %2579
        %2581 = vrot.lane.b32.xlu0 %v2506, 124
        %v2582 = vpop.permute.xlu0 %2581
        %2583 = vrot.lane.b32.xlu0 %v2507, 124
        %v2584 = vpop.permute.xlu0 %2583
        %v2585 = vsel %vm1300, %v2568, %v2570
        %v2586 = vsel %vm1300, %v2570, %v2572
        %v2587 = vsel %vm1300, %v2572, %v2574
        %v2588 = vsel %vm1300, %v2574, %v2576
        %v2589 = vsel %vm1300, %v2576, %v2578
        %v2590 = vsel %vm1300, %v2578, %v2580
        %v2591 = vsel %vm1300, %v2580, %v2582
        %v2592 = vsel %vm1300, %v2582, %v2584
        %2601 = vst [vmem:[#allocation3 + $0x80] sm:$0xff] %v2585
        %2602 = vst [vmem:[#allocation3 + $0x88] sm:$0xff] %v2586
        %2603 = vst [vmem:[#allocation3 + $0x90] sm:$0xff] %v2587
        %2604 = vst [vmem:[#allocation3 + $0x98] sm:$0xff] %v2588
        %2605 = vst [vmem:[#allocation3 + $0xa0] sm:$0xff] %v2589
        %2606 = vst [vmem:[#allocation3 + $0xa8] sm:$0xff] %v2590
        %2607 = vst [vmem:[#allocation3 + $0xb0] sm:$0xff] %v2591
        %2608 = vst [vmem:[#allocation3 + $0xb8] sm:$0xff] %v2592
        // Predicated region
        $region65: #{tpu_custom_call.1} parent=51 // pred_check
          %p2609 = pneg %p371
        $region66: #{tpu_custom_call.1} parent=51 // pred_check_branch
          %2611 = sbr.rel (%p2609) target = $region68
        $region67: #{tpu_custom_call.1} parent=51 // pred_region
          %2612 = vst.msk [vmem:[#allocation3] sm:$0xff] %vm728, 0.0
          %vm2613 = vcmask 15360
          %2614 = vst.msk [vmem:[#allocation3 + $0x40] sm:$0xff] %vm2613, 0.0
        $region68: #{tpu_custom_call.1} parent=51 // pred_fallthru
          _
        %v2615 = vld [vmem:[#allocation3] sm:$0xff]
        %v2616 = vld [vmem:[#allocation3 + $0x8] sm:$0xff]
        %v2617 = vld [vmem:[#allocation3 + $0x10] sm:$0xff]
        %v2618 = vld [vmem:[#allocation3 + $0x18] sm:$0xff]
        %v2619 = vld [vmem:[#allocation3 + $0x20] sm:$0xff]
        %v2620 = vld [vmem:[#allocation3 + $0x28] sm:$0xff]
        %v2621 = vld [vmem:[#allocation3 + $0x30] sm:$0xff]
        %v2622 = vld [vmem:[#allocation3 + $0x38] sm:$0xff]
        %v2623 = vld [vmem:[#allocation3 + $0x40] sm:$0xff]
        %v2624 = vld [vmem:[#allocation3 + $0x48] sm:$0xff]
        %v2625 = vld [vmem:[#allocation3 + $0x50] sm:$0xff]
        %v2626 = vld [vmem:[#allocation3 + $0x58] sm:$0xff]
        %v2627 = vld [vmem:[#allocation3 + $0x60] sm:$0xff]
        %v2628 = vld [vmem:[#allocation3 + $0x68] sm:$0xff]
        %v2629 = vld [vmem:[#allocation3 + $0x70] sm:$0xff]
        %v2630 = vld [vmem:[#allocation3 + $0x78] sm:$0xff]
        %v2631 = vld [vmem:[#allocation3 + $0x80] sm:$0xff]
        %v2632 = vld [vmem:[#allocation3 + $0x88] sm:$0xff]
        %v2633 = vld [vmem:[#allocation3 + $0x90] sm:$0xff]
        %v2634 = vld [vmem:[#allocation3 + $0x98] sm:$0xff]
        %v2635 = vld [vmem:[#allocation3 + $0xa0] sm:$0xff]
        %v2636 = vld [vmem:[#allocation3 + $0xa8] sm:$0xff]
        %v2637 = vld [vmem:[#allocation3 + $0xb0] sm:$0xff]
        %v2638 = vld [vmem:[#allocation3 + $0xb8] sm:$0xff]
        %2639 = vmatprep.subr.mxu0 0.0
        %2640 = vmatpush1.msra.mxu0 0.0
        %2641 = vmatprep.subr.mxu0 0.0
        %2642 = vmatpush1.msra.mxu0 0.0
        %2643 = vmatprep.subr.mxu0 0.0
        %2644 = vmatpush1.msra.mxu0 0.0
        %2645 = vmatprep.subr.mxu0 0.0
        %2646 = vmatpush1.msra.mxu0 0.0
        %2647 = vmatprep.subr.mxu0 0.0
        %2648 = vmatpush1.msra.mxu0 0.0
        %2649 = vmatprep.subr.mxu0 0.0
        %2650 = vmatpush1.msra.mxu0 0.0
        %2651 = vmatprep.subr.mxu0 0.0
        %2652 = vmatpush1.msra.mxu0 0.0
        %2653 = vmatprep.subr.mxu0 0.0
        %2654 = vmatpush1.msra.mxu0 0.0
        %2655 = vmatprep.subr.mxu0 0.0
        %2656 = vmatpush1.msra.mxu0 0.0
        %2657 = vmatprep.subr.mxu0 0.0
        %2658 = vmatpush1.msra.mxu0 0.0
        %2659 = vmatprep.subr.mxu0 0.0
        %2660 = vmatpush1.msra.mxu0 0.0
        %2661 = vmatprep.subr.mxu0 0.0
        %2662 = vmatpush1.msra.mxu0 0.0
        %2663 = vmatprep.subr.mxu0 0.0
        %2664 = vmatpush1.msra.mxu0 0.0
        %2665 = vmatprep.subr.mxu0 %v2632
        %2666 = vmatpush1.msra.mxu0 %v2631
        %2667 = vmatprep.subr.mxu0 %v2624
        %2668 = vmatpush1.msra.mxu0 %v2623
        %2669 = vmatprep.subr.mxu0 %v2616
        %2670 = vmatpush1.msra.mxu0 %v2615
        %2671 = vmatprep.subr.mxu0 0.0
        %2672 = vmatpush2.msra.mxu0 0.0
        %2673 = vmatprep.subr.mxu0 0.0
        %2674 = vmatpush2.msra.mxu0 0.0
        %2675 = vmatprep.subr.mxu0 0.0
        %2676 = vmatpush2.msra.mxu0 0.0
        %2677 = vmatprep.subr.mxu0 0.0
        %2678 = vmatpush2.msra.mxu0 0.0
        %2679 = vmatprep.subr.mxu0 0.0
        %2680 = vmatpush2.msra.mxu0 0.0
        %2681 = vmatprep.subr.mxu0 0.0
        %2682 = vmatpush2.msra.mxu0 0.0
        %2683 = vmatprep.subr.mxu0 0.0
        %2684 = vmatpush2.msra.mxu0 0.0
        %2685 = vmatprep.subr.mxu0 0.0
        %2686 = vmatpush2.msra.mxu0 0.0
        %2687 = vmatprep.subr.mxu0 0.0
        %2688 = vmatpush2.msra.mxu0 0.0
        %2689 = vmatprep.subr.mxu0 0.0
        %2690 = vmatpush2.msra.mxu0 0.0
        %2691 = vmatprep.subr.mxu0 0.0
        %2692 = vmatpush2.msra.mxu0 0.0
        %2693 = vmatprep.subr.mxu0 0.0
        %2694 = vmatpush2.msra.mxu0 0.0
        %2695 = vmatprep.subr.mxu0 0.0
        %2696 = vmatpush2.msra.mxu0 0.0
        %2697 = vmatprep.subr.mxu0 0.0
        %2698 = vmatpush2.msra.mxu0 0.0
        %2699 = vmatprep.subr.mxu0 0.0
        %2700 = vmatpush2.msra.mxu0 0.0
        %2701 = vmatprep.subr.mxu0 0.0
        %2702 = vmatpush2.msra.mxu0 0.0
        %2703 = vmatprep.mubr.f32.mxu0 0.0
        %2704 = vmatmul.mubr.f32.gmra.mxu0 %v1361
        %v2705 = vpop.f32.mrf.mxu0
        %v2706 = vadd.f32 %v1358, %v2705
        %v2707 = vpop.f32.mrf.mxu0
        %v2708 = vadd.f32 %v1358, %v2707
        %2709 = vdwg.mxu0
        %2710 = vmatprep.subr.mxu0 0.0
        %2711 = vmatpush1.msra.mxu0 0.0
        %2712 = vmatprep.subr.mxu0 0.0
        %2713 = vmatpush1.msra.mxu0 0.0
        %2714 = vmatprep.subr.mxu0 0.0
        %2715 = vmatpush1.msra.mxu0 0.0
        %2716 = vmatprep.subr.mxu0 0.0
        %2717 = vmatpush1.msra.mxu0 0.0
        %2718 = vmatprep.subr.mxu0 0.0
        %2719 = vmatpush1.msra.mxu0 0.0
        %2720 = vmatprep.subr.mxu0 0.0
        %2721 = vmatpush1.msra.mxu0 0.0
        %2722 = vmatprep.subr.mxu0 0.0
        %2723 = vmatpush1.msra.mxu0 0.0
        %2724 = vmatprep.subr.mxu0 0.0
        %2725 = vmatpush1.msra.mxu0 0.0
        %2726 = vmatprep.subr.mxu0 0.0
        %2727 = vmatpush1.msra.mxu0 0.0
        %2728 = vmatprep.subr.mxu0 0.0
        %2729 = vmatpush1.msra.mxu0 0.0
        %2730 = vmatprep.subr.mxu0 0.0
        %2731 = vmatpush1.msra.mxu0 0.0
        %2732 = vmatprep.subr.mxu0 0.0
        %2733 = vmatpush1.msra.mxu0 0.0
        %2734 = vmatprep.subr.mxu0 0.0
        %2735 = vmatpush1.msra.mxu0 0.0
        %2736 = vmatprep.subr.mxu0 %v2634
        %2737 = vmatpush1.msra.mxu0 %v2633
        %2738 = vmatprep.subr.mxu0 %v2626
        %2739 = vmatpush1.msra.mxu0 %v2625
        %2740 = vmatprep.subr.mxu0 %v2618
        %2741 = vmatpush1.msra.mxu0 %v2617
        %2742 = vmatprep.subr.mxu0 0.0
        %2743 = vmatpush2.msra.mxu0 0.0
        %2744 = vmatprep.subr.mxu0 0.0
        %2745 = vmatpush2.msra.mxu0 0.0
        %2746 = vmatprep.subr.mxu0 0.0
        %2747 = vmatpush2.msra.mxu0 0.0
        %2748 = vmatprep.subr.mxu0 0.0
        %2749 = vmatpush2.msra.mxu0 0.0
        %2750 = vmatprep.subr.mxu0 0.0
        %2751 = vmatpush2.msra.mxu0 0.0
        %2752 = vmatprep.subr.mxu0 0.0
        %2753 = vmatpush2.msra.mxu0 0.0
        %2754 = vmatprep.subr.mxu0 0.0
        %2755 = vmatpush2.msra.mxu0 0.0
        %2756 = vmatprep.subr.mxu0 0.0
        %2757 = vmatpush2.msra.mxu0 0.0
        %2758 = vmatprep.subr.mxu0 0.0
        %2759 = vmatpush2.msra.mxu0 0.0
        %2760 = vmatprep.subr.mxu0 0.0
        %2761 = vmatpush2.msra.mxu0 0.0
        %2762 = vmatprep.subr.mxu0 0.0
        %2763 = vmatpush2.msra.mxu0 0.0
        %2764 = vmatprep.subr.mxu0 0.0
        %2765 = vmatpush2.msra.mxu0 0.0
        %2766 = vmatprep.subr.mxu0 0.0
        %2767 = vmatpush2.msra.mxu0 0.0
        %2768 = vmatprep.subr.mxu0 0.0
        %2769 = vmatpush2.msra.mxu0 0.0
        %2770 = vmatprep.subr.mxu0 0.0
        %2771 = vmatpush2.msra.mxu0 0.0
        %2772 = vmatprep.subr.mxu0 0.0
        %2773 = vmatpush2.msra.mxu0 0.0
        %2774 = vmatprep.mubr.f32.mxu0 0.0
        %2775 = vmatmul.mubr.f32.gmra.mxu0 %v1361
        %v2776 = vpop.f32.mrf.mxu0
        %v2777 = vadd.f32 %v1358, %v2776
        %v2778 = vpop.f32.mrf.mxu0
        %v2779 = vadd.f32 %v1358, %v2778
        %2780 = vdwg.mxu0
        %2781 = vmatprep.subr.mxu0 0.0
        %2782 = vmatpush1.msra.mxu0 0.0
        %2783 = vmatprep.subr.mxu0 0.0
        %2784 = vmatpush1.msra.mxu0 0.0
        %2785 = vmatprep.subr.mxu0 0.0
        %2786 = vmatpush1.msra.mxu0 0.0
        %2787 = vmatprep.subr.mxu0 0.0
        %2788 = vmatpush1.msra.mxu0 0.0
        %2789 = vmatprep.subr.mxu0 0.0
        %2790 = vmatpush1.msra.mxu0 0.0
        %2791 = vmatprep.subr.mxu0 0.0
        %2792 = vmatpush1.msra.mxu0 0.0
        %2793 = vmatprep.subr.mxu0 0.0
        %2794 = vmatpush1.msra.mxu0 0.0
        %2795 = vmatprep.subr.mxu0 0.0
        %2796 = vmatpush1.msra.mxu0 0.0
        %2797 = vmatprep.subr.mxu0 0.0
        %2798 = vmatpush1.msra.mxu0 0.0
        %2799 = vmatprep.subr.mxu0 0.0
        %2800 = vmatpush1.msra.mxu0 0.0
        %2801 = vmatprep.subr.mxu0 0.0
        %2802 = vmatpush1.msra.mxu0 0.0
        %2803 = vmatprep.subr.mxu0 0.0
        %2804 = vmatpush1.msra.mxu0 0.0
        %2805 = vmatprep.subr.mxu0 0.0
        %2806 = vmatpush1.msra.mxu0 0.0
        %2807 = vmatprep.subr.mxu0 %v2636
        %2808 = vmatpush1.msra.mxu0 %v2635
        %2809 = vmatprep.subr.mxu0 %v2628
        %2810 = vmatpush1.msra.mxu0 %v2627
        %2811 = vmatprep.subr.mxu0 %v2620
        %2812 = vmatpush1.msra.mxu0 %v2619
        %2813 = vmatprep.subr.mxu0 0.0
        %2814 = vmatpush2.msra.mxu0 0.0
        %2815 = vmatprep.subr.mxu0 0.0
        %2816 = vmatpush2.msra.mxu0 0.0
        %2817 = vmatprep.subr.mxu0 0.0
        %2818 = vmatpush2.msra.mxu0 0.0
        %2819 = vmatprep.subr.mxu0 0.0
        %2820 = vmatpush2.msra.mxu0 0.0
        %2821 = vmatprep.subr.mxu0 0.0
        %2822 = vmatpush2.msra.mxu0 0.0
        %2823 = vmatprep.subr.mxu0 0.0
        %2824 = vmatpush2.msra.mxu0 0.0
        %2825 = vmatprep.subr.mxu0 0.0
        %2826 = vmatpush2.msra.mxu0 0.0
        %2827 = vmatprep.subr.mxu0 0.0
        %2828 = vmatpush2.msra.mxu0 0.0
        %2829 = vmatprep.subr.mxu0 0.0
        %2830 = vmatpush2.msra.mxu0 0.0
        %2831 = vmatprep.subr.mxu0 0.0
        %2832 = vmatpush2.msra.mxu0 0.0
        %2833 = vmatprep.subr.mxu0 0.0
        %2834 = vmatpush2.msra.mxu0 0.0
        %2835 = vmatprep.subr.mxu0 0.0
        %2836 = vmatpush2.msra.mxu0 0.0
        %2837 = vmatprep.subr.mxu0 0.0
        %2838 = vmatpush2.msra.mxu0 0.0
        %2839 = vmatprep.subr.mxu0 0.0
        %2840 = vmatpush2.msra.mxu0 0.0
        %2841 = vmatprep.subr.mxu0 0.0
        %2842 = vmatpush2.msra.mxu0 0.0
        %2843 = vmatprep.subr.mxu0 0.0
        %2844 = vmatpush2.msra.mxu0 0.0
        %2845 = vmatprep.mubr.f32.mxu0 0.0
        %2846 = vmatmul.mubr.f32.gmra.mxu0 %v1361
        %v2847 = vpop.f32.mrf.mxu0
        %v2848 = vadd.f32 %v1358, %v2847
        %v2849 = vpop.f32.mrf.mxu0
        %v2850 = vadd.f32 %v1358, %v2849
        %2851 = vdwg.mxu0
        %2852 = vmatprep.subr.mxu0 0.0
        %2853 = vmatpush1.msra.mxu0 0.0
        %2854 = vmatprep.subr.mxu0 0.0
        %2855 = vmatpush1.msra.mxu0 0.0
        %2856 = vmatprep.subr.mxu0 0.0
        %2857 = vmatpush1.msra.mxu0 0.0
        %2858 = vmatprep.subr.mxu0 0.0
        %2859 = vmatpush1.msra.mxu0 0.0
        %2860 = vmatprep.subr.mxu0 0.0
        %2861 = vmatpush1.msra.mxu0 0.0
        %2862 = vmatprep.subr.mxu0 0.0
        %2863 = vmatpush1.msra.mxu0 0.0
        %2864 = vmatprep.subr.mxu0 0.0
        %2865 = vmatpush1.msra.mxu0 0.0
        %2866 = vmatprep.subr.mxu0 0.0
        %2867 = vmatpush1.msra.mxu0 0.0
        %2868 = vmatprep.subr.mxu0 0.0
        %2869 = vmatpush1.msra.mxu0 0.0
        %2870 = vmatprep.subr.mxu0 0.0
        %2871 = vmatpush1.msra.mxu0 0.0
        %2872 = vmatprep.subr.mxu0 0.0
        %2873 = vmatpush1.msra.mxu0 0.0
        %2874 = vmatprep.subr.mxu0 0.0
        %2875 = vmatpush1.msra.mxu0 0.0
        %2876 = vmatprep.subr.mxu0 0.0
        %2877 = vmatpush1.msra.mxu0 0.0
        %2878 = vmatprep.subr.mxu0 %v2638
        %2879 = vmatpush1.msra.mxu0 %v2637
        %2880 = vmatprep.subr.mxu0 %v2630
        %2881 = vmatpush1.msra.mxu0 %v2629
        %2882 = vmatprep.subr.mxu0 %v2622
        %2883 = vmatpush1.msra.mxu0 %v2621
        %2884 = vmatprep.subr.mxu0 0.0
        %2885 = vmatpush2.msra.mxu0 0.0
        %2886 = vmatprep.subr.mxu0 0.0
        %2887 = vmatpush2.msra.mxu0 0.0
        %2888 = vmatprep.subr.mxu0 0.0
        %2889 = vmatpush2.msra.mxu0 0.0
        %2890 = vmatprep.subr.mxu0 0.0
        %2891 = vmatpush2.msra.mxu0 0.0
        %2892 = vmatprep.subr.mxu0 0.0
        %2893 = vmatpush2.msra.mxu0 0.0
        %2894 = vmatprep.subr.mxu0 0.0
        %2895 = vmatpush2.msra.mxu0 0.0
        %2896 = vmatprep.subr.mxu0 0.0
        %2897 = vmatpush2.msra.mxu0 0.0
        %2898 = vmatprep.subr.mxu0 0.0
        %2899 = vmatpush2.msra.mxu0 0.0
        %2900 = vmatprep.subr.mxu0 0.0
        %2901 = vmatpush2.msra.mxu0 0.0
        %2902 = vmatprep.subr.mxu0 0.0
        %2903 = vmatpush2.msra.mxu0 0.0
        %2904 = vmatprep.subr.mxu0 0.0
        %2905 = vmatpush2.msra.mxu0 0.0
        %2906 = vmatprep.subr.mxu0 0.0
        %2907 = vmatpush2.msra.mxu0 0.0
        %2908 = vmatprep.subr.mxu0 0.0
        %2909 = vmatpush2.msra.mxu0 0.0
        %2910 = vmatprep.subr.mxu0 0.0
        %2911 = vmatpush2.msra.mxu0 0.0
        %2912 = vmatprep.subr.mxu0 0.0
        %2913 = vmatpush2.msra.mxu0 0.0
        %2914 = vmatprep.subr.mxu0 0.0
        %2915 = vmatpush2.msra.mxu0 0.0
        %2916 = vmatprep.mubr.f32.mxu0 0.0
        %2917 = vmatmul.mubr.f32.gmra.mxu0 %v1361
        %v2918 = vpop.f32.mrf.mxu0
        %v2919 = vadd.f32 %v1358, %v2918
        %v2920 = vpop.f32.mrf.mxu0
        %v2921 = vadd.f32 %v1358, %v2920
        %2922 = vdwg.mxu0
        %v2923 = vmax.f32 %v2706, 0.0
        %v2924 = vmax.f32 %v2708, 0.0
        %v2925 = vmax.f32 %v2777, 0.0
        %v2926 = vmax.f32 %v2779, 0.0
        %v2927 = vmax.f32 %v2848, 0.0
        %v2928 = vmax.f32 %v2850, 0.0
        %v2929 = vmax.f32 %v2919, 0.0
        %v2930 = vmax.f32 %v2921, 0.0
        %v2931 = vadd.f32 %v2923, %v1757
        %v2932 = vadd.f32 %v2924, %v1759
        %v2933 = vadd.f32 %v2925, %v1828
        %v2934 = vadd.f32 %v2926, %v1830
        %v2935 = vadd.f32 %v2927, %v1899
        %v2936 = vadd.f32 %v2928, %v1901
        %v2937 = vadd.f32 %v2929, %v1970
        %v2938 = vadd.f32 %v2930, %v1972
        %v2939 = vmax.f32 %v2931, 0.0
        %v2940 = vmax.f32 %v2932, 0.0
        %v2941 = vmax.f32 %v2933, 0.0
        %v2942 = vmax.f32 %v2934, 0.0
        %v2943 = vmax.f32 %v2935, 0.0
        %v2944 = vmax.f32 %v2936, 0.0
        %v2945 = vmax.f32 %v2937, 0.0
        %v2946 = vmax.f32 %v2938, 0.0
        %s2947 = scalar_lea.vmem %s362, 64 [#allocation9]
        %2948 = vst [vmem:[%s2947] sm:$0xff] %v2939
        %2949 = vst [vmem:[%s2947 + $0x8] sm:$0xff] %v2940
        %2950 = vst [vmem:[%s2947 + $0x10] sm:$0xff] %v2941
        %2951 = vst [vmem:[%s2947 + $0x18] sm:$0xff] %v2942
        %2952 = vst [vmem:[%s2947 + $0x20] sm:$0xff] %v2943
        %2953 = vst [vmem:[%s2947 + $0x28] sm:$0xff] %v2944
        %2954 = vst [vmem:[%s2947 + $0x30] sm:$0xff] %v2945
        %2955 = vst [vmem:[%s2947 + $0x38] sm:$0xff] %v2946
        %s2956 = sand.u32 %s214, 1
        %s2957 = scalar_lea.sflag [#allocation6], %s2956
        %s2958 = sand.u32 %s214, 1
        %s2959 = smul.addr %s2958, 128
        %s2960 = scalar_lea.vmem [#allocation9], %s2959
        // Predicated region
        $region69: #{tpu_custom_call.1} parent=51 // pred_check
          %p2961 = pneg %p224
        $region70: #{tpu_custom_call.1} parent=51 // pred_check_branch
          %2963 = sbr.rel (%p2961) target = $region72
        $region71: #{tpu_custom_call.1} parent=51 // pred_region
          %s2964 = smul.u32 8, %s28
          %s2966 = ssub.s32 2048, 2048
          %2967 = vsyncadd %s2957, %s2966
          %s2968 = smul.addr %s2964, 128
          %s2969 = scalar_lea.hbm %s8, %s2968
          %s2970 = sshll.u32 %s2960, 4
          %s2971 = int_to_ptr.vmem [resolvable:$true] %s2970
          %2976 = dma.vmem_to_hbm [thread:$0]  %s2971, 2048, %s2969, %s2957, 1024, 2048, 64
        $region72: #{tpu_custom_call.1} parent=51 // pred_fallthru
          _
      $region52: #{tpu_custom_call.1} parent=5 // pred_fallthru
        _
      %p2977 = scmp.le.s32.totalorder 2, %s23
      // Predicated region
      $region73: #{tpu_custom_call.1} parent=5 // pred_check
        %p2978 = pneg %p2977
      $region74: #{tpu_custom_call.1} parent=5 // pred_check_branch
        %2980 = sbr.rel (%p2978) target = $region76
      $region75: #{tpu_custom_call.1} parent=5 // pred_region
        %s2981 = ssub.s32 %s23, 2
        // Predicated region
        $region77: #{tpu_custom_call.1} parent=75 // pred_check
          %p2982 = pneg %p230
        $region78: #{tpu_custom_call.1} parent=75 // pred_check_branch
          %2984 = sbr.rel (%p2982) target = $region80
        $region79: #{tpu_custom_call.1} parent=75 // pred_region
          %s2985 = sand.u32 %s215, 1
          %s2986 = scalar_lea.sflag [#allocation6], %s2985
          %s2987 = sand.u32 %s215, 1
          %s2988 = smul.addr %s2987, 128
          %s2989 = scalar_lea.vmem [#allocation9], %s2988
          %2990 = dma.done %s2986, 2048
        $region80: #{tpu_custom_call.1} parent=75 // pred_fallthru
          _
      $region76: #{tpu_custom_call.1} parent=5 // pred_fallthru
        _
    $region6: #{tpu_custom_call.1} parent=1 // loop_footer
      %s27 = sadd.s32 1, %s23
    $region7: #{tpu_custom_call.1} parent=1 // loop_footer_branch
      %22 = sbr.rel target = $region3
    $region8: #{tpu_custom_call.1} parent=1 // loop_exit
      _
    %2991 = vsyncpa [#allocation5], 1
    %s2992 = scalar_lea.sflag [#allocation5], 1
    %2993 = vsyncpa %s2992, 1
    %2994 = vsyncpa [#allocation8], 1
    %s2995 = scalar_lea.sflag [#allocation8], 1
    %2996 = vsyncpa %s2995, 1
    %2997 = vsyncpa [#allocation6], 1
    %s2998 = scalar_lea.sflag [#allocation6], 1
    %2999 = vsyncpa %s2998, 1

</llo_original>
